<compile_context>
chip_gen: v7x
topology: tpu7x:2x2x1
jax: 0.10.0
libtpu: 0.0.40
codegen_flags: <defaults>
</compile_context>

<pallas_src>
import math

import jax
import jax.numpy as jnp
from jax.experimental import pallas as pl
from jax.experimental.pallas import tpu as pltpu

EPS = 1e-5


# ----------------------------- kernel --------------------------------------

def conv_block_kernel(x_ref, w1_ref, s1_ref, t1_ref, w2_ref, s2_ref, t2_ref,
                      o_ref, xp1_ref, xp2_ref):
    """Fused ConvBlock for one batch element.

    x_ref  : (1, H, W, Cin)      bf16 input tile (NHWC)
    w1_ref : (9*Cin,  Cout)      bf16 conv1 weights, im2col layout (tap-major)
    s1/t1  : (1, Cout)           f32 folded BN1 scale / shift
    w2_ref : (9*Cout, Cout)      bf16 conv2 weights, im2col layout
    s2/t2  : (1, Cout)           f32 folded BN2 scale / shift
    o_ref  : (1, H/2, W/2, Cout) f32 pooled output
    xp1/xp2: VMEM halo scratch (H+2, W+2, Cin/Cout) bf16
    """
    H, W, Cin = x_ref.shape[1], x_ref.shape[2], x_ref.shape[3]
    Cout = w1_ref.shape[1]
    Ho, Wo = H // 2, W // 2

    def conv3x3_bn_relu(xp_ref, src, w_ref, s_ref, t_ref, cin):
        # In-kernel zero-pad (padding=1): zero halo scratch, write interior.
        xp_ref[...] = jnp.zeros_like(xp_ref)
        xp_ref[1:H + 1, 1:W + 1, :] = src
        xp = xp_ref[...]                                  # (H+2, W+2, cin) bf16
        # im2col: 9 shifted views concatenated along the channel (lane) axis.
        cols = [xp[ki:ki + H, kj:kj + W, :].reshape(H * W, cin)
                for ki in range(3) for kj in range(3)]
        patches = jnp.concatenate(cols, axis=-1)          # (H*W, 9*cin) bf16
        # Single MXU matmul, f32 accumulation.
        acc = jnp.dot(patches, w_ref[...],
                      preferred_element_type=jnp.float32)  # (H*W, Cout) f32
        # Folded BN (eval mode) + ReLU.
        return jnp.maximum(acc * s_ref[...] + t_ref[...], 0.0)

    # conv1 -> BN -> ReLU
    y1 = conv3x3_bn_relu(xp1_ref, x_ref[0], w1_ref, s1_ref, t1_ref, Cin)
    # conv2 -> BN -> ReLU (re-cast activations to bf16 for the MXU)
    y2 = conv3x3_bn_relu(xp2_ref,
                         y1.reshape(H, W, Cout).astype(jnp.bfloat16),
                         w2_ref, s2_ref, t2_ref, Cout)     # (H*W, Cout) f32

    # avg_pool2d(kernel=2, stride=2): cheap pair-sums on the VPU.
    #   rows of y2 are ordered r = h*W + w.
    y5 = y2.reshape(Ho, 2, W, Cout)                        # split h -> (h//2, h%2)
    hpair = y5[:, 0] + y5[:, 1]                            # vertical pair-sum (Ho, W, C)
    wq = hpair.reshape(Ho, Wo, 2, Cout)                    # split w -> (w//2, w%2)
    pooled = 0.25 * jnp.sum(wq, axis=2)                    # (Ho, Wo, Cout)

    o_ref[0] = pooled


# ----------------------------- wrapper -------------------------------------

def conv_block_forward(x_nchw, params):
    """x_nchw: (N, Cin, H, W) f32 (PyTorch layout). Returns (N, Cout, H/2, W/2) f32."""
    x = jnp.transpose(x_nchw, (0, 2, 3, 1)).astype(jnp.bfloat16)   # NCHW -> NHWC, bf16
    N, H, W, Cin = x.shape
    Cout = params["w1"].shape[-1]
    Ho, Wo = H // 2, W // 2

    out_nhwc = pl.pallas_call(
        conv_block_kernel,
        out_shape=jax.ShapeDtypeStruct((N, Ho, Wo, Cout), jnp.float32),
        grid_spec=pltpu.PrefetchScalarGridSpec(
            num_scalar_prefetch=0,
            grid=(N,),                                      # batch axis
            in_specs=[
                pl.BlockSpec((1, H, W, Cin), lambda n: (n, 0, 0, 0)),
                pl.BlockSpec((9 * Cin, Cout), lambda n: (0, 0)),   # weights resident
                pl.BlockSpec((1, Cout), lambda n: (0, 0)),
                pl.BlockSpec((1, Cout), lambda n: (0, 0)),
                pl.BlockSpec((9 * Cout, Cout), lambda n: (0, 0)),
                pl.BlockSpec((1, Cout), lambda n: (0, 0)),
                pl.BlockSpec((1, Cout), lambda n: (0, 0)),
            ],
            out_specs=pl.BlockSpec((1, Ho, Wo, Cout), lambda n: (n, 0, 0, 0)),
            scratch_shapes=[
                pltpu.VMEM((H + 2, W + 2, Cin), jnp.bfloat16),     # halo for conv1
                pltpu.VMEM((H + 2, W + 2, Cout), jnp.bfloat16),    # halo for conv2
            ],
        ),
        compiler_params=pltpu.CompilerParams(
            dimension_semantics=("parallel",),              # megacore-shard the batch (v7x)
            vmem_limit_bytes=32 * 1024 * 1024,              # plenty; leaves headroom on v7x
        ),
    )(x, params["w1"], params["s1"], params["t1"],
      params["w2"], params["s2"], params["t2"])

    return jnp.transpose(out_nhwc, (0, 3, 1, 2))            # NHWC -> NCHW (PyTorch)


# ------------------------- deterministic params -----------------------------

def init_params(key, in_channels, out_channels):
    """Matches ConvBlock._init_weights: kaiming_normal_ convs (bias=0),
    BN gamma=1, beta=0, running stats (0, 1) -> folded scale/shift."""
    bn_scale = 1.0 / math.sqrt(1.0 + EPS)
    k1, k2 = jax.random.split(key)

    def conv_w(k, cin, cout):
        # kaiming_normal_: fan_in = cin*3*3, gain = sqrt(2)
        std = math.sqrt(2.0 / (cin * 9))
        w = jax.random.normal(k, (3, 3, cin, cout), jnp.float32) * std
        # im2col layout: row index = (ki*3 + kj)*cin + c
        # NOTE: real PyTorch Conv2d weights are (Cout,Cin,kh,kw) -> transpose to (kh,kw,Cin,Cout) first.
        return w.reshape(9 * cin, cout).astype(jnp.bfloat16)

    return {
        "w1": conv_w(k1, in_channels, out_channels),
        "s1": jnp.full((1, out_channels), bn_scale, jnp.float32),
        "t1": jnp.zeros((1, out_channels), jnp.float32),   # conv bias=0, beta=0, mean=0
        "w2": conv_w(k2, out_channels, out_channels),
        "s2": jnp.full((1, out_channels), bn_scale, jnp.float32),
        "t2": jnp.zeros((1, out_channels), jnp.float32),
    }


if __name__ == "__main__":
    key = jax.random.PRNGKey(0)
    pkey, xkey = jax.random.split(key)

    in_channels, out_channels = 4, 128      # lane-dense output channels
    params = init_params(pkey, in_channels, out_channels)

    # NCHW input like the PyTorch module.
    x = jax.random.normal(xkey, (2, in_channels, 16, 16), jnp.float32)

    out = jax.jit(conv_block_forward)(x, params)
    jax.block_until_ready(out)

    assert out.shape == (2, out_channels, 8, 8), out.shape
    assert out.dtype == jnp.float32
    print("KERNEL_OK")
</pallas_src>

<mosaic_0001>
module attributes {stable_mosaic.version = 11 : i64} {
  func.func @conv_block_kernel(%arg0: i32, %arg1: memref<1x16x16x4xbf16, #tpu.memory_space<vmem>>, %arg2: memref<36x128xbf16, #tpu.memory_space<vmem>>, %arg3: memref<1x128xf32, #tpu.memory_space<vmem>>, %arg4: memref<1x128xf32, #tpu.memory_space<vmem>>, %arg5: memref<1152x128xbf16, #tpu.memory_space<vmem>>, %arg6: memref<1x128xf32, #tpu.memory_space<vmem>>, %arg7: memref<1x128xf32, #tpu.memory_space<vmem>>, %arg8: memref<1x8x8x128xf32, #tpu.memory_space<vmem>>, %arg9: memref<18x18x4xbf16, #tpu.memory_space<vmem>>, %arg10: memref<18x18x128xbf16, #tpu.memory_space<vmem>>) attributes {dimension_semantics = [#tpu.dimension_semantics<parallel>], iteration_bounds = array<i64: 2>, scalar_prefetch = 0 : i64, scratch_operands = 2 : i64, tpu.core_type = #tpu.core_type<tc>, window_params = [{transform_indices = @transform_0, window_bounds = array<i64: 1, 16, 16, 4>}, {pipeline_mode = #tpu.pipeline_mode<synchronous>, transform_indices = @transform_1, window_bounds = array<i64: 36, 128>}, {pipeline_mode = #tpu.pipeline_mode<synchronous>, transform_indices = @transform_2, window_bounds = array<i64: 1, 128>}, {pipeline_mode = #tpu.pipeline_mode<synchronous>, transform_indices = @transform_3, window_bounds = array<i64: 1, 128>}, {pipeline_mode = #tpu.pipeline_mode<synchronous>, transform_indices = @transform_4, window_bounds = array<i64: 1152, 128>}, {pipeline_mode = #tpu.pipeline_mode<synchronous>, transform_indices = @transform_5, window_bounds = array<i64: 1, 128>}, {pipeline_mode = #tpu.pipeline_mode<synchronous>, transform_indices = @transform_6, window_bounds = array<i64: 1, 128>}, {transform_indices = @transform_7, window_bounds = array<i64: 1, 8, 8, 128>}]} {
    %c0 = arith.constant 0 : index
    %c0_0 = arith.constant 0 : index
    %c0_1 = arith.constant 0 : index
    %c0_2 = arith.constant 0 : index
    %0 = vector.load %arg1[%c0, %c0_0, %c0_1, %c0_2] : memref<1x16x16x4xbf16, #tpu.memory_space<vmem>>, vector<1x16x16x4xbf16>
    %1 = vector.shape_cast %0 : vector<1x16x16x4xbf16> to vector<16x16x4xbf16>
    %cst = arith.constant 0.000000e+00 : bf16
    %2 = vector.broadcast %cst : bf16 to vector<18x18x4xbf16>
    %c0_3 = arith.constant 0 : index
    %c0_4 = arith.constant 0 : index
    %c0_5 = arith.constant 0 : index
    %3 = vector.load %arg9[%c0_3, %c0_4, %c0_5] : memref<18x18x4xbf16, #tpu.memory_space<vmem>>, vector<18x18x4xbf16>
    tpu.vector_store %arg9[%c0_3, %c0_4, %c0_5], %2 {strides = array<i32>} : memref<18x18x4xbf16, #tpu.memory_space<vmem>>, vector<18x18x4xbf16>,
    %c1 = arith.constant 1 : index
    %c1_6 = arith.constant 1 : index
    %c0_7 = arith.constant 0 : index
    %4 = vector.load %arg9[%c1, %c1_6, %c0_7] : memref<18x18x4xbf16, #tpu.memory_space<vmem>>, vector<16x16x4xbf16>
    tpu.vector_store %arg9[%c1, %c1_6, %c0_7], %1 {strides = array<i32>} : memref<18x18x4xbf16, #tpu.memory_space<vmem>>, vector<16x16x4xbf16>,
    %c0_8 = arith.constant 0 : index
    %c0_9 = arith.constant 0 : index
    %c0_10 = arith.constant 0 : index
    %5 = vector.load %arg9[%c0_8, %c0_9, %c0_10] : memref<18x18x4xbf16, #tpu.memory_space<vmem>>, vector<18x18x4xbf16>
    %6 = vector.extract_strided_slice %5 {offsets = [0, 0, 0], sizes = [16, 16, 4], strides = [1, 1, 1]} : vector<18x18x4xbf16> to vector<16x16x4xbf16>
    %7 = vector.shape_cast %6 : vector<16x16x4xbf16> to vector<256x4xbf16>
    %8 = vector.extract_strided_slice %5 {offsets = [0, 1, 0], sizes = [16, 16, 4], strides = [1, 1, 1]} : vector<18x18x4xbf16> to vector<16x16x4xbf16>
    %9 = vector.shape_cast %8 : vector<16x16x4xbf16> to vector<256x4xbf16>
    %10 = vector.extract_strided_slice %5 {offsets = [0, 2, 0], sizes = [16, 16, 4], strides = [1, 1, 1]} : vector<18x18x4xbf16> to vector<16x16x4xbf16>
    %11 = vector.shape_cast %10 : vector<16x16x4xbf16> to vector<256x4xbf16>
    %12 = vector.extract_strided_slice %5 {offsets = [1, 0, 0], sizes = [16, 16, 4], strides = [1, 1, 1]} : vector<18x18x4xbf16> to vector<16x16x4xbf16>
    %13 = vector.shape_cast %12 : vector<16x16x4xbf16> to vector<256x4xbf16>
    %14 = vector.extract_strided_slice %5 {offsets = [1, 1, 0], sizes = [16, 16, 4], strides = [1, 1, 1]} : vector<18x18x4xbf16> to vector<16x16x4xbf16>
    %15 = vector.shape_cast %14 : vector<16x16x4xbf16> to vector<256x4xbf16>
    %16 = vector.extract_strided_slice %5 {offsets = [1, 2, 0], sizes = [16, 16, 4], strides = [1, 1, 1]} : vector<18x18x4xbf16> to vector<16x16x4xbf16>
    %17 = vector.shape_cast %16 : vector<16x16x4xbf16> to vector<256x4xbf16>
    %18 = vector.extract_strided_slice %5 {offsets = [2, 0, 0], sizes = [16, 16, 4], strides = [1, 1, 1]} : vector<18x18x4xbf16> to vector<16x16x4xbf16>
    %19 = vector.shape_cast %18 : vector<16x16x4xbf16> to vector<256x4xbf16>
    %20 = vector.extract_strided_slice %5 {offsets = [2, 1, 0], sizes = [16, 16, 4], strides = [1, 1, 1]} : vector<18x18x4xbf16> to vector<16x16x4xbf16>
    %21 = vector.shape_cast %20 : vector<16x16x4xbf16> to vector<256x4xbf16>
    %22 = vector.extract_strided_slice %5 {offsets = [2, 2, 0], sizes = [16, 16, 4], strides = [1, 1, 1]} : vector<18x18x4xbf16> to vector<16x16x4xbf16>
    %23 = vector.shape_cast %22 : vector<16x16x4xbf16> to vector<256x4xbf16>
    %24 = tpu.concatenate %7, %9, %11, %13, %15, %17, %19, %21, %23 in 1 : vector<256x4xbf16>, vector<256x4xbf16>, vector<256x4xbf16>, vector<256x4xbf16>, vector<256x4xbf16>, vector<256x4xbf16>, vector<256x4xbf16>, vector<256x4xbf16>, vector<256x4xbf16> -> vector<256x36xbf16>
    %c0_11 = arith.constant 0 : index
    %c0_12 = arith.constant 0 : index
    %25 = vector.load %arg2[%c0_11, %c0_12] : memref<36x128xbf16, #tpu.memory_space<vmem>>, vector<36x128xbf16>
    %cst_13 = arith.constant dense<0.000000e+00> : vector<256x128xf32>
    %26 = tpu.matmul %24, %25, %cst_13 {dimension_numbers = #tpu.dot_dimension_numbers<[1], [0], [0], [1], [0, 0, 1, 1], [], []>} : vector<256x36xbf16>, vector<36x128xbf16>, vector<256x128xf32> -> vector<256x128xf32>
    %c0_14 = arith.constant 0 : index
    %c0_15 = arith.constant 0 : index
    %27 = vector.load %arg3[%c0_14, %c0_15] : memref<1x128xf32, #tpu.memory_space<vmem>>, vector<1x128xf32>
    %28 = vector.broadcast %27 : vector<1x128xf32> to vector<256x128xf32>
    %29 = arith.mulf %26, %28 : vector<256x128xf32>
    %c0_16 = arith.constant 0 : index
    %c0_17 = arith.constant 0 : index
    %30 = vector.load %arg4[%c0_16, %c0_17] : memref<1x128xf32, #tpu.memory_space<vmem>>, vector<1x128xf32>
    %31 = vector.broadcast %30 : vector<1x128xf32> to vector<256x128xf32>
    %32 = arith.addf %29, %31 : vector<256x128xf32>
    %cst_18 = arith.constant 0.000000e+00 : f32
    %33 = vector.broadcast %cst_18 : f32 to vector<256x128xf32>
    %34 = arith.maximumf %32, %33 : vector<256x128xf32>
    %35 = vector.shape_cast %34 : vector<256x128xf32> to vector<16x16x128xf32>
    %36 = arith.truncf %35 : vector<16x16x128xf32> to vector<16x16x128xbf16>
    %cst_19 = arith.constant 0.000000e+00 : bf16
    %37 = vector.broadcast %cst_19 : bf16 to vector<18x18x128xbf16>
    %c0_20 = arith.constant 0 : index
    %c0_21 = arith.constant 0 : index
    %c0_22 = arith.constant 0 : index
    %38 = vector.load %arg10[%c0_20, %c0_21, %c0_22] : memref<18x18x128xbf16, #tpu.memory_space<vmem>>, vector<18x18x128xbf16>
    tpu.vector_store %arg10[%c0_20, %c0_21, %c0_22], %37 {strides = array<i32>} : memref<18x18x128xbf16, #tpu.memory_space<vmem>>, vector<18x18x128xbf16>,
    %c1_23 = arith.constant 1 : index
    %c1_24 = arith.constant 1 : index
    %c0_25 = arith.constant 0 : index
    %39 = vector.load %arg10[%c1_23, %c1_24, %c0_25] : memref<18x18x128xbf16, #tpu.memory_space<vmem>>, vector<16x16x128xbf16>
    tpu.vector_store %arg10[%c1_23, %c1_24, %c0_25], %36 {strides = array<i32>} : memref<18x18x128xbf16, #tpu.memory_space<vmem>>, vector<16x16x128xbf16>,
    %c0_26 = arith.constant 0 : index
    %c0_27 = arith.constant 0 : index
    %c0_28 = arith.constant 0 : index
    %40 = vector.load %arg10[%c0_26, %c0_27, %c0_28] : memref<18x18x128xbf16, #tpu.memory_space<vmem>>, vector<18x18x128xbf16>
    %41 = vector.extract_strided_slice %40 {offsets = [0, 0, 0], sizes = [16, 16, 128], strides = [1, 1, 1]} : vector<18x18x128xbf16> to vector<16x16x128xbf16>
    %42 = vector.shape_cast %41 : vector<16x16x128xbf16> to vector<256x128xbf16>
    %43 = vector.extract_strided_slice %40 {offsets = [0, 1, 0], sizes = [16, 16, 128], strides = [1, 1, 1]} : vector<18x18x128xbf16> to vector<16x16x128xbf16>
    %44 = vector.shape_cast %43 : vector<16x16x128xbf16> to vector<256x128xbf16>
    %45 = vector.extract_strided_slice %40 {offsets = [0, 2, 0], sizes = [16, 16, 128], strides = [1, 1, 1]} : vector<18x18x128xbf16> to vector<16x16x128xbf16>
    %46 = vector.shape_cast %45 : vector<16x16x128xbf16> to vector<256x128xbf16>
    %47 = vector.extract_strided_slice %40 {offsets = [1, 0, 0], sizes = [16, 16, 128], strides = [1, 1, 1]} : vector<18x18x128xbf16> to vector<16x16x128xbf16>
    %48 = vector.shape_cast %47 : vector<16x16x128xbf16> to vector<256x128xbf16>
    %49 = vector.extract_strided_slice %40 {offsets = [1, 1, 0], sizes = [16, 16, 128], strides = [1, 1, 1]} : vector<18x18x128xbf16> to vector<16x16x128xbf16>
    %50 = vector.shape_cast %49 : vector<16x16x128xbf16> to vector<256x128xbf16>
    %51 = vector.extract_strided_slice %40 {offsets = [1, 2, 0], sizes = [16, 16, 128], strides = [1, 1, 1]} : vector<18x18x128xbf16> to vector<16x16x128xbf16>
    %52 = vector.shape_cast %51 : vector<16x16x128xbf16> to vector<256x128xbf16>
    %53 = vector.extract_strided_slice %40 {offsets = [2, 0, 0], sizes = [16, 16, 128], strides = [1, 1, 1]} : vector<18x18x128xbf16> to vector<16x16x128xbf16>
    %54 = vector.shape_cast %53 : vector<16x16x128xbf16> to vector<256x128xbf16>
    %55 = vector.extract_strided_slice %40 {offsets = [2, 1, 0], sizes = [16, 16, 128], strides = [1, 1, 1]} : vector<18x18x128xbf16> to vector<16x16x128xbf16>
    %56 = vector.shape_cast %55 : vector<16x16x128xbf16> to vector<256x128xbf16>
    %57 = vector.extract_strided_slice %40 {offsets = [2, 2, 0], sizes = [16, 16, 128], strides = [1, 1, 1]} : vector<18x18x128xbf16> to vector<16x16x128xbf16>
    %58 = vector.shape_cast %57 : vector<16x16x128xbf16> to vector<256x128xbf16>
    %59 = tpu.concatenate %42, %44, %46, %48, %50, %52, %54, %56, %58 in 1 : vector<256x128xbf16>, vector<256x128xbf16>, vector<256x128xbf16>, vector<256x128xbf16>, vector<256x128xbf16>, vector<256x128xbf16>, vector<256x128xbf16>, vector<256x128xbf16>, vector<256x128xbf16> -> vector<256x1152xbf16>
    %c0_29 = arith.constant 0 : index
    %c0_30 = arith.constant 0 : index
    %60 = vector.load %arg5[%c0_29, %c0_30] : memref<1152x128xbf16, #tpu.memory_space<vmem>>, vector<1152x128xbf16>
    %cst_31 = arith.constant dense<0.000000e+00> : vector<256x128xf32>
    %61 = tpu.matmul %59, %60, %cst_31 {dimension_numbers = #tpu.dot_dimension_numbers<[1], [0], [0], [1], [0, 0, 1, 1], [], []>} : vector<256x1152xbf16>, vector<1152x128xbf16>, vector<256x128xf32> -> vector<256x128xf32>
    %c0_32 = arith.constant 0 : index
    %c0_33 = arith.constant 0 : index
    %62 = vector.load %arg6[%c0_32, %c0_33] : memref<1x128xf32, #tpu.memory_space<vmem>>, vector<1x128xf32>
    %63 = vector.broadcast %62 : vector<1x128xf32> to vector<256x128xf32>
    %64 = arith.mulf %61, %63 : vector<256x128xf32>
    %c0_34 = arith.constant 0 : index
    %c0_35 = arith.constant 0 : index
    %65 = vector.load %arg7[%c0_34, %c0_35] : memref<1x128xf32, #tpu.memory_space<vmem>>, vector<1x128xf32>
    %66 = vector.broadcast %65 : vector<1x128xf32> to vector<256x128xf32>
    %67 = arith.addf %64, %66 : vector<256x128xf32>
    %cst_36 = arith.constant 0.000000e+00 : f32
    %68 = vector.broadcast %cst_36 : f32 to vector<256x128xf32>
    %69 = arith.maximumf %67, %68 : vector<256x128xf32>
    %70 = vector.shape_cast %69 : vector<256x128xf32> to vector<8x2x16x128xf32>
    %71 = vector.extract_strided_slice %70 {offsets = [0, 0, 0, 0], sizes = [8, 1, 16, 128], strides = [1, 1, 1, 1]} : vector<8x2x16x128xf32> to vector<8x1x16x128xf32>
    %72 = vector.shape_cast %71 : vector<8x1x16x128xf32> to vector<8x16x128xf32>
    %73 = vector.extract_strided_slice %70 {offsets = [0, 1, 0, 0], sizes = [8, 1, 16, 128], strides = [1, 1, 1, 1]} : vector<8x2x16x128xf32> to vector<8x1x16x128xf32>
    %74 = vector.shape_cast %73 : vector<8x1x16x128xf32> to vector<8x16x128xf32>
    %75 = arith.addf %72, %74 : vector<8x16x128xf32>
    %76 = vector.shape_cast %75 : vector<8x16x128xf32> to vector<8x8x2x128xf32>
    %cst_37 = arith.constant dense<0.000000e+00> : vector<8x8x128xf32>
    %77 = vector.multi_reduction <add>, %76, %cst_37 [2] : vector<8x8x2x128xf32> to vector<8x8x128xf32>
    %cst_38 = arith.constant 2.500000e-01 : f32
    %78 = vector.broadcast %cst_38 : f32 to vector<8x8x128xf32>
    %79 = arith.mulf %78, %77 : vector<8x8x128xf32>
    %c0_39 = arith.constant 0 : index
    %c0_40 = arith.constant 0 : index
    %c0_41 = arith.constant 0 : index
    %c0_42 = arith.constant 0 : index
    %80 = vector.load %arg8[%c0_39, %c0_40, %c0_41, %c0_42] : memref<1x8x8x128xf32, #tpu.memory_space<vmem>>, vector<1x8x8x128xf32>
    %81 = vector.shape_cast %80 : vector<1x8x8x128xf32> to vector<8x8x128xf32>
    %82 = vector.shape_cast %79 : vector<8x8x128xf32> to vector<1x8x8x128xf32>
    tpu.vector_store %arg8[%c0_39, %c0_40, %c0_41, %c0_42], %82 {strides = array<i32>} : memref<1x8x8x128xf32, #tpu.memory_space<vmem>>, vector<1x8x8x128xf32>,
    return
  }
  func.func @transform_0(%arg0: i32) -> (i32, i32, i32, i32) {
    %c0_i32 = arith.constant 0 : i32
    %c0_i32_0 = arith.constant 0 : i32
    %c0_i32_1 = arith.constant 0 : i32
    %c0_i32_2 = arith.constant 0 : i32
    return %arg0, %c0_i32, %c0_i32_0, %c0_i32_1 : i32, i32, i32, i32
  }
  func.func @transform_1(%arg0: i32) -> (i32, i32) {
    %c0_i32 = arith.constant 0 : i32
    %c0_i32_0 = arith.constant 0 : i32
    %c0_i32_1 = arith.constant 0 : i32
    return %c0_i32, %c0_i32_0 : i32, i32
  }
  func.func @transform_2(%arg0: i32) -> (i32, i32) {
    %c0_i32 = arith.constant 0 : i32
    %c0_i32_0 = arith.constant 0 : i32
    %c0_i32_1 = arith.constant 0 : i32
    return %c0_i32, %c0_i32_0 : i32, i32
  }
  func.func @transform_3(%arg0: i32) -> (i32, i32) {
    %c0_i32 = arith.constant 0 : i32
    %c0_i32_0 = arith.constant 0 : i32
    %c0_i32_1 = arith.constant 0 : i32
    return %c0_i32, %c0_i32_0 : i32, i32
  }
  func.func @transform_4(%arg0: i32) -> (i32, i32) {
    %c0_i32 = arith.constant 0 : i32
    %c0_i32_0 = arith.constant 0 : i32
    %c0_i32_1 = arith.constant 0 : i32
    return %c0_i32, %c0_i32_0 : i32, i32
  }
  func.func @transform_5(%arg0: i32) -> (i32, i32) {
    %c0_i32 = arith.constant 0 : i32
    %c0_i32_0 = arith.constant 0 : i32
    %c0_i32_1 = arith.constant 0 : i32
    return %c0_i32, %c0_i32_0 : i32, i32
  }
  func.func @transform_6(%arg0: i32) -> (i32, i32) {
    %c0_i32 = arith.constant 0 : i32
    %c0_i32_0 = arith.constant 0 : i32
    %c0_i32_1 = arith.constant 0 : i32
    return %c0_i32, %c0_i32_0 : i32, i32
  }
  func.func @transform_7(%arg0: i32) -> (i32, i32, i32, i32) {
    %c0_i32 = arith.constant 0 : i32
    %c0_i32_0 = arith.constant 0 : i32
    %c0_i32_1 = arith.constant 0 : i32
    %c0_i32_2 = arith.constant 0 : i32
    return %arg0, %c0_i32, %c0_i32_0, %c0_i32_1 : i32, i32, i32, i32
  }
}

</mosaic_0001>

<llo_original>
// kernel: conv_block_forward.1
$region0: #{conv_block_forward.1}
  #allocation0 [shape = 'u32[]', space=smem, size = 0x4, offset = 0x4, fixed_abs, tag = 'smem constant byte address 0x4 - core index']
  #allocation1 [shape = 'u32[144,128]{1,0:T(1,128)}', space=vmem, size = 0x12000, scoped, tag = 'internal scratch']
  #allocation2 [shape = 'bf16[18,18,4]{2,1,0:T(8,128)(2,1)}', space=vmem, size = 0x1b000, scoped, tag = 'scratch operand']
  #allocation3 [shape = 'bf16[18,18,128]{2,1,0:T(8,128)(2,1)}', space=vmem, size = 0x1b000, scoped, tag = 'scratch operand']
  %s0 = inlined_call_operand.vmem [shape: bf16[2,16,16,4], index: 0, kind: input, shape index: {}]
  %s1 = inlined_call_operand.vmem [shape: bf16[36,128], index: 1, kind: input, shape index: {}]
  %s2 = inlined_call_operand.vmem [shape: f32[1,128], index: 2, kind: input, shape index: {}]
  %s3 = inlined_call_operand.vmem [shape: f32[1,128], index: 3, kind: input, shape index: {}]
  %s4 = inlined_call_operand.hbm [shape: bf16[1152,128], index: 4, kind: input, shape index: {}]
  %s5 = inlined_call_operand.vmem [shape: f32[1,128], index: 5, kind: input, shape index: {}]
  %s6 = inlined_call_operand.vmem [shape: f32[1,128], index: 6, kind: input, shape index: {}]
  %s7 = inlined_call_operand.hbm [shape: f32[2,8,8,128], index: 7, kind: output, shape index: {}]
  %s8 = sld [smem:[#allocation0]]
  $region65: #{conv_block_forward.1} parent=0
    _
  %s10 = ssub.s32 1, %s8
  %s11 = scalar_select 0, %s10, %s8
  $region1: #{conv_block_forward.1} parent=0
    #allocation4 [shape = 'u8[294912]{0}', space=vmem, size = 0x48000, scoped, tag = 'input window, operand 4, single buffered']
    #allocation5 [shape = 's32[2]{0}', space=sflag, size = 0x8, scoped, tag = 'scoped memory for conv_block_forward.1']
    #allocation6 [shape = 's32[2]{0}', space=sflag, size = 0x8, scoped, tag = 'scoped memory for conv_block_forward.1']
    #allocation7 [shape = 'u8[65536]{0}', space=vmem, size = 0x10000, scoped, tag = 'output window, operand 0']
    %12 = vsyncpa [#allocation5], 0
    %13 = vsyncpa [#allocation6], 0
    %s14 = scalar_lea.sflag [#allocation6], 1
    %15 = vsyncpa %s14, 0
    loop: start=0, step=1, limit=4
    $region2: #{conv_block_forward.1} parent=1 // loop_pre_header
      _
    $region3: #{conv_block_forward.1} parent=1 // loop_header
      %s17 = sphi 0, %s21
      %p18 = scmp.ge.s32.totalorder %s17, 4
      %s27 = sphi 0, %s29
      %s30 = sphi 0, %s27
      %s31 = sphi 0, %s30
      %s47 = sphi 0, %s31
      %s51 = sphi 0, %s51
      %s53 = sphi 0, %s51
      %s54 = sphi 0, %s53
      %s68 = sphi 0, %s54
      %s72 = sphi 0, %s72
      %s74 = sphi 0, %s72
      %s75 = sphi 0, %s74
      %s89 = sphi 0, %s75
      %s93 = sphi 0, %s93
      %s95 = sphi 0, %s93
      %s96 = sphi 0, %s95
      %s110 = sphi 0, %s96
      %s114 = sphi 0, %s114
      %s116 = sphi 0, %s114
      %s117 = sphi 0, %s116
      %s131 = sphi 0, %s117
      %s135 = sphi 0, %s135
      %s137 = sphi 0, %s135
      %s138 = sphi 0, %s137
      %s152 = sphi 0, %s138
      %s156 = sphi 0, %s156
      %s158 = sphi 0, %s156
      %s159 = sphi 0, %s158
      %s173 = sphi 0, %s159
      %s179 = sphi 0, %s181
      %s182 = sphi 0, %s179
      %s183 = sphi 0, %s182
      %s199 = sphi 0, %s183
    $region4: #{conv_block_forward.1} parent=1 // loop_header_branch
      %20 = sbr.rel (%p18) target = $region8
    $region5: #{conv_block_forward.1} parent=1 // loop_body
      %s22 = ssub.s32 %s17, 1
      %s23 = ssub.s32 %s17, 2
      %s24 = sadd.s32 %s17, 1
      %s25 = ssub.s32 %s17, %s24
      %p26 = scmp.eq.s32.totalorder %s25, 0
      %s28 = sadd.s32 %s27, 1
      %s29 = scalar_select %p26, %s27, %s28
      %p32 = pneg %p26
      %p33 = scmp.eq.s32.totalorder %s17, 1
      %p34 = por %p32, %p33
      %p35 = scmp.ne.s32.totalorder %s27, %s30
      %p36 = scmp.eq.s32.totalorder %s17, 0
      %p37 = por %p35, %p36
      %p38 = scmp.ne.s32.totalorder %s27, %s30
      %p39 = scmp.eq.s32.totalorder %s22, 1
      %p40 = por %p38, %p39
      %p41 = scmp.ne.s32.totalorder %s30, %s31
      %p42 = scmp.eq.s32.totalorder %s22, 0
      %p43 = por %p41, %p42
      %p44 = scmp.ne.s32.totalorder %s30, %s31
      %p45 = scmp.eq.s32.totalorder %s23, 1
      %p46 = por %p44, %p45
      %p48 = scmp.ne.s32.totalorder %s31, %s47
      %p49 = scmp.eq.s32.totalorder %s23, 0
      %p50 = por %p48, %p49
      %s52 = sadd.s32 %s51, 1
      %p55 = scmp.eq.s32.totalorder %s17, 1
      %p56 = scmp.ne.s32.totalorder %s51, %s53
      %p57 = scmp.eq.s32.totalorder %s17, 0
      %p58 = por %p56, %p57
      %p59 = scmp.ne.s32.totalorder %s51, %s53
      %p60 = scmp.eq.s32.totalorder %s22, 1
      %p61 = por %p59, %p60
      %p62 = scmp.ne.s32.totalorder %s53, %s54
      %p63 = scmp.eq.s32.totalorder %s22, 0
      %p64 = por %p62, %p63
      %p65 = scmp.ne.s32.totalorder %s53, %s54
      %p66 = scmp.eq.s32.totalorder %s23, 1
      %p67 = por %p65, %p66
      %p69 = scmp.ne.s32.totalorder %s54, %s68
      %p70 = scmp.eq.s32.totalorder %s23, 0
      %p71 = por %p69, %p70
      %s73 = sadd.s32 %s72, 1
      %p76 = scmp.eq.s32.totalorder %s17, 1
      %p77 = scmp.ne.s32.totalorder %s72, %s74
      %p78 = scmp.eq.s32.totalorder %s17, 0
      %p79 = por %p77, %p78
      %p80 = scmp.ne.s32.totalorder %s72, %s74
      %p81 = scmp.eq.s32.totalorder %s22, 1
      %p82 = por %p80, %p81
      %p83 = scmp.ne.s32.totalorder %s74, %s75
      %p84 = scmp.eq.s32.totalorder %s22, 0
      %p85 = por %p83, %p84
      %p86 = scmp.ne.s32.totalorder %s74, %s75
      %p87 = scmp.eq.s32.totalorder %s23, 1
      %p88 = por %p86, %p87
      %p90 = scmp.ne.s32.totalorder %s75, %s89
      %p91 = scmp.eq.s32.totalorder %s23, 0
      %p92 = por %p90, %p91
      %s94 = sadd.s32 %s93, 1
      %p97 = scmp.eq.s32.totalorder %s17, 1
      %p98 = scmp.ne.s32.totalorder %s93, %s95
      %p99 = scmp.eq.s32.totalorder %s17, 0
      %p100 = por %p98, %p99
      %p101 = scmp.ne.s32.totalorder %s93, %s95
      %p102 = scmp.eq.s32.totalorder %s22, 1
      %p103 = por %p101, %p102
      %p104 = scmp.ne.s32.totalorder %s95, %s96
      %p105 = scmp.eq.s32.totalorder %s22, 0
      %p106 = por %p104, %p105
      %p107 = scmp.ne.s32.totalorder %s95, %s96
      %p108 = scmp.eq.s32.totalorder %s23, 1
      %p109 = por %p107, %p108
      %p111 = scmp.ne.s32.totalorder %s96, %s110
      %p112 = scmp.eq.s32.totalorder %s23, 0
      %p113 = por %p111, %p112
      %s115 = sadd.s32 %s114, 1
      %p118 = scmp.eq.s32.totalorder %s17, 1
      %p119 = scmp.ne.s32.totalorder %s114, %s116
      %p120 = scmp.eq.s32.totalorder %s17, 0
      %p121 = por %p119, %p120
      %p122 = scmp.ne.s32.totalorder %s114, %s116
      %p123 = scmp.eq.s32.totalorder %s22, 1
      %p124 = por %p122, %p123
      %p125 = scmp.ne.s32.totalorder %s116, %s117
      %p126 = scmp.eq.s32.totalorder %s22, 0
      %p127 = por %p125, %p126
      %p128 = scmp.ne.s32.totalorder %s116, %s117
      %p129 = scmp.eq.s32.totalorder %s23, 1
      %p130 = por %p128, %p129
      %p132 = scmp.ne.s32.totalorder %s117, %s131
      %p133 = scmp.eq.s32.totalorder %s23, 0
      %p134 = por %p132, %p133
      %s136 = sadd.s32 %s135, 1
      %p139 = scmp.eq.s32.totalorder %s17, 1
      %p140 = scmp.ne.s32.totalorder %s135, %s137
      %p141 = scmp.eq.s32.totalorder %s17, 0
      %p142 = por %p140, %p141
      %p143 = scmp.ne.s32.totalorder %s135, %s137
      %p144 = scmp.eq.s32.totalorder %s22, 1
      %p145 = por %p143, %p144
      %p146 = scmp.ne.s32.totalorder %s137, %s138
      %p147 = scmp.eq.s32.totalorder %s22, 0
      %p148 = por %p146, %p147
      %p149 = scmp.ne.s32.totalorder %s137, %s138
      %p150 = scmp.eq.s32.totalorder %s23, 1
      %p151 = por %p149, %p150
      %p153 = scmp.ne.s32.totalorder %s138, %s152
      %p154 = scmp.eq.s32.totalorder %s23, 0
      %p155 = por %p153, %p154
      %s157 = sadd.s32 %s156, 1
      %p160 = scmp.eq.s32.totalorder %s17, 1
      %p161 = scmp.ne.s32.totalorder %s156, %s158
      %p162 = scmp.eq.s32.totalorder %s17, 0
      %p163 = por %p161, %p162
      %p164 = scmp.ne.s32.totalorder %s156, %s158
      %p165 = scmp.eq.s32.totalorder %s22, 1
      %p166 = por %p164, %p165
      %p167 = scmp.ne.s32.totalorder %s158, %s159
      %p168 = scmp.eq.s32.totalorder %s22, 0
      %p169 = por %p167, %p168
      %p170 = scmp.ne.s32.totalorder %s158, %s159
      %p171 = scmp.eq.s32.totalorder %s23, 1
      %p172 = por %p170, %p171
      %p174 = scmp.ne.s32.totalorder %s159, %s173
      %p175 = scmp.eq.s32.totalorder %s23, 0
      %p176 = por %p174, %p175
      %s177 = ssub.s32 %s17, %s24
      %p178 = scmp.eq.s32.totalorder %s177, 0
      %s180 = sadd.s32 %s179, 1
      %s181 = scalar_select %p178, %s179, %s180
      %p184 = pneg %p178
      %p185 = scmp.eq.s32.totalorder %s17, 1
      %p186 = por %p184, %p185
      %p187 = scmp.ne.s32.totalorder %s179, %s182
      %p188 = scmp.eq.s32.totalorder %s17, 0
      %p189 = por %p187, %p188
      %p190 = scmp.ne.s32.totalorder %s179, %s182
      %p191 = scmp.eq.s32.totalorder %s22, 1
      %p192 = por %p190, %p191
      %p193 = scmp.ne.s32.totalorder %s182, %s183
      %p194 = scmp.eq.s32.totalorder %s22, 0
      %p195 = por %p193, %p194
      %p196 = scmp.ne.s32.totalorder %s182, %s183
      %p197 = scmp.eq.s32.totalorder %s23, 1
      %p198 = por %p196, %p197
      %p200 = scmp.ne.s32.totalorder %s183, %s199
      %p201 = scmp.eq.s32.totalorder %s23, 0
      %p202 = por %p200, %p201
      %p203 = scmp.le.s32.totalorder 1, %s17
      %p204 = scmp.lt.s32.totalorder %s17, 3
      %p205 = pnand %p203, %p204
      %p206 = pneg %p205
      // Predicated region
      $region9: #{conv_block_forward.1} parent=5 // pred_check
        _
      $region10: #{conv_block_forward.1} parent=5 // pred_check_branch
        %208 = sbr.rel (%p205) target = $region12
      $region11: #{conv_block_forward.1} parent=5 // pred_region
        %s209 = ssub.s32 %s17, 1
        // Predicated region
        $region13: #{conv_block_forward.1} parent=11 // pred_check
          %p210 = pneg %p64
        $region14: #{conv_block_forward.1} parent=11 // pred_check_branch
          %212 = sbr.rel (%p210) target = $region16
        $region15: #{conv_block_forward.1} parent=11 // pred_region
          _
        $region16: #{conv_block_forward.1} parent=11 // pred_fallthru
          _
        // Predicated region
        $region17: #{conv_block_forward.1} parent=11 // pred_check
          %p213 = pneg %p85
        $region18: #{conv_block_forward.1} parent=11 // pred_check_branch
          %215 = sbr.rel (%p213) target = $region20
        $region19: #{conv_block_forward.1} parent=11 // pred_region
          _
        $region20: #{conv_block_forward.1} parent=11 // pred_fallthru
          _
        // Predicated region
        $region21: #{conv_block_forward.1} parent=11 // pred_check
          %p216 = pneg %p106
        $region22: #{conv_block_forward.1} parent=11 // pred_check_branch
          %218 = sbr.rel (%p216) target = $region24
        $region23: #{conv_block_forward.1} parent=11 // pred_region
          _
        $region24: #{conv_block_forward.1} parent=11 // pred_fallthru
          _
        // Predicated region
        $region25: #{conv_block_forward.1} parent=11 // pred_check
          %p219 = pneg %p127
        $region26: #{conv_block_forward.1} parent=11 // pred_check_branch
          %221 = sbr.rel (%p219) target = $region28
        $region27: #{conv_block_forward.1} parent=11 // pred_region
          %s223 = ssub.s32 9216, 9216
          %224 = vsyncadd [#allocation5], %s223
          %s225 = sshll.u32 [#allocation4], 4
          %s226 = int_to_ptr.vmem [resolvable:$true] %s225
          %231 = dma.hbm_to_vmem [thread:$0]  %s4, 9216, %s226, [#allocation5], 64, 64, 4
        $region28: #{conv_block_forward.1} parent=11 // pred_fallthru
          _
        // Predicated region
        $region29: #{conv_block_forward.1} parent=11 // pred_check
          %p232 = pneg %p148
        $region30: #{conv_block_forward.1} parent=11 // pred_check_branch
          %234 = sbr.rel (%p232) target = $region32
        $region31: #{conv_block_forward.1} parent=11 // pred_region
          _
        $region32: #{conv_block_forward.1} parent=11 // pred_fallthru
          _
        // Predicated region
        $region33: #{conv_block_forward.1} parent=11 // pred_check
          %p235 = pneg %p169
        $region34: #{conv_block_forward.1} parent=11 // pred_check_branch
          %237 = sbr.rel (%p235) target = $region36
        $region35: #{conv_block_forward.1} parent=11 // pred_region
          _
        $region36: #{conv_block_forward.1} parent=11 // pred_fallthru
          _
      $region12: #{conv_block_forward.1} parent=5 // pred_fallthru
        _
      %p238 = scmp.lt.s32.totalorder %s17, 2
      // Predicated region
      $region37: #{conv_block_forward.1} parent=5 // pred_check
        %p239 = pneg %p238
      $region38: #{conv_block_forward.1} parent=5 // pred_check_branch
        %241 = sbr.rel (%p239) target = $region40
      $region39: #{conv_block_forward.1} parent=5 // pred_region
        // Predicated region
        $region41: #{conv_block_forward.1} parent=39 // pred_check
          %p242 = pneg %p37
        $region42: #{conv_block_forward.1} parent=39 // pred_check_branch
          %244 = sbr.rel (%p242) target = $region44
        $region43: #{conv_block_forward.1} parent=39 // pred_region
          %p245 = scmp.lt.s32.totalorder %s17, 1
          %s246 = scalar_select %p245, %s17, 1
          %s247 = smul.addr %s246, 32
          %s248 = smul.addr %s247, 4
          %s249 = scalar_lea.vmem %s0, %s248
        $region44: #{conv_block_forward.1} parent=39 // pred_fallthru
          _
      $region40: #{conv_block_forward.1} parent=5 // pred_fallthru
        _
      %p250 = scmp.le.s32.totalorder 1, %s17
      %p251 = scmp.lt.s32.totalorder %s17, 3
      %p252 = pnand %p250, %p251
      %p253 = pneg %p252
      // Predicated region
      $region45: #{conv_block_forward.1} parent=5 // pred_check
        _
      $region46: #{conv_block_forward.1} parent=5 // pred_check_branch
        %255 = sbr.rel (%p252) target = $region48
      $region47: #{conv_block_forward.1} parent=5 // pred_region
        %s256 = ssub.s32 %s17, 1
        // Predicated region
        $region49: #{conv_block_forward.1} parent=47 // pred_check
          %p257 = pneg %p127
        $region50: #{conv_block_forward.1} parent=47 // pred_check_branch
          %259 = sbr.rel (%p257) target = $region52
        $region51: #{conv_block_forward.1} parent=47 // pred_region
          %260 = dma.done [#allocation5], 9216
        $region52: #{conv_block_forward.1} parent=47 // pred_fallthru
          _
        %p261 = scmp.lt.s32.totalorder %s22, 1
        %s262 = scalar_select %p261, %s22, 1
        %s263 = smul.addr %s262, 32
        %s264 = smul.addr %s263, 4
        %s265 = scalar_lea.vmem %s0, %s264
        %p266 = pneg %p43
        %p267 = pneg %p40
        %p268 = pneg %p64
        %p269 = pneg %p61
        %p270 = pneg %p85
        %p271 = pneg %p82
        %p272 = pneg %p106
        %p273 = pneg %p103
        %p274 = pneg %p127
        %p275 = pneg %p124
        %p276 = pneg %p148
        %p277 = pneg %p145
        %p278 = pneg %p169
        %p279 = pneg %p166
        %p280 = pneg %p195
        %p281 = pneg %p192
        %s282 = sand.u32 %s182, 1
        %s283 = scalar_lea.sflag [#allocation6], %s282
        %s284 = sand.u32 %s182, 1
        %s285 = smul.addr %s284, 64
        %s286 = scalar_lea.vmem [#allocation7], %s285
        %p287 = scmp.lt.s32.totalorder %s22, 1
        %s288 = scalar_select %p287, %s22, 1
        %s289 = smul.addr %s288, 32
        %s290 = smul.addr %s289, 4
        %s291 = scalar_lea.vmem %s0, %s290
        %v293 = vld [vmem:[%s291] sm:$0xf]
        %v294 = vld [vmem:[%s291 + $0x4] sm:$0xf]
        %v295 = vld [vmem:[%s291 + $0x8] sm:$0xf]
        %v296 = vld [vmem:[%s291 + $0xc] sm:$0xf]
        %v297 = vld [vmem:[%s291 + $0x10] sm:$0xf]
        %v298 = vld [vmem:[%s291 + $0x14] sm:$0xf]
        %v299 = vld [vmem:[%s291 + $0x18] sm:$0xf]
        %v300 = vld [vmem:[%s291 + $0x1c] sm:$0xf]
        %v301 = vld [vmem:[%s291 + $0x20] sm:$0xf]
        %v302 = vld [vmem:[%s291 + $0x24] sm:$0xf]
        %v303 = vld [vmem:[%s291 + $0x28] sm:$0xf]
        %v304 = vld [vmem:[%s291 + $0x2c] sm:$0xf]
        %v305 = vld [vmem:[%s291 + $0x30] sm:$0xf]
        %v306 = vld [vmem:[%s291 + $0x34] sm:$0xf]
        %v307 = vld [vmem:[%s291 + $0x38] sm:$0xf]
        %v308 = vld [vmem:[%s291 + $0x3c] sm:$0xf]
        %v309 = vld [vmem:[%s291 + $0x40] sm:$0xf]
        %v310 = vld [vmem:[%s291 + $0x44] sm:$0xf]
        %v311 = vld [vmem:[%s291 + $0x48] sm:$0xf]
        %v312 = vld [vmem:[%s291 + $0x4c] sm:$0xf]
        %v313 = vld [vmem:[%s291 + $0x50] sm:$0xf]
        %v314 = vld [vmem:[%s291 + $0x54] sm:$0xf]
        %v315 = vld [vmem:[%s291 + $0x58] sm:$0xf]
        %v316 = vld [vmem:[%s291 + $0x5c] sm:$0xf]
        %v317 = vld [vmem:[%s291 + $0x60] sm:$0xf]
        %v318 = vld [vmem:[%s291 + $0x64] sm:$0xf]
        %v319 = vld [vmem:[%s291 + $0x68] sm:$0xf]
        %v320 = vld [vmem:[%s291 + $0x6c] sm:$0xf]
        %v321 = vld [vmem:[%s291 + $0x70] sm:$0xf]
        %v322 = vld [vmem:[%s291 + $0x74] sm:$0xf]
        %v323 = vld [vmem:[%s291 + $0x78] sm:$0xf]
        %v324 = vld [vmem:[%s291 + $0x7c] sm:$0xf]
        %vm325 = vcmask 27648
        %326 = vst.msk [vmem:[#allocation2] sm:$0xf] %vm325, 0
        %327 = vst.msk [vmem:[#allocation2 + $0x4] sm:$0xf] %vm325, 0
        %vm328 = vcmask 24576
        %329 = vst.msk [vmem:[#allocation2 + $0x8] sm:$0x1] %vm328, 0
        %330 = vst.msk [vmem:[#allocation2 + $0xc] sm:$0xf] %vm325, 0
        %331 = vst.msk [vmem:[#allocation2 + $0x10] sm:$0xf] %vm325, 0
        %332 = vst.msk [vmem:[#allocation2 + $0x14] sm:$0x1] %vm328, 0
        %333 = vst.msk [vmem:[#allocation2 + $0x18] sm:$0xf] %vm325, 0
        %334 = vst.msk [vmem:[#allocation2 + $0x1c] sm:$0xf] %vm325, 0
        %335 = vst.msk [vmem:[#allocation2 + $0x20] sm:$0x1] %vm328, 0
        %336 = vst.msk [vmem:[#allocation2 + $0x24] sm:$0xf] %vm325, 0
        %337 = vst.msk [vmem:[#allocation2 + $0x28] sm:$0xf] %vm325, 0
        %338 = vst.msk [vmem:[#allocation2 + $0x2c] sm:$0x1] %vm328, 0
        %339 = vst.msk [vmem:[#allocation2 + $0x30] sm:$0xf] %vm325, 0
        %340 = vst.msk [vmem:[#allocation2 + $0x34] sm:$0xf] %vm325, 0
        %341 = vst.msk [vmem:[#allocation2 + $0x38] sm:$0x1] %vm328, 0
        %342 = vst.msk [vmem:[#allocation2 + $0x3c] sm:$0xf] %vm325, 0
        %343 = vst.msk [vmem:[#allocation2 + $0x40] sm:$0xf] %vm325, 0
        %344 = vst.msk [vmem:[#allocation2 + $0x44] sm:$0x1] %vm328, 0
        %345 = vst.msk [vmem:[#allocation2 + $0x48] sm:$0xf] %vm325, 0
        %346 = vst.msk [vmem:[#allocation2 + $0x4c] sm:$0xf] %vm325, 0
        %347 = vst.msk [vmem:[#allocation2 + $0x50] sm:$0x1] %vm328, 0
        %348 = vst.msk [vmem:[#allocation2 + $0x54] sm:$0xf] %vm325, 0
        %349 = vst.msk [vmem:[#allocation2 + $0x58] sm:$0xf] %vm325, 0
        %350 = vst.msk [vmem:[#allocation2 + $0x5c] sm:$0x1] %vm328, 0
        %351 = vst.msk [vmem:[#allocation2 + $0x60] sm:$0xf] %vm325, 0
        %352 = vst.msk [vmem:[#allocation2 + $0x64] sm:$0xf] %vm325, 0
        %353 = vst.msk [vmem:[#allocation2 + $0x68] sm:$0x1] %vm328, 0
        %354 = vst.msk [vmem:[#allocation2 + $0x6c] sm:$0xf] %vm325, 0
        %355 = vst.msk [vmem:[#allocation2 + $0x70] sm:$0xf] %vm325, 0
        %356 = vst.msk [vmem:[#allocation2 + $0x74] sm:$0x1] %vm328, 0
        %357 = vst.msk [vmem:[#allocation2 + $0x78] sm:$0xf] %vm325, 0
        %358 = vst.msk [vmem:[#allocation2 + $0x7c] sm:$0xf] %vm325, 0
        %359 = vst.msk [vmem:[#allocation2 + $0x80] sm:$0x1] %vm328, 0
        %360 = vst.msk [vmem:[#allocation2 + $0x84] sm:$0xf] %vm325, 0
        %361 = vst.msk [vmem:[#allocation2 + $0x88] sm:$0xf] %vm325, 0
        %362 = vst.msk [vmem:[#allocation2 + $0x8c] sm:$0x1] %vm328, 0
        %363 = vst.msk [vmem:[#allocation2 + $0x90] sm:$0xf] %vm325, 0
        %364 = vst.msk [vmem:[#allocation2 + $0x94] sm:$0xf] %vm325, 0
        %365 = vst.msk [vmem:[#allocation2 + $0x98] sm:$0x1] %vm328, 0
        %366 = vst.msk [vmem:[#allocation2 + $0x9c] sm:$0xf] %vm325, 0
        %367 = vst.msk [vmem:[#allocation2 + $0xa0] sm:$0xf] %vm325, 0
        %368 = vst.msk [vmem:[#allocation2 + $0xa4] sm:$0x1] %vm328, 0
        %369 = vst.msk [vmem:[#allocation2 + $0xa8] sm:$0xf] %vm325, 0
        %370 = vst.msk [vmem:[#allocation2 + $0xac] sm:$0xf] %vm325, 0
        %371 = vst.msk [vmem:[#allocation2 + $0xb0] sm:$0x1] %vm328, 0
        %372 = vst.msk [vmem:[#allocation2 + $0xb4] sm:$0xf] %vm325, 0
        %373 = vst.msk [vmem:[#allocation2 + $0xb8] sm:$0xf] %vm325, 0
        %374 = vst.msk [vmem:[#allocation2 + $0xbc] sm:$0x1] %vm328, 0
        %375 = vst.msk [vmem:[#allocation2 + $0xc0] sm:$0xf] %vm325, 0
        %376 = vst.msk [vmem:[#allocation2 + $0xc4] sm:$0xf] %vm325, 0
        %377 = vst.msk [vmem:[#allocation2 + $0xc8] sm:$0x1] %vm328, 0
        %378 = vst.msk [vmem:[#allocation2 + $0xcc] sm:$0xf] %vm325, 0
        %379 = vst.msk [vmem:[#allocation2 + $0xd0] sm:$0xf] %vm325, 0
        %380 = vst.msk [vmem:[#allocation2 + $0xd4] sm:$0x1] %vm328, 0
        %vm381 = vsmask.f32 256
        %vm382 = vsmask.f32 4368
        %vm383 = vmor %vm381, %vm382
        %v385 = vshrl.u32 %v293, 16
        %v387 = vrot.slane %v385, 7
        %v388 = vshll.u32 %v293, 16
        %v390 = vor.u32 %v387, %v388
        %v391 = vrot.slane %v387, 4
        %v393 = vshrl.u32 %v294, 16
        %v395 = vrot.slane %v393, 7
        %v396 = vshll.u32 %v294, 16
        %v398 = vor.u32 %v395, %v396
        %v399 = vsel %vm383, %v391, %v398
        %v400 = vrot.slane %v395, 4
        %v402 = vshrl.u32 %v295, 16
        %v404 = vrot.slane %v402, 7
        %v405 = vshll.u32 %v295, 16
        %v407 = vor.u32 %v404, %v405
        %v408 = vrot.slane %v404, 4
        %v410 = vshrl.u32 %v296, 16
        %v412 = vrot.slane %v410, 7
        %v413 = vshll.u32 %v296, 16
        %v415 = vor.u32 %v412, %v413
        %v416 = vsel %vm383, %v408, %v415
        %v417 = vrot.slane %v412, 4
        %v419 = vshrl.u32 %v297, 16
        %v421 = vrot.slane %v419, 7
        %v422 = vshll.u32 %v297, 16
        %v424 = vor.u32 %v421, %v422
        %v425 = vrot.slane %v421, 4
        %v427 = vshrl.u32 %v298, 16
        %v429 = vrot.slane %v427, 7
        %v430 = vshll.u32 %v298, 16
        %v432 = vor.u32 %v429, %v430
        %v433 = vsel %vm383, %v425, %v432
        %v434 = vrot.slane %v429, 4
        %v436 = vshrl.u32 %v299, 16
        %v438 = vrot.slane %v436, 7
        %v439 = vshll.u32 %v299, 16
        %v441 = vor.u32 %v438, %v439
        %v442 = vrot.slane %v438, 4
        %v444 = vshrl.u32 %v300, 16
        %v446 = vrot.slane %v444, 7
        %v447 = vshll.u32 %v300, 16
        %v449 = vor.u32 %v446, %v447
        %v450 = vsel %vm383, %v442, %v449
        %v451 = vrot.slane %v446, 4
        %v453 = vshrl.u32 %v301, 16
        %v455 = vrot.slane %v453, 7
        %v456 = vshll.u32 %v301, 16
        %v458 = vor.u32 %v455, %v456
        %v459 = vrot.slane %v455, 4
        %v461 = vshrl.u32 %v302, 16
        %v463 = vrot.slane %v461, 7
        %v464 = vshll.u32 %v302, 16
        %v466 = vor.u32 %v463, %v464
        %v467 = vsel %vm383, %v459, %v466
        %v468 = vrot.slane %v463, 4
        %v470 = vshrl.u32 %v303, 16
        %v472 = vrot.slane %v470, 7
        %v473 = vshll.u32 %v303, 16
        %v475 = vor.u32 %v472, %v473
        %v476 = vrot.slane %v472, 4
        %v478 = vshrl.u32 %v304, 16
        %v480 = vrot.slane %v478, 7
        %v481 = vshll.u32 %v304, 16
        %v483 = vor.u32 %v480, %v481
        %v484 = vsel %vm383, %v476, %v483
        %v485 = vrot.slane %v480, 4
        %v487 = vshrl.u32 %v305, 16
        %v489 = vrot.slane %v487, 7
        %v490 = vshll.u32 %v305, 16
        %v492 = vor.u32 %v489, %v490
        %v493 = vrot.slane %v489, 4
        %v495 = vshrl.u32 %v306, 16
        %v497 = vrot.slane %v495, 7
        %v498 = vshll.u32 %v306, 16
        %v500 = vor.u32 %v497, %v498
        %v501 = vsel %vm383, %v493, %v500
        %v502 = vrot.slane %v497, 4
        %v504 = vshrl.u32 %v307, 16
        %v506 = vrot.slane %v504, 7
        %v507 = vshll.u32 %v307, 16
        %v509 = vor.u32 %v506, %v507
        %v510 = vrot.slane %v506, 4
        %v512 = vshrl.u32 %v308, 16
        %v514 = vrot.slane %v512, 7
        %v515 = vshll.u32 %v308, 16
        %v517 = vor.u32 %v514, %v515
        %v518 = vsel %vm383, %v510, %v517
        %v519 = vrot.slane %v514, 4
        %v521 = vshrl.u32 %v309, 16
        %v523 = vrot.slane %v521, 7
        %v524 = vshll.u32 %v309, 16
        %v526 = vor.u32 %v523, %v524
        %v527 = vrot.slane %v523, 4
        %v529 = vshrl.u32 %v310, 16
        %v531 = vrot.slane %v529, 7
        %v532 = vshll.u32 %v310, 16
        %v534 = vor.u32 %v531, %v532
        %v535 = vsel %vm383, %v527, %v534
        %v536 = vrot.slane %v531, 4
        %v538 = vshrl.u32 %v311, 16
        %v540 = vrot.slane %v538, 7
        %v541 = vshll.u32 %v311, 16
        %v543 = vor.u32 %v540, %v541
        %v544 = vrot.slane %v540, 4
        %v546 = vshrl.u32 %v312, 16
        %v548 = vrot.slane %v546, 7
        %v549 = vshll.u32 %v312, 16
        %v551 = vor.u32 %v548, %v549
        %v552 = vsel %vm383, %v544, %v551
        %v553 = vrot.slane %v548, 4
        %v555 = vshrl.u32 %v313, 16
        %v557 = vrot.slane %v555, 7
        %v558 = vshll.u32 %v313, 16
        %v560 = vor.u32 %v557, %v558
        %v561 = vrot.slane %v557, 4
        %v563 = vshrl.u32 %v314, 16
        %v565 = vrot.slane %v563, 7
        %v566 = vshll.u32 %v314, 16
        %v568 = vor.u32 %v565, %v566
        %v569 = vsel %vm383, %v561, %v568
        %v570 = vrot.slane %v565, 4
        %v572 = vshrl.u32 %v315, 16
        %v574 = vrot.slane %v572, 7
        %v575 = vshll.u32 %v315, 16
        %v577 = vor.u32 %v574, %v575
        %v578 = vrot.slane %v574, 4
        %v580 = vshrl.u32 %v316, 16
        %v582 = vrot.slane %v580, 7
        %v583 = vshll.u32 %v316, 16
        %v585 = vor.u32 %v582, %v583
        %v586 = vsel %vm383, %v578, %v585
        %v587 = vrot.slane %v582, 4
        %v589 = vshrl.u32 %v317, 16
        %v591 = vrot.slane %v589, 7
        %v592 = vshll.u32 %v317, 16
        %v594 = vor.u32 %v591, %v592
        %v595 = vrot.slane %v591, 4
        %v597 = vshrl.u32 %v318, 16
        %v599 = vrot.slane %v597, 7
        %v600 = vshll.u32 %v318, 16
        %v602 = vor.u32 %v599, %v600
        %v603 = vsel %vm383, %v595, %v602
        %v604 = vrot.slane %v599, 4
        %v606 = vshrl.u32 %v319, 16
        %v608 = vrot.slane %v606, 7
        %v609 = vshll.u32 %v319, 16
        %v611 = vor.u32 %v608, %v609
        %v612 = vrot.slane %v608, 4
        %v614 = vshrl.u32 %v320, 16
        %v616 = vrot.slane %v614, 7
        %v617 = vshll.u32 %v320, 16
        %v619 = vor.u32 %v616, %v617
        %v620 = vsel %vm383, %v612, %v619
        %v621 = vrot.slane %v616, 4
        %v623 = vshrl.u32 %v321, 16
        %v625 = vrot.slane %v623, 7
        %v626 = vshll.u32 %v321, 16
        %v628 = vor.u32 %v625, %v626
        %v629 = vrot.slane %v625, 4
        %v631 = vshrl.u32 %v322, 16
        %v633 = vrot.slane %v631, 7
        %v634 = vshll.u32 %v322, 16
        %v636 = vor.u32 %v633, %v634
        %v637 = vsel %vm383, %v629, %v636
        %v638 = vrot.slane %v633, 4
        %v640 = vshrl.u32 %v323, 16
        %v642 = vrot.slane %v640, 7
        %v643 = vshll.u32 %v323, 16
        %v645 = vor.u32 %v642, %v643
        %v646 = vrot.slane %v642, 4
        %v648 = vshrl.u32 %v324, 16
        %v650 = vrot.slane %v648, 7
        %v651 = vshll.u32 %v324, 16
        %v653 = vor.u32 %v650, %v651
        %v654 = vsel %vm383, %v646, %v653
        %v655 = vrot.slane %v650, 4
        %s704 = scalar_lea.vmem [#allocation2], 12
        %vm705 = vcmask 27648
        %vm706 = vsmask.f32 7938
        %vm707 = vmand %vm705, %vm706
        %v708 = vld [vmem:[%s704] sm:$0xf]
        %v709 = vsel %vm707, %v390, %v708
        %710 = vst [vmem:[%s704] sm:$0xf] %v709
        %711 = vst.msk [vmem:[%s704 + $0x4] sm:$0xf] %vm325, %v399
        %vm712 = vcmask 24576
        %vm713 = vmand %vm712, %vm381
        %v714 = vld [vmem:[%s704 + $0x8] sm:$0x1]
        %v715 = vsel %vm713, %v400, %v714
        %716 = vst [vmem:[%s704 + $0x8] sm:$0x1] %v715
        %v717 = vld [vmem:[%s704 + $0xc] sm:$0xf]
        %v718 = vsel %vm707, %v407, %v717
        %719 = vst [vmem:[%s704 + $0xc] sm:$0xf] %v718
        %720 = vst.msk [vmem:[%s704 + $0x10] sm:$0xf] %vm325, %v416
        %v721 = vld [vmem:[%s704 + $0x14] sm:$0x1]
        %v722 = vsel %vm713, %v417, %v721
        %723 = vst [vmem:[%s704 + $0x14] sm:$0x1] %v722
        %v724 = vld [vmem:[%s704 + $0x18] sm:$0xf]
        %v725 = vsel %vm707, %v424, %v724
        %726 = vst [vmem:[%s704 + $0x18] sm:$0xf] %v725
        %727 = vst.msk [vmem:[%s704 + $0x1c] sm:$0xf] %vm325, %v433
        %v728 = vld [vmem:[%s704 + $0x20] sm:$0x1]
        %v729 = vsel %vm713, %v434, %v728
        %730 = vst [vmem:[%s704 + $0x20] sm:$0x1] %v729
        %v731 = vld [vmem:[%s704 + $0x24] sm:$0xf]
        %v732 = vsel %vm707, %v441, %v731
        %733 = vst [vmem:[%s704 + $0x24] sm:$0xf] %v732
        %734 = vst.msk [vmem:[%s704 + $0x28] sm:$0xf] %vm325, %v450
        %v735 = vld [vmem:[%s704 + $0x2c] sm:$0x1]
        %v736 = vsel %vm713, %v451, %v735
        %737 = vst [vmem:[%s704 + $0x2c] sm:$0x1] %v736
        %v738 = vld [vmem:[%s704 + $0x30] sm:$0xf]
        %v739 = vsel %vm707, %v458, %v738
        %740 = vst [vmem:[%s704 + $0x30] sm:$0xf] %v739
        %741 = vst.msk [vmem:[%s704 + $0x34] sm:$0xf] %vm325, %v467
        %v742 = vld [vmem:[%s704 + $0x38] sm:$0x1]
        %v743 = vsel %vm713, %v468, %v742
        %744 = vst [vmem:[%s704 + $0x38] sm:$0x1] %v743
        %v745 = vld [vmem:[%s704 + $0x3c] sm:$0xf]
        %v746 = vsel %vm707, %v475, %v745
        %747 = vst [vmem:[%s704 + $0x3c] sm:$0xf] %v746
        %748 = vst.msk [vmem:[%s704 + $0x40] sm:$0xf] %vm325, %v484
        %v749 = vld [vmem:[%s704 + $0x44] sm:$0x1]
        %v750 = vsel %vm713, %v485, %v749
        %751 = vst [vmem:[%s704 + $0x44] sm:$0x1] %v750
        %v752 = vld [vmem:[%s704 + $0x48] sm:$0xf]
        %v753 = vsel %vm707, %v492, %v752
        %754 = vst [vmem:[%s704 + $0x48] sm:$0xf] %v753
        %755 = vst.msk [vmem:[%s704 + $0x4c] sm:$0xf] %vm325, %v501
        %v756 = vld [vmem:[%s704 + $0x50] sm:$0x1]
        %v757 = vsel %vm713, %v502, %v756
        %758 = vst [vmem:[%s704 + $0x50] sm:$0x1] %v757
        %v759 = vld [vmem:[%s704 + $0x54] sm:$0xf]
        %v760 = vsel %vm707, %v509, %v759
        %761 = vst [vmem:[%s704 + $0x54] sm:$0xf] %v760
        %762 = vst.msk [vmem:[%s704 + $0x58] sm:$0xf] %vm325, %v518
        %v763 = vld [vmem:[%s704 + $0x5c] sm:$0x1]
        %v764 = vsel %vm713, %v519, %v763
        %765 = vst [vmem:[%s704 + $0x5c] sm:$0x1] %v764
        %v766 = vld [vmem:[%s704 + $0x60] sm:$0xf]
        %v767 = vsel %vm707, %v526, %v766
        %768 = vst [vmem:[%s704 + $0x60] sm:$0xf] %v767
        %769 = vst.msk [vmem:[%s704 + $0x64] sm:$0xf] %vm325, %v535
        %v770 = vld [vmem:[%s704 + $0x68] sm:$0x1]
        %v771 = vsel %vm713, %v536, %v770
        %772 = vst [vmem:[%s704 + $0x68] sm:$0x1] %v771
        %v773 = vld [vmem:[%s704 + $0x6c] sm:$0xf]
        %v774 = vsel %vm707, %v543, %v773
        %775 = vst [vmem:[%s704 + $0x6c] sm:$0xf] %v774
        %776 = vst.msk [vmem:[%s704 + $0x70] sm:$0xf] %vm325, %v552
        %v777 = vld [vmem:[%s704 + $0x74] sm:$0x1]
        %v778 = vsel %vm713, %v553, %v777
        %779 = vst [vmem:[%s704 + $0x74] sm:$0x1] %v778
        %v780 = vld [vmem:[%s704 + $0x78] sm:$0xf]
        %v781 = vsel %vm707, %v560, %v780
        %782 = vst [vmem:[%s704 + $0x78] sm:$0xf] %v781
        %783 = vst.msk [vmem:[%s704 + $0x7c] sm:$0xf] %vm325, %v569
        %v784 = vld [vmem:[%s704 + $0x80] sm:$0x1]
        %v785 = vsel %vm713, %v570, %v784
        %786 = vst [vmem:[%s704 + $0x80] sm:$0x1] %v785
        %v787 = vld [vmem:[%s704 + $0x84] sm:$0xf]
        %v788 = vsel %vm707, %v577, %v787
        %789 = vst [vmem:[%s704 + $0x84] sm:$0xf] %v788
        %790 = vst.msk [vmem:[%s704 + $0x88] sm:$0xf] %vm325, %v586
        %v791 = vld [vmem:[%s704 + $0x8c] sm:$0x1]
        %v792 = vsel %vm713, %v587, %v791
        %793 = vst [vmem:[%s704 + $0x8c] sm:$0x1] %v792
        %v794 = vld [vmem:[%s704 + $0x90] sm:$0xf]
        %v795 = vsel %vm707, %v594, %v794
        %796 = vst [vmem:[%s704 + $0x90] sm:$0xf] %v795
        %797 = vst.msk [vmem:[%s704 + $0x94] sm:$0xf] %vm325, %v603
        %v798 = vld [vmem:[%s704 + $0x98] sm:$0x1]
        %v799 = vsel %vm713, %v604, %v798
        %800 = vst [vmem:[%s704 + $0x98] sm:$0x1] %v799
        %v801 = vld [vmem:[%s704 + $0x9c] sm:$0xf]
        %v802 = vsel %vm707, %v611, %v801
        %803 = vst [vmem:[%s704 + $0x9c] sm:$0xf] %v802
        %804 = vst.msk [vmem:[%s704 + $0xa0] sm:$0xf] %vm325, %v620
        %v805 = vld [vmem:[%s704 + $0xa4] sm:$0x1]
        %v806 = vsel %vm713, %v621, %v805
        %807 = vst [vmem:[%s704 + $0xa4] sm:$0x1] %v806
        %v808 = vld [vmem:[%s704 + $0xa8] sm:$0xf]
        %v809 = vsel %vm707, %v628, %v808
        %810 = vst [vmem:[%s704 + $0xa8] sm:$0xf] %v809
        %811 = vst.msk [vmem:[%s704 + $0xac] sm:$0xf] %vm325, %v637
        %v812 = vld [vmem:[%s704 + $0xb0] sm:$0x1]
        %v813 = vsel %vm713, %v638, %v812
        %814 = vst [vmem:[%s704 + $0xb0] sm:$0x1] %v813
        %v815 = vld [vmem:[%s704 + $0xb4] sm:$0xf]
        %v816 = vsel %vm707, %v645, %v815
        %817 = vst [vmem:[%s704 + $0xb4] sm:$0xf] %v816
        %818 = vst.msk [vmem:[%s704 + $0xb8] sm:$0xf] %vm325, %v654
        %v819 = vld [vmem:[%s704 + $0xbc] sm:$0x1]
        %v820 = vsel %vm713, %v655, %v819
        %821 = vst [vmem:[%s704 + $0xbc] sm:$0x1] %v820
        %v822 = vld [vmem:[#allocation2] sm:$0xf]
        %v823 = vld [vmem:[#allocation2 + $0x4] sm:$0xf]
        %v824 = vld [vmem:[#allocation2 + $0x8] sm:$0x1]
        %v825 = vld [vmem:[#allocation2 + $0xc] sm:$0xf]
        %v826 = vld [vmem:[#allocation2 + $0x10] sm:$0xf]
        %v827 = vld [vmem:[#allocation2 + $0x14] sm:$0x1]
        %v828 = vld [vmem:[#allocation2 + $0x18] sm:$0xf]
        %v829 = vld [vmem:[#allocation2 + $0x1c] sm:$0xf]
        %v830 = vld [vmem:[#allocation2 + $0x20] sm:$0x1]
        %v831 = vld [vmem:[#allocation2 + $0x24] sm:$0xf]
        %v832 = vld [vmem:[#allocation2 + $0x28] sm:$0xf]
        %v833 = vld [vmem:[#allocation2 + $0x2c] sm:$0x1]
        %v834 = vld [vmem:[#allocation2 + $0x30] sm:$0xf]
        %v835 = vld [vmem:[#allocation2 + $0x34] sm:$0xf]
        %v836 = vld [vmem:[#allocation2 + $0x38] sm:$0x1]
        %v837 = vld [vmem:[#allocation2 + $0x3c] sm:$0xf]
        %v838 = vld [vmem:[#allocation2 + $0x40] sm:$0xf]
        %v839 = vld [vmem:[#allocation2 + $0x44] sm:$0x1]
        %v840 = vld [vmem:[#allocation2 + $0x48] sm:$0xf]
        %v841 = vld [vmem:[#allocation2 + $0x4c] sm:$0xf]
        %v842 = vld [vmem:[#allocation2 + $0x50] sm:$0x1]
        %v843 = vld [vmem:[#allocation2 + $0x54] sm:$0xf]
        %v844 = vld [vmem:[#allocation2 + $0x58] sm:$0xf]
        %v845 = vld [vmem:[#allocation2 + $0x5c] sm:$0x1]
        %v846 = vld [vmem:[#allocation2 + $0x60] sm:$0xf]
        %v847 = vld [vmem:[#allocation2 + $0x64] sm:$0xf]
        %v848 = vld [vmem:[#allocation2 + $0x68] sm:$0x1]
        %v849 = vld [vmem:[#allocation2 + $0x6c] sm:$0xf]
        %v850 = vld [vmem:[#allocation2 + $0x70] sm:$0xf]
        %v851 = vld [vmem:[#allocation2 + $0x74] sm:$0x1]
        %v852 = vld [vmem:[#allocation2 + $0x78] sm:$0xf]
        %v853 = vld [vmem:[#allocation2 + $0x7c] sm:$0xf]
        %v854 = vld [vmem:[#allocation2 + $0x80] sm:$0x1]
        %v855 = vld [vmem:[#allocation2 + $0x84] sm:$0xf]
        %v856 = vld [vmem:[#allocation2 + $0x88] sm:$0xf]
        %v857 = vld [vmem:[#allocation2 + $0x8c] sm:$0x1]
        %v858 = vld [vmem:[#allocation2 + $0x90] sm:$0xf]
        %v859 = vld [vmem:[#allocation2 + $0x94] sm:$0xf]
        %v860 = vld [vmem:[#allocation2 + $0x98] sm:$0x1]
        %v861 = vld [vmem:[#allocation2 + $0x9c] sm:$0xf]
        %v862 = vld [vmem:[#allocation2 + $0xa0] sm:$0xf]
        %v863 = vld [vmem:[#allocation2 + $0xa4] sm:$0x1]
        %v864 = vld [vmem:[#allocation2 + $0xa8] sm:$0xf]
        %v865 = vld [vmem:[#allocation2 + $0xac] sm:$0xf]
        %v866 = vld [vmem:[#allocation2 + $0xb0] sm:$0x1]
        %v867 = vld [vmem:[#allocation2 + $0xb4] sm:$0xf]
        %v868 = vld [vmem:[#allocation2 + $0xb8] sm:$0xf]
        %v869 = vld [vmem:[#allocation2 + $0xbc] sm:$0x1]
        %v870 = vld [vmem:[#allocation2 + $0xc0] sm:$0xf]
        %v871 = vld [vmem:[#allocation2 + $0xc4] sm:$0xf]
        %v872 = vld [vmem:[#allocation2 + $0xc8] sm:$0x1]
        %v873 = vld [vmem:[#allocation2 + $0xcc] sm:$0xf]
        %v874 = vld [vmem:[#allocation2 + $0xd0] sm:$0xf]
        %v875 = vld [vmem:[#allocation2 + $0xd4] sm:$0x1]
        %vm876 = vsmask.f32 3328
        %vm877 = vsmask.f32 7440
        %vm878 = vmor %vm876, %vm877
        %v880 = vshrl.u32 %v822, 16
        %v882 = vrot.slane %v880, 4
        %v883 = vshll.u32 %v822, 16
        %v885 = vrot.slane %v883, 5
        %v886 = vor.u32 %v882, %v885
        %v887 = vrot.slane %v886, 4
        %v889 = vshll.u32 %v823, 16
        %v891 = vrot.slane %v889, 5
        %v892 = vsel %vm878, %v887, %v891
        %v893 = vshrl.u32 %v823, 16
        %v895 = vrot.slane %v893, 4
        %v896 = vor.u32 %v895, %v891
        %v897 = vrot.slane %v896, 4
        %v899 = vshll.u32 %v824, 16
        %v901 = vrot.slane %v899, 5
        %v902 = vsel %vm878, %v897, %v901
        %v904 = vshrl.u32 %v825, 16
        %v906 = vrot.slane %v904, 4
        %v907 = vshll.u32 %v825, 16
        %v909 = vrot.slane %v907, 5
        %v910 = vor.u32 %v906, %v909
        %v911 = vrot.slane %v910, 4
        %v913 = vshll.u32 %v826, 16
        %v915 = vrot.slane %v913, 5
        %v916 = vsel %vm878, %v911, %v915
        %v917 = vshrl.u32 %v826, 16
        %v919 = vrot.slane %v917, 4
        %v920 = vor.u32 %v919, %v915
        %v921 = vrot.slane %v920, 4
        %v923 = vshll.u32 %v827, 16
        %v925 = vrot.slane %v923, 5
        %v926 = vsel %vm878, %v921, %v925
        %v928 = vshrl.u32 %v828, 16
        %v930 = vrot.slane %v928, 4
        %v931 = vshll.u32 %v828, 16
        %v933 = vrot.slane %v931, 5
        %v934 = vor.u32 %v930, %v933
        %v935 = vrot.slane %v934, 4
        %v937 = vshll.u32 %v829, 16
        %v939 = vrot.slane %v937, 5
        %v940 = vsel %vm878, %v935, %v939
        %v941 = vshrl.u32 %v829, 16
        %v943 = vrot.slane %v941, 4
        %v944 = vor.u32 %v943, %v939
        %v945 = vrot.slane %v944, 4
        %v947 = vshll.u32 %v830, 16
        %v949 = vrot.slane %v947, 5
        %v950 = vsel %vm878, %v945, %v949
        %v952 = vshrl.u32 %v831, 16
        %v954 = vrot.slane %v952, 4
        %v955 = vshll.u32 %v831, 16
        %v957 = vrot.slane %v955, 5
        %v958 = vor.u32 %v954, %v957
        %v959 = vrot.slane %v958, 4
        %v961 = vshll.u32 %v832, 16
        %v963 = vrot.slane %v961, 5
        %v964 = vsel %vm878, %v959, %v963
        %v965 = vshrl.u32 %v832, 16
        %v967 = vrot.slane %v965, 4
        %v968 = vor.u32 %v967, %v963
        %v969 = vrot.slane %v968, 4
        %v971 = vshll.u32 %v833, 16
        %v973 = vrot.slane %v971, 5
        %v974 = vsel %vm878, %v969, %v973
        %v976 = vshrl.u32 %v834, 16
        %v978 = vrot.slane %v976, 4
        %v979 = vshll.u32 %v834, 16
        %v981 = vrot.slane %v979, 5
        %v982 = vor.u32 %v978, %v981
        %v983 = vrot.slane %v982, 4
        %v985 = vshll.u32 %v835, 16
        %v987 = vrot.slane %v985, 5
        %v988 = vsel %vm878, %v983, %v987
        %v989 = vshrl.u32 %v835, 16
        %v991 = vrot.slane %v989, 4
        %v992 = vor.u32 %v991, %v987
        %v993 = vrot.slane %v992, 4
        %v995 = vshll.u32 %v836, 16
        %v997 = vrot.slane %v995, 5
        %v998 = vsel %vm878, %v993, %v997
        %v1000 = vshrl.u32 %v837, 16
        %v1002 = vrot.slane %v1000, 4
        %v1003 = vshll.u32 %v837, 16
        %v1005 = vrot.slane %v1003, 5
        %v1006 = vor.u32 %v1002, %v1005
        %v1007 = vrot.slane %v1006, 4
        %v1009 = vshll.u32 %v838, 16
        %v1011 = vrot.slane %v1009, 5
        %v1012 = vsel %vm878, %v1007, %v1011
        %v1013 = vshrl.u32 %v838, 16
        %v1015 = vrot.slane %v1013, 4
        %v1016 = vor.u32 %v1015, %v1011
        %v1017 = vrot.slane %v1016, 4
        %v1019 = vshll.u32 %v839, 16
        %v1021 = vrot.slane %v1019, 5
        %v1022 = vsel %vm878, %v1017, %v1021
        %v1024 = vshrl.u32 %v840, 16
        %v1026 = vrot.slane %v1024, 4
        %v1027 = vshll.u32 %v840, 16
        %v1029 = vrot.slane %v1027, 5
        %v1030 = vor.u32 %v1026, %v1029
        %v1031 = vrot.slane %v1030, 4
        %v1033 = vshll.u32 %v841, 16
        %v1035 = vrot.slane %v1033, 5
        %v1036 = vsel %vm878, %v1031, %v1035
        %v1037 = vshrl.u32 %v841, 16
        %v1039 = vrot.slane %v1037, 4
        %v1040 = vor.u32 %v1039, %v1035
        %v1041 = vrot.slane %v1040, 4
        %v1043 = vshll.u32 %v842, 16
        %v1045 = vrot.slane %v1043, 5
        %v1046 = vsel %vm878, %v1041, %v1045
        %v1048 = vshrl.u32 %v843, 16
        %v1050 = vrot.slane %v1048, 4
        %v1051 = vshll.u32 %v843, 16
        %v1053 = vrot.slane %v1051, 5
        %v1054 = vor.u32 %v1050, %v1053
        %v1055 = vrot.slane %v1054, 4
        %v1057 = vshll.u32 %v844, 16
        %v1059 = vrot.slane %v1057, 5
        %v1060 = vsel %vm878, %v1055, %v1059
        %v1061 = vshrl.u32 %v844, 16
        %v1063 = vrot.slane %v1061, 4
        %v1064 = vor.u32 %v1063, %v1059
        %v1065 = vrot.slane %v1064, 4
        %v1067 = vshll.u32 %v845, 16
        %v1069 = vrot.slane %v1067, 5
        %v1070 = vsel %vm878, %v1065, %v1069
        %v1072 = vshrl.u32 %v846, 16
        %v1074 = vrot.slane %v1072, 4
        %v1075 = vshll.u32 %v846, 16
        %v1077 = vrot.slane %v1075, 5
        %v1078 = vor.u32 %v1074, %v1077
        %v1079 = vrot.slane %v1078, 4
        %v1081 = vshll.u32 %v847, 16
        %v1083 = vrot.slane %v1081, 5
        %v1084 = vsel %vm878, %v1079, %v1083
        %v1085 = vshrl.u32 %v847, 16
        %v1087 = vrot.slane %v1085, 4
        %v1088 = vor.u32 %v1087, %v1083
        %v1089 = vrot.slane %v1088, 4
        %v1091 = vshll.u32 %v848, 16
        %v1093 = vrot.slane %v1091, 5
        %v1094 = vsel %vm878, %v1089, %v1093
        %v1096 = vshrl.u32 %v849, 16
        %v1098 = vrot.slane %v1096, 4
        %v1099 = vshll.u32 %v849, 16
        %v1101 = vrot.slane %v1099, 5
        %v1102 = vor.u32 %v1098, %v1101
        %v1103 = vrot.slane %v1102, 4
        %v1105 = vshll.u32 %v850, 16
        %v1107 = vrot.slane %v1105, 5
        %v1108 = vsel %vm878, %v1103, %v1107
        %v1109 = vshrl.u32 %v850, 16
        %v1111 = vrot.slane %v1109, 4
        %v1112 = vor.u32 %v1111, %v1107
        %v1113 = vrot.slane %v1112, 4
        %v1115 = vshll.u32 %v851, 16
        %v1117 = vrot.slane %v1115, 5
        %v1118 = vsel %vm878, %v1113, %v1117
        %v1120 = vshrl.u32 %v852, 16
        %v1122 = vrot.slane %v1120, 4
        %v1123 = vshll.u32 %v852, 16
        %v1125 = vrot.slane %v1123, 5
        %v1126 = vor.u32 %v1122, %v1125
        %v1127 = vrot.slane %v1126, 4
        %v1129 = vshll.u32 %v853, 16
        %v1131 = vrot.slane %v1129, 5
        %v1132 = vsel %vm878, %v1127, %v1131
        %v1133 = vshrl.u32 %v853, 16
        %v1135 = vrot.slane %v1133, 4
        %v1136 = vor.u32 %v1135, %v1131
        %v1137 = vrot.slane %v1136, 4
        %v1139 = vshll.u32 %v854, 16
        %v1141 = vrot.slane %v1139, 5
        %v1142 = vsel %vm878, %v1137, %v1141
        %v1144 = vshrl.u32 %v855, 16
        %v1146 = vrot.slane %v1144, 4
        %v1147 = vshll.u32 %v855, 16
        %v1149 = vrot.slane %v1147, 5
        %v1150 = vor.u32 %v1146, %v1149
        %v1151 = vrot.slane %v1150, 4
        %v1153 = vshll.u32 %v856, 16
        %v1155 = vrot.slane %v1153, 5
        %v1156 = vsel %vm878, %v1151, %v1155
        %v1157 = vshrl.u32 %v856, 16
        %v1159 = vrot.slane %v1157, 4
        %v1160 = vor.u32 %v1159, %v1155
        %v1161 = vrot.slane %v1160, 4
        %v1163 = vshll.u32 %v857, 16
        %v1165 = vrot.slane %v1163, 5
        %v1166 = vsel %vm878, %v1161, %v1165
        %v1168 = vshrl.u32 %v858, 16
        %v1170 = vrot.slane %v1168, 4
        %v1171 = vshll.u32 %v858, 16
        %v1173 = vrot.slane %v1171, 5
        %v1174 = vor.u32 %v1170, %v1173
        %v1175 = vrot.slane %v1174, 4
        %v1177 = vshll.u32 %v859, 16
        %v1179 = vrot.slane %v1177, 5
        %v1180 = vsel %vm878, %v1175, %v1179
        %v1181 = vshrl.u32 %v859, 16
        %v1183 = vrot.slane %v1181, 4
        %v1184 = vor.u32 %v1183, %v1179
        %v1185 = vrot.slane %v1184, 4
        %v1187 = vshll.u32 %v860, 16
        %v1189 = vrot.slane %v1187, 5
        %v1190 = vsel %vm878, %v1185, %v1189
        %v1192 = vshrl.u32 %v861, 16
        %v1194 = vrot.slane %v1192, 4
        %v1195 = vshll.u32 %v861, 16
        %v1197 = vrot.slane %v1195, 5
        %v1198 = vor.u32 %v1194, %v1197
        %v1199 = vrot.slane %v1198, 4
        %v1201 = vshll.u32 %v862, 16
        %v1203 = vrot.slane %v1201, 5
        %v1204 = vsel %vm878, %v1199, %v1203
        %v1205 = vshrl.u32 %v862, 16
        %v1207 = vrot.slane %v1205, 4
        %v1208 = vor.u32 %v1207, %v1203
        %v1209 = vrot.slane %v1208, 4
        %v1211 = vshll.u32 %v863, 16
        %v1213 = vrot.slane %v1211, 5
        %v1214 = vsel %vm878, %v1209, %v1213
        %v1216 = vshrl.u32 %v864, 16
        %v1218 = vrot.slane %v1216, 4
        %v1219 = vshll.u32 %v864, 16
        %v1221 = vrot.slane %v1219, 5
        %v1222 = vor.u32 %v1218, %v1221
        %v1223 = vrot.slane %v1222, 4
        %v1225 = vshll.u32 %v865, 16
        %v1227 = vrot.slane %v1225, 5
        %v1228 = vsel %vm878, %v1223, %v1227
        %v1229 = vshrl.u32 %v865, 16
        %v1231 = vrot.slane %v1229, 4
        %v1232 = vor.u32 %v1231, %v1227
        %v1233 = vrot.slane %v1232, 4
        %v1235 = vshll.u32 %v866, 16
        %v1237 = vrot.slane %v1235, 5
        %v1238 = vsel %vm878, %v1233, %v1237
        %v1240 = vshrl.u32 %v867, 16
        %v1242 = vrot.slane %v1240, 4
        %v1243 = vshll.u32 %v867, 16
        %v1245 = vrot.slane %v1243, 5
        %v1246 = vor.u32 %v1242, %v1245
        %v1247 = vrot.slane %v1246, 4
        %v1249 = vshll.u32 %v868, 16
        %v1251 = vrot.slane %v1249, 5
        %v1252 = vsel %vm878, %v1247, %v1251
        %v1253 = vshrl.u32 %v868, 16
        %v1255 = vrot.slane %v1253, 4
        %v1256 = vor.u32 %v1255, %v1251
        %v1257 = vrot.slane %v1256, 4
        %v1259 = vshll.u32 %v869, 16
        %v1261 = vrot.slane %v1259, 5
        %v1262 = vsel %vm878, %v1257, %v1261
        %vm1311 = vcmask 1042432
        %vm1312 = vcmask 1046532
        %vm1313 = vmor %vm1311, %vm1312
        %v1314 = vrot.slane %v822, 5
        %v1315 = vrot.slane %v1314, 4
        %v1316 = vrot.slane %v823, 5
        %v1317 = vsel %vm1313, %v1315, %v1316
        %v1318 = vrot.slane %v1316, 4
        %v1319 = vrot.slane %v824, 5
        %v1320 = vsel %vm1313, %v1318, %v1319
        %v1321 = vrot.slane %v825, 5
        %v1322 = vrot.slane %v1321, 4
        %v1323 = vrot.slane %v826, 5
        %v1324 = vsel %vm1313, %v1322, %v1323
        %v1325 = vrot.slane %v1323, 4
        %v1326 = vrot.slane %v827, 5
        %v1327 = vsel %vm1313, %v1325, %v1326
        %v1328 = vrot.slane %v828, 5
        %v1329 = vrot.slane %v1328, 4
        %v1330 = vrot.slane %v829, 5
        %v1331 = vsel %vm1313, %v1329, %v1330
        %v1332 = vrot.slane %v1330, 4
        %v1333 = vrot.slane %v830, 5
        %v1334 = vsel %vm1313, %v1332, %v1333
        %v1335 = vrot.slane %v831, 5
        %v1336 = vrot.slane %v1335, 4
        %v1337 = vrot.slane %v832, 5
        %v1338 = vsel %vm1313, %v1336, %v1337
        %v1339 = vrot.slane %v1337, 4
        %v1340 = vrot.slane %v833, 5
        %v1341 = vsel %vm1313, %v1339, %v1340
        %v1342 = vrot.slane %v834, 5
        %v1343 = vrot.slane %v1342, 4
        %v1344 = vrot.slane %v835, 5
        %v1345 = vsel %vm1313, %v1343, %v1344
        %v1346 = vrot.slane %v1344, 4
        %v1347 = vrot.slane %v836, 5
        %v1348 = vsel %vm1313, %v1346, %v1347
        %v1349 = vrot.slane %v837, 5
        %v1350 = vrot.slane %v1349, 4
        %v1351 = vrot.slane %v838, 5
        %v1352 = vsel %vm1313, %v1350, %v1351
        %v1353 = vrot.slane %v1351, 4
        %v1354 = vrot.slane %v839, 5
        %v1355 = vsel %vm1313, %v1353, %v1354
        %v1356 = vrot.slane %v840, 5
        %v1357 = vrot.slane %v1356, 4
        %v1358 = vrot.slane %v841, 5
        %v1359 = vsel %vm1313, %v1357, %v1358
        %v1360 = vrot.slane %v1358, 4
        %v1361 = vrot.slane %v842, 5
        %v1362 = vsel %vm1313, %v1360, %v1361
        %v1363 = vrot.slane %v843, 5
        %v1364 = vrot.slane %v1363, 4
        %v1365 = vrot.slane %v844, 5
        %v1366 = vsel %vm1313, %v1364, %v1365
        %v1367 = vrot.slane %v1365, 4
        %v1368 = vrot.slane %v845, 5
        %v1369 = vsel %vm1313, %v1367, %v1368
        %v1370 = vrot.slane %v846, 5
        %v1371 = vrot.slane %v1370, 4
        %v1372 = vrot.slane %v847, 5
        %v1373 = vsel %vm1313, %v1371, %v1372
        %v1374 = vrot.slane %v1372, 4
        %v1375 = vrot.slane %v848, 5
        %v1376 = vsel %vm1313, %v1374, %v1375
        %v1377 = vrot.slane %v849, 5
        %v1378 = vrot.slane %v1377, 4
        %v1379 = vrot.slane %v850, 5
        %v1380 = vsel %vm1313, %v1378, %v1379
        %v1381 = vrot.slane %v1379, 4
        %v1382 = vrot.slane %v851, 5
        %v1383 = vsel %vm1313, %v1381, %v1382
        %v1384 = vrot.slane %v852, 5
        %v1385 = vrot.slane %v1384, 4
        %v1386 = vrot.slane %v853, 5
        %v1387 = vsel %vm1313, %v1385, %v1386
        %v1388 = vrot.slane %v1386, 4
        %v1389 = vrot.slane %v854, 5
        %v1390 = vsel %vm1313, %v1388, %v1389
        %v1391 = vrot.slane %v855, 5
        %v1392 = vrot.slane %v1391, 4
        %v1393 = vrot.slane %v856, 5
        %v1394 = vsel %vm1313, %v1392, %v1393
        %v1395 = vrot.slane %v1393, 4
        %v1396 = vrot.slane %v857, 5
        %v1397 = vsel %vm1313, %v1395, %v1396
        %v1398 = vrot.slane %v858, 5
        %v1399 = vrot.slane %v1398, 4
        %v1400 = vrot.slane %v859, 5
        %v1401 = vsel %vm1313, %v1399, %v1400
        %v1402 = vrot.slane %v1400, 4
        %v1403 = vrot.slane %v860, 5
        %v1404 = vsel %vm1313, %v1402, %v1403
        %v1405 = vrot.slane %v861, 5
        %v1406 = vrot.slane %v1405, 4
        %v1407 = vrot.slane %v862, 5
        %v1408 = vsel %vm1313, %v1406, %v1407
        %v1409 = vrot.slane %v1407, 4
        %v1410 = vrot.slane %v863, 5
        %v1411 = vsel %vm1313, %v1409, %v1410
        %v1412 = vrot.slane %v864, 5
        %v1413 = vrot.slane %v1412, 4
        %v1414 = vrot.slane %v865, 5
        %v1415 = vsel %vm1313, %v1413, %v1414
        %v1416 = vrot.slane %v1414, 4
        %v1417 = vrot.slane %v866, 5
        %v1418 = vsel %vm1313, %v1416, %v1417
        %v1419 = vrot.slane %v867, 5
        %v1420 = vrot.slane %v1419, 4
        %v1421 = vrot.slane %v868, 5
        %v1422 = vsel %vm1313, %v1420, %v1421
        %v1423 = vrot.slane %v1421, 4
        %v1424 = vrot.slane %v869, 5
        %v1425 = vsel %vm1313, %v1423, %v1424
        %v1427 = vshrl.u32 %v870, 16
        %v1429 = vrot.slane %v1427, 4
        %v1430 = vshll.u32 %v870, 16
        %v1432 = vrot.slane %v1430, 5
        %v1433 = vor.u32 %v1429, %v1432
        %v1434 = vrot.slane %v1433, 4
        %v1436 = vshll.u32 %v871, 16
        %v1438 = vrot.slane %v1436, 5
        %v1439 = vsel %vm878, %v1434, %v1438
        %v1440 = vshrl.u32 %v871, 16
        %v1442 = vrot.slane %v1440, 4
        %v1443 = vor.u32 %v1442, %v1438
        %v1444 = vrot.slane %v1443, 4
        %v1446 = vshll.u32 %v872, 16
        %v1448 = vrot.slane %v1446, 5
        %v1449 = vsel %vm878, %v1444, %v1448
        %v1453 = vrot.slane %v870, 5
        %v1454 = vrot.slane %v1453, 4
        %v1455 = vrot.slane %v871, 5
        %v1456 = vsel %vm1313, %v1454, %v1455
        %v1457 = vrot.slane %v1455, 4
        %v1458 = vrot.slane %v872, 5
        %v1459 = vsel %vm1313, %v1457, %v1458
        %v1461 = vshrl.u32 %v873, 16
        %v1463 = vrot.slane %v1461, 4
        %v1464 = vshll.u32 %v873, 16
        %v1466 = vrot.slane %v1464, 5
        %v1467 = vor.u32 %v1463, %v1466
        %v1468 = vrot.slane %v1467, 4
        %v1470 = vshll.u32 %v874, 16
        %v1472 = vrot.slane %v1470, 5
        %v1473 = vsel %vm878, %v1468, %v1472
        %v1474 = vshrl.u32 %v874, 16
        %v1476 = vrot.slane %v1474, 4
        %v1477 = vor.u32 %v1476, %v1472
        %v1478 = vrot.slane %v1477, 4
        %v1480 = vshll.u32 %v875, 16
        %v1482 = vrot.slane %v1480, 5
        %v1483 = vsel %vm878, %v1478, %v1482
        %v1487 = vrot.slane %v873, 5
        %v1488 = vrot.slane %v1487, 4
        %v1489 = vrot.slane %v874, 5
        %v1490 = vsel %vm1313, %v1488, %v1489
        %v1491 = vrot.slane %v1489, 4
        %v1492 = vrot.slane %v875, 5
        %v1493 = vsel %vm1313, %v1491, %v1492
        %v1494 = vunpack.c.l.b16 %v822
        %v1495 = vunpack.c.l.b16 %v823
        %v1496 = vunpack.c.l.b16 %v825
        %v1497 = vunpack.c.l.b16 %v826
        %v1498 = vunpack.c.l.b16 %v828
        %v1499 = vunpack.c.l.b16 %v829
        %v1500 = vunpack.c.l.b16 %v831
        %v1501 = vunpack.c.l.b16 %v832
        %v1502 = vunpack.c.l.b16 %v834
        %v1503 = vunpack.c.l.b16 %v835
        %v1504 = vunpack.c.l.b16 %v837
        %v1505 = vunpack.c.l.b16 %v838
        %v1506 = vunpack.c.l.b16 %v840
        %v1507 = vunpack.c.l.b16 %v841
        %v1508 = vunpack.c.l.b16 %v843
        %v1509 = vunpack.c.l.b16 %v844
        %v1510 = vunpack.c.l.b16 %v846
        %v1511 = vunpack.c.l.b16 %v847
        %v1512 = vunpack.c.l.b16 %v849
        %v1513 = vunpack.c.l.b16 %v850
        %v1514 = vunpack.c.l.b16 %v852
        %v1515 = vunpack.c.l.b16 %v853
        %v1516 = vunpack.c.l.b16 %v855
        %v1517 = vunpack.c.l.b16 %v856
        %v1518 = vunpack.c.l.b16 %v858
        %v1519 = vunpack.c.l.b16 %v859
        %v1520 = vunpack.c.l.b16 %v861
        %v1521 = vunpack.c.l.b16 %v862
        %v1522 = vunpack.c.l.b16 %v864
        %v1523 = vunpack.c.l.b16 %v865
        %v1524 = vunpack.c.l.b16 %v867
        %v1525 = vunpack.c.l.b16 %v868
        %v1526 = vpack.c.b16 %v1495, %v1494
        %v1527 = vpack.c.b16 %v1497, %v1496
        %v1528 = vpack.c.b16 %v1499, %v1498
        %v1529 = vpack.c.b16 %v1501, %v1500
        %v1530 = vpack.c.b16 %v1503, %v1502
        %v1531 = vpack.c.b16 %v1505, %v1504
        %v1532 = vpack.c.b16 %v1507, %v1506
        %v1533 = vpack.c.b16 %v1509, %v1508
        %v1534 = vpack.c.b16 %v1511, %v1510
        %v1535 = vpack.c.b16 %v1513, %v1512
        %v1536 = vpack.c.b16 %v1515, %v1514
        %v1537 = vpack.c.b16 %v1517, %v1516
        %v1538 = vpack.c.b16 %v1519, %v1518
        %v1539 = vpack.c.b16 %v1521, %v1520
        %v1540 = vpack.c.b16 %v1523, %v1522
        %v1541 = vpack.c.b16 %v1525, %v1524
        %v1542 = vunpack.c.l.b16 %v892
        %v1543 = vunpack.c.l.b16 %v902
        %v1544 = vunpack.c.l.b16 %v916
        %v1545 = vunpack.c.l.b16 %v926
        %v1546 = vunpack.c.l.b16 %v940
        %v1547 = vunpack.c.l.b16 %v950
        %v1548 = vunpack.c.l.b16 %v964
        %v1549 = vunpack.c.l.b16 %v974
        %v1550 = vunpack.c.l.b16 %v988
        %v1551 = vunpack.c.l.b16 %v998
        %v1552 = vunpack.c.l.b16 %v1012
        %v1553 = vunpack.c.l.b16 %v1022
        %v1554 = vunpack.c.l.b16 %v1036
        %v1555 = vunpack.c.l.b16 %v1046
        %v1556 = vunpack.c.l.b16 %v1060
        %v1557 = vunpack.c.l.b16 %v1070
        %v1558 = vunpack.c.l.b16 %v1084
        %v1559 = vunpack.c.l.b16 %v1094
        %v1560 = vunpack.c.l.b16 %v1108
        %v1561 = vunpack.c.l.b16 %v1118
        %v1562 = vunpack.c.l.b16 %v1132
        %v1563 = vunpack.c.l.b16 %v1142
        %v1564 = vunpack.c.l.b16 %v1156
        %v1565 = vunpack.c.l.b16 %v1166
        %v1566 = vunpack.c.l.b16 %v1180
        %v1567 = vunpack.c.l.b16 %v1190
        %v1568 = vunpack.c.l.b16 %v1204
        %v1569 = vunpack.c.l.b16 %v1214
        %v1570 = vunpack.c.l.b16 %v1228
        %v1571 = vunpack.c.l.b16 %v1238
        %v1572 = vunpack.c.l.b16 %v1252
        %v1573 = vunpack.c.l.b16 %v1262
        %v1574 = vpack.c.b16 %v1543, %v1542
        %v1575 = vpack.c.b16 %v1545, %v1544
        %v1576 = vpack.c.b16 %v1547, %v1546
        %v1577 = vpack.c.b16 %v1549, %v1548
        %v1578 = vpack.c.b16 %v1551, %v1550
        %v1579 = vpack.c.b16 %v1553, %v1552
        %v1580 = vpack.c.b16 %v1555, %v1554
        %v1581 = vpack.c.b16 %v1557, %v1556
        %v1582 = vpack.c.b16 %v1559, %v1558
        %v1583 = vpack.c.b16 %v1561, %v1560
        %v1584 = vpack.c.b16 %v1563, %v1562
        %v1585 = vpack.c.b16 %v1565, %v1564
        %v1586 = vpack.c.b16 %v1567, %v1566
        %v1587 = vpack.c.b16 %v1569, %v1568
        %v1588 = vpack.c.b16 %v1571, %v1570
        %v1589 = vpack.c.b16 %v1573, %v1572
        %1590 = vrot.lane.b32.xlu0 %v1574, 4
        %v1591 = vpop.permute.xlu0 %1590
        %1592 = vrot.lane.b32.xlu0 %v1575, 4
        %v1593 = vpop.permute.xlu0 %1592
        %1594 = vrot.lane.b32.xlu0 %v1576, 4
        %v1595 = vpop.permute.xlu0 %1594
        %1596 = vrot.lane.b32.xlu0 %v1577, 4
        %v1597 = vpop.permute.xlu0 %1596
        %1598 = vrot.lane.b32.xlu0 %v1578, 4
        %v1599 = vpop.permute.xlu0 %1598
        %1600 = vrot.lane.b32.xlu0 %v1579, 4
        %v1601 = vpop.permute.xlu0 %1600
        %1602 = vrot.lane.b32.xlu0 %v1580, 4
        %v1603 = vpop.permute.xlu0 %1602
        %1604 = vrot.lane.b32.xlu0 %v1581, 4
        %v1605 = vpop.permute.xlu0 %1604
        %1606 = vrot.lane.b32.xlu0 %v1582, 4
        %v1607 = vpop.permute.xlu0 %1606
        %1608 = vrot.lane.b32.xlu0 %v1583, 4
        %v1609 = vpop.permute.xlu0 %1608
        %1610 = vrot.lane.b32.xlu0 %v1584, 4
        %v1611 = vpop.permute.xlu0 %1610
        %1612 = vrot.lane.b32.xlu0 %v1585, 4
        %v1613 = vpop.permute.xlu0 %1612
        %1614 = vrot.lane.b32.xlu0 %v1586, 4
        %v1615 = vpop.permute.xlu0 %1614
        %1616 = vrot.lane.b32.xlu0 %v1587, 4
        %v1617 = vpop.permute.xlu0 %1616
        %1618 = vrot.lane.b32.xlu0 %v1588, 4
        %v1619 = vpop.permute.xlu0 %1618
        %1620 = vrot.lane.b32.xlu0 %v1589, 4
        %v1621 = vpop.permute.xlu0 %1620
        %v1622 = vunpack.c.l.b16 %v1317
        %v1623 = vunpack.c.l.b16 %v1320
        %v1624 = vunpack.c.l.b16 %v1324
        %v1625 = vunpack.c.l.b16 %v1327
        %v1626 = vunpack.c.l.b16 %v1331
        %v1627 = vunpack.c.l.b16 %v1334
        %v1628 = vunpack.c.l.b16 %v1338
        %v1629 = vunpack.c.l.b16 %v1341
        %v1630 = vunpack.c.l.b16 %v1345
        %v1631 = vunpack.c.l.b16 %v1348
        %v1632 = vunpack.c.l.b16 %v1352
        %v1633 = vunpack.c.l.b16 %v1355
        %v1634 = vunpack.c.l.b16 %v1359
        %v1635 = vunpack.c.l.b16 %v1362
        %v1636 = vunpack.c.l.b16 %v1366
        %v1637 = vunpack.c.l.b16 %v1369
        %v1638 = vunpack.c.l.b16 %v1373
        %v1639 = vunpack.c.l.b16 %v1376
        %v1640 = vunpack.c.l.b16 %v1380
        %v1641 = vunpack.c.l.b16 %v1383
        %v1642 = vunpack.c.l.b16 %v1387
        %v1643 = vunpack.c.l.b16 %v1390
        %v1644 = vunpack.c.l.b16 %v1394
        %v1645 = vunpack.c.l.b16 %v1397
        %v1646 = vunpack.c.l.b16 %v1401
        %v1647 = vunpack.c.l.b16 %v1404
        %v1648 = vunpack.c.l.b16 %v1408
        %v1649 = vunpack.c.l.b16 %v1411
        %v1650 = vunpack.c.l.b16 %v1415
        %v1651 = vunpack.c.l.b16 %v1418
        %v1652 = vunpack.c.l.b16 %v1422
        %v1653 = vunpack.c.l.b16 %v1425
        %v1654 = vpack.c.b16 %v1623, %v1622
        %v1655 = vpack.c.b16 %v1625, %v1624
        %v1656 = vpack.c.b16 %v1627, %v1626
        %v1657 = vpack.c.b16 %v1629, %v1628
        %v1658 = vpack.c.b16 %v1631, %v1630
        %v1659 = vpack.c.b16 %v1633, %v1632
        %v1660 = vpack.c.b16 %v1635, %v1634
        %v1661 = vpack.c.b16 %v1637, %v1636
        %v1662 = vpack.c.b16 %v1639, %v1638
        %v1663 = vpack.c.b16 %v1641, %v1640
        %v1664 = vpack.c.b16 %v1643, %v1642
        %v1665 = vpack.c.b16 %v1645, %v1644
        %v1666 = vpack.c.b16 %v1647, %v1646
        %v1667 = vpack.c.b16 %v1649, %v1648
        %v1668 = vpack.c.b16 %v1651, %v1650
        %v1669 = vpack.c.b16 %v1653, %v1652
        %1670 = vrot.lane.b32.xlu0 %v1654, 8
        %v1671 = vpop.permute.xlu0 %1670
        %1672 = vrot.lane.b32.xlu0 %v1655, 8
        %v1673 = vpop.permute.xlu0 %1672
        %1674 = vrot.lane.b32.xlu0 %v1656, 8
        %v1675 = vpop.permute.xlu0 %1674
        %1676 = vrot.lane.b32.xlu0 %v1657, 8
        %v1677 = vpop.permute.xlu0 %1676
        %1678 = vrot.lane.b32.xlu0 %v1658, 8
        %v1679 = vpop.permute.xlu0 %1678
        %1680 = vrot.lane.b32.xlu0 %v1659, 8
        %v1681 = vpop.permute.xlu0 %1680
        %1682 = vrot.lane.b32.xlu0 %v1660, 8
        %v1683 = vpop.permute.xlu0 %1682
        %1684 = vrot.lane.b32.xlu0 %v1661, 8
        %v1685 = vpop.permute.xlu0 %1684
        %1686 = vrot.lane.b32.xlu0 %v1662, 8
        %v1687 = vpop.permute.xlu0 %1686
        %1688 = vrot.lane.b32.xlu0 %v1663, 8
        %v1689 = vpop.permute.xlu0 %1688
        %1690 = vrot.lane.b32.xlu0 %v1664, 8
        %v1691 = vpop.permute.xlu0 %1690
        %1692 = vrot.lane.b32.xlu0 %v1665, 8
        %v1693 = vpop.permute.xlu0 %1692
        %1694 = vrot.lane.b32.xlu0 %v1666, 8
        %v1695 = vpop.permute.xlu0 %1694
        %1696 = vrot.lane.b32.xlu0 %v1667, 8
        %v1697 = vpop.permute.xlu0 %1696
        %1698 = vrot.lane.b32.xlu0 %v1668, 8
        %v1699 = vpop.permute.xlu0 %1698
        %1700 = vrot.lane.b32.xlu0 %v1669, 8
        %v1701 = vpop.permute.xlu0 %1700
        %v1702 = vunpack.c.l.b16 %v870
        %v1703 = vunpack.c.l.b16 %v871
        %v1704 = vpack.c.b16 %v1703, %v1702
        %1705 = vrot.lane.b32.xlu0 %v1527, 12
        %v1706 = vpop.permute.xlu0 %1705
        %1707 = vrot.lane.b32.xlu0 %v1528, 12
        %v1708 = vpop.permute.xlu0 %1707
        %1709 = vrot.lane.b32.xlu0 %v1529, 12
        %v1710 = vpop.permute.xlu0 %1709
        %1711 = vrot.lane.b32.xlu0 %v1530, 12
        %v1712 = vpop.permute.xlu0 %1711
        %1713 = vrot.lane.b32.xlu0 %v1531, 12
        %v1714 = vpop.permute.xlu0 %1713
        %1715 = vrot.lane.b32.xlu0 %v1532, 12
        %v1716 = vpop.permute.xlu0 %1715
        %1717 = vrot.lane.b32.xlu0 %v1533, 12
        %v1718 = vpop.permute.xlu0 %1717
        %1719 = vrot.lane.b32.xlu0 %v1534, 12
        %v1720 = vpop.permute.xlu0 %1719
        %1721 = vrot.lane.b32.xlu0 %v1535, 12
        %v1722 = vpop.permute.xlu0 %1721
        %1723 = vrot.lane.b32.xlu0 %v1536, 12
        %v1724 = vpop.permute.xlu0 %1723
        %1725 = vrot.lane.b32.xlu0 %v1537, 12
        %v1726 = vpop.permute.xlu0 %1725
        %1727 = vrot.lane.b32.xlu0 %v1538, 12
        %v1728 = vpop.permute.xlu0 %1727
        %1729 = vrot.lane.b32.xlu0 %v1539, 12
        %v1730 = vpop.permute.xlu0 %1729
        %1731 = vrot.lane.b32.xlu0 %v1540, 12
        %v1732 = vpop.permute.xlu0 %1731
        %1733 = vrot.lane.b32.xlu0 %v1541, 12
        %v1734 = vpop.permute.xlu0 %1733
        %1735 = vrot.lane.b32.xlu0 %v1704, 12
        %v1736 = vpop.permute.xlu0 %1735
        %v1737 = vunpack.c.l.b16 %v1439
        %v1738 = vunpack.c.l.b16 %v1449
        %v1739 = vpack.c.b16 %v1738, %v1737
        %1740 = vrot.lane.b32.xlu0 %v1575, 16
        %v1741 = vpop.permute.xlu0 %1740
        %1742 = vrot.lane.b32.xlu0 %v1576, 16
        %v1743 = vpop.permute.xlu0 %1742
        %1744 = vrot.lane.b32.xlu0 %v1577, 16
        %v1745 = vpop.permute.xlu0 %1744
        %1746 = vrot.lane.b32.xlu0 %v1578, 16
        %v1747 = vpop.permute.xlu0 %1746
        %1748 = vrot.lane.b32.xlu0 %v1579, 16
        %v1749 = vpop.permute.xlu0 %1748
        %1750 = vrot.lane.b32.xlu0 %v1580, 16
        %v1751 = vpop.permute.xlu0 %1750
        %1752 = vrot.lane.b32.xlu0 %v1581, 16
        %v1753 = vpop.permute.xlu0 %1752
        %1754 = vrot.lane.b32.xlu0 %v1582, 16
        %v1755 = vpop.permute.xlu0 %1754
        %1756 = vrot.lane.b32.xlu0 %v1583, 16
        %v1757 = vpop.permute.xlu0 %1756
        %1758 = vrot.lane.b32.xlu0 %v1584, 16
        %v1759 = vpop.permute.xlu0 %1758
        %1760 = vrot.lane.b32.xlu0 %v1585, 16
        %v1761 = vpop.permute.xlu0 %1760
        %1762 = vrot.lane.b32.xlu0 %v1586, 16
        %v1763 = vpop.permute.xlu0 %1762
        %1764 = vrot.lane.b32.xlu0 %v1587, 16
        %v1765 = vpop.permute.xlu0 %1764
        %1766 = vrot.lane.b32.xlu0 %v1588, 16
        %v1767 = vpop.permute.xlu0 %1766
        %1768 = vrot.lane.b32.xlu0 %v1589, 16
        %v1769 = vpop.permute.xlu0 %1768
        %1770 = vrot.lane.b32.xlu0 %v1739, 16
        %v1771 = vpop.permute.xlu0 %1770
        %v1772 = vunpack.c.l.b16 %v1456
        %v1773 = vunpack.c.l.b16 %v1459
        %v1774 = vpack.c.b16 %v1773, %v1772
        %1775 = vrot.lane.b32.xlu0 %v1655, 20
        %v1776 = vpop.permute.xlu0 %1775
        %1777 = vrot.lane.b32.xlu0 %v1656, 20
        %v1778 = vpop.permute.xlu0 %1777
        %1779 = vrot.lane.b32.xlu0 %v1657, 20
        %v1780 = vpop.permute.xlu0 %1779
        %1781 = vrot.lane.b32.xlu0 %v1658, 20
        %v1782 = vpop.permute.xlu0 %1781
        %1783 = vrot.lane.b32.xlu0 %v1659, 20
        %v1784 = vpop.permute.xlu0 %1783
        %1785 = vrot.lane.b32.xlu0 %v1660, 20
        %v1786 = vpop.permute.xlu0 %1785
        %1787 = vrot.lane.b32.xlu0 %v1661, 20
        %v1788 = vpop.permute.xlu0 %1787
        %1789 = vrot.lane.b32.xlu0 %v1662, 20
        %v1790 = vpop.permute.xlu0 %1789
        %1791 = vrot.lane.b32.xlu0 %v1663, 20
        %v1792 = vpop.permute.xlu0 %1791
        %1793 = vrot.lane.b32.xlu0 %v1664, 20
        %v1794 = vpop.permute.xlu0 %1793
        %1795 = vrot.lane.b32.xlu0 %v1665, 20
        %v1796 = vpop.permute.xlu0 %1795
        %1797 = vrot.lane.b32.xlu0 %v1666, 20
        %v1798 = vpop.permute.xlu0 %1797
        %1799 = vrot.lane.b32.xlu0 %v1667, 20
        %v1800 = vpop.permute.xlu0 %1799
        %1801 = vrot.lane.b32.xlu0 %v1668, 20
        %v1802 = vpop.permute.xlu0 %1801
        %1803 = vrot.lane.b32.xlu0 %v1669, 20
        %v1804 = vpop.permute.xlu0 %1803
        %1805 = vrot.lane.b32.xlu0 %v1774, 20
        %v1806 = vpop.permute.xlu0 %1805
        %v1807 = vunpack.c.l.b16 %v873
        %v1808 = vunpack.c.l.b16 %v874
        %v1809 = vpack.c.b16 %v1808, %v1807
        %1810 = vrot.lane.b32.xlu0 %v1528, 24
        %v1811 = vpop.permute.xlu0 %1810
        %1812 = vrot.lane.b32.xlu0 %v1529, 24
        %v1813 = vpop.permute.xlu0 %1812
        %1814 = vrot.lane.b32.xlu0 %v1530, 24
        %v1815 = vpop.permute.xlu0 %1814
        %1816 = vrot.lane.b32.xlu0 %v1531, 24
        %v1817 = vpop.permute.xlu0 %1816
        %1818 = vrot.lane.b32.xlu0 %v1532, 24
        %v1819 = vpop.permute.xlu0 %1818
        %1820 = vrot.lane.b32.xlu0 %v1533, 24
        %v1821 = vpop.permute.xlu0 %1820
        %1822 = vrot.lane.b32.xlu0 %v1534, 24
        %v1823 = vpop.permute.xlu0 %1822
        %1824 = vrot.lane.b32.xlu0 %v1535, 24
        %v1825 = vpop.permute.xlu0 %1824
        %1826 = vrot.lane.b32.xlu0 %v1536, 24
        %v1827 = vpop.permute.xlu0 %1826
        %1828 = vrot.lane.b32.xlu0 %v1537, 24
        %v1829 = vpop.permute.xlu0 %1828
        %1830 = vrot.lane.b32.xlu0 %v1538, 24
        %v1831 = vpop.permute.xlu0 %1830
        %1832 = vrot.lane.b32.xlu0 %v1539, 24
        %v1833 = vpop.permute.xlu0 %1832
        %1834 = vrot.lane.b32.xlu0 %v1540, 24
        %v1835 = vpop.permute.xlu0 %1834
        %1836 = vrot.lane.b32.xlu0 %v1541, 24
        %v1837 = vpop.permute.xlu0 %1836
        %1838 = vrot.lane.b32.xlu0 %v1704, 24
        %v1839 = vpop.permute.xlu0 %1838
        %1840 = vrot.lane.b32.xlu0 %v1809, 24
        %v1841 = vpop.permute.xlu0 %1840
        %v1842 = vunpack.c.l.b16 %v1473
        %v1843 = vunpack.c.l.b16 %v1483
        %v1844 = vpack.c.b16 %v1843, %v1842
        %1845 = vrot.lane.b32.xlu0 %v1576, 28
        %v1846 = vpop.permute.xlu0 %1845
        %1847 = vrot.lane.b32.xlu0 %v1577, 28
        %v1848 = vpop.permute.xlu0 %1847
        %1849 = vrot.lane.b32.xlu0 %v1578, 28
        %v1850 = vpop.permute.xlu0 %1849
        %1851 = vrot.lane.b32.xlu0 %v1579, 28
        %v1852 = vpop.permute.xlu0 %1851
        %1853 = vrot.lane.b32.xlu0 %v1580, 28
        %v1854 = vpop.permute.xlu0 %1853
        %1855 = vrot.lane.b32.xlu0 %v1581, 28
        %v1856 = vpop.permute.xlu0 %1855
        %1857 = vrot.lane.b32.xlu0 %v1582, 28
        %v1858 = vpop.permute.xlu0 %1857
        %1859 = vrot.lane.b32.xlu0 %v1583, 28
        %v1860 = vpop.permute.xlu0 %1859
        %1861 = vrot.lane.b32.xlu0 %v1584, 28
        %v1862 = vpop.permute.xlu0 %1861
        %1863 = vrot.lane.b32.xlu0 %v1585, 28
        %v1864 = vpop.permute.xlu0 %1863
        %1865 = vrot.lane.b32.xlu0 %v1586, 28
        %v1866 = vpop.permute.xlu0 %1865
        %1867 = vrot.lane.b32.xlu0 %v1587, 28
        %v1868 = vpop.permute.xlu0 %1867
        %1869 = vrot.lane.b32.xlu0 %v1588, 28
        %v1870 = vpop.permute.xlu0 %1869
        %1871 = vrot.lane.b32.xlu0 %v1589, 28
        %v1872 = vpop.permute.xlu0 %1871
        %1873 = vrot.lane.b32.xlu0 %v1739, 28
        %v1874 = vpop.permute.xlu0 %1873
        %1875 = vrot.lane.b32.xlu0 %v1844, 28
        %v1876 = vpop.permute.xlu0 %1875
        %v1877 = vunpack.c.l.b16 %v1490
        %v1878 = vunpack.c.l.b16 %v1493
        %v1879 = vpack.c.b16 %v1878, %v1877
        %1880 = vrot.lane.b32.xlu0 %v1656, 32
        %v1881 = vpop.permute.xlu0 %1880
        %1882 = vrot.lane.b32.xlu0 %v1657, 32
        %v1883 = vpop.permute.xlu0 %1882
        %1884 = vrot.lane.b32.xlu0 %v1658, 32
        %v1885 = vpop.permute.xlu0 %1884
        %1886 = vrot.lane.b32.xlu0 %v1659, 32
        %v1887 = vpop.permute.xlu0 %1886
        %1888 = vrot.lane.b32.xlu0 %v1660, 32
        %v1889 = vpop.permute.xlu0 %1888
        %1890 = vrot.lane.b32.xlu0 %v1661, 32
        %v1891 = vpop.permute.xlu0 %1890
        %1892 = vrot.lane.b32.xlu0 %v1662, 32
        %v1893 = vpop.permute.xlu0 %1892
        %1894 = vrot.lane.b32.xlu0 %v1663, 32
        %v1895 = vpop.permute.xlu0 %1894
        %1896 = vrot.lane.b32.xlu0 %v1664, 32
        %v1897 = vpop.permute.xlu0 %1896
        %1898 = vrot.lane.b32.xlu0 %v1665, 32
        %v1899 = vpop.permute.xlu0 %1898
        %1900 = vrot.lane.b32.xlu0 %v1666, 32
        %v1901 = vpop.permute.xlu0 %1900
        %1902 = vrot.lane.b32.xlu0 %v1667, 32
        %v1903 = vpop.permute.xlu0 %1902
        %1904 = vrot.lane.b32.xlu0 %v1668, 32
        %v1905 = vpop.permute.xlu0 %1904
        %1906 = vrot.lane.b32.xlu0 %v1669, 32
        %v1907 = vpop.permute.xlu0 %1906
        %1908 = vrot.lane.b32.xlu0 %v1774, 32
        %v1909 = vpop.permute.xlu0 %1908
        %1910 = vrot.lane.b32.xlu0 %v1879, 32
        %v1911 = vpop.permute.xlu0 %1910
        %vm1912 = vcmask 31744
        %v1915 = vsel %vm1912, %v1526, %v1591
        %v1918 = vsel %vm1912, %v1527, %v1593
        %v1921 = vsel %vm1912, %v1528, %v1595
        %v1924 = vsel %vm1912, %v1529, %v1597
        %v1927 = vsel %vm1912, %v1530, %v1599
        %v1930 = vsel %vm1912, %v1531, %v1601
        %v1933 = vsel %vm1912, %v1532, %v1603
        %v1936 = vsel %vm1912, %v1533, %v1605
        %v1939 = vsel %vm1912, %v1534, %v1607
        %v1942 = vsel %vm1912, %v1535, %v1609
        %v1945 = vsel %vm1912, %v1536, %v1611
        %v1948 = vsel %vm1912, %v1537, %v1613
        %v1951 = vsel %vm1912, %v1538, %v1615
        %v1954 = vsel %vm1912, %v1539, %v1617
        %v1957 = vsel %vm1912, %v1540, %v1619
        %v1960 = vsel %vm1912, %v1541, %v1621
        %vm1961 = vcmask 64512
        %v1963 = vsel %vm1961, %v1915, %v1671
        %v1965 = vsel %vm1961, %v1918, %v1673
        %v1967 = vsel %vm1961, %v1921, %v1675
        %v1969 = vsel %vm1961, %v1924, %v1677
        %v1971 = vsel %vm1961, %v1927, %v1679
        %v1973 = vsel %vm1961, %v1930, %v1681
        %v1975 = vsel %vm1961, %v1933, %v1683
        %v1977 = vsel %vm1961, %v1936, %v1685
        %v1979 = vsel %vm1961, %v1939, %v1687
        %v1981 = vsel %vm1961, %v1942, %v1689
        %v1983 = vsel %vm1961, %v1945, %v1691
        %v1985 = vsel %vm1961, %v1948, %v1693
        %v1987 = vsel %vm1961, %v1951, %v1695
        %v1989 = vsel %vm1961, %v1954, %v1697
        %v1991 = vsel %vm1961, %v1957, %v1699
        %v1993 = vsel %vm1961, %v1960, %v1701
        %vm1994 = vcmask 97280
        %v1996 = vsel %vm1994, %v1963, %v1706
        %v1998 = vsel %vm1994, %v1965, %v1708
        %v2000 = vsel %vm1994, %v1967, %v1710
        %v2002 = vsel %vm1994, %v1969, %v1712
        %v2004 = vsel %vm1994, %v1971, %v1714
        %v2006 = vsel %vm1994, %v1973, %v1716
        %v2008 = vsel %vm1994, %v1975, %v1718
        %v2010 = vsel %vm1994, %v1977, %v1720
        %v2012 = vsel %vm1994, %v1979, %v1722
        %v2014 = vsel %vm1994, %v1981, %v1724
        %v2016 = vsel %vm1994, %v1983, %v1726
        %v2018 = vsel %vm1994, %v1985, %v1728
        %v2020 = vsel %vm1994, %v1987, %v1730
        %v2022 = vsel %vm1994, %v1989, %v1732
        %v2024 = vsel %vm1994, %v1991, %v1734
        %v2026 = vsel %vm1994, %v1993, %v1736
        %vm2027 = vcmask 130048
        %v2029 = vsel %vm2027, %v1996, %v1741
        %v2031 = vsel %vm2027, %v1998, %v1743
        %v2033 = vsel %vm2027, %v2000, %v1745
        %v2035 = vsel %vm2027, %v2002, %v1747
        %v2037 = vsel %vm2027, %v2004, %v1749
        %v2039 = vsel %vm2027, %v2006, %v1751
        %v2041 = vsel %vm2027, %v2008, %v1753
        %v2043 = vsel %vm2027, %v2010, %v1755
        %v2045 = vsel %vm2027, %v2012, %v1757
        %v2047 = vsel %vm2027, %v2014, %v1759
        %v2049 = vsel %vm2027, %v2016, %v1761
        %v2051 = vsel %vm2027, %v2018, %v1763
        %v2053 = vsel %vm2027, %v2020, %v1765
        %v2055 = vsel %vm2027, %v2022, %v1767
        %v2057 = vsel %vm2027, %v2024, %v1769
        %v2059 = vsel %vm2027, %v2026, %v1771
        %vm2060 = vcmask 162816
        %v2062 = vsel %vm2060, %v2029, %v1776
        %v2064 = vsel %vm2060, %v2031, %v1778
        %v2066 = vsel %vm2060, %v2033, %v1780
        %v2068 = vsel %vm2060, %v2035, %v1782
        %v2070 = vsel %vm2060, %v2037, %v1784
        %v2072 = vsel %vm2060, %v2039, %v1786
        %v2074 = vsel %vm2060, %v2041, %v1788
        %v2076 = vsel %vm2060, %v2043, %v1790
        %v2078 = vsel %vm2060, %v2045, %v1792
        %v2080 = vsel %vm2060, %v2047, %v1794
        %v2082 = vsel %vm2060, %v2049, %v1796
        %v2084 = vsel %vm2060, %v2051, %v1798
        %v2086 = vsel %vm2060, %v2053, %v1800
        %v2088 = vsel %vm2060, %v2055, %v1802
        %v2090 = vsel %vm2060, %v2057, %v1804
        %v2092 = vsel %vm2060, %v2059, %v1806
        %vm2093 = vcmask 195584
        %v2095 = vsel %vm2093, %v2062, %v1811
        %v2097 = vsel %vm2093, %v2064, %v1813
        %v2099 = vsel %vm2093, %v2066, %v1815
        %v2101 = vsel %vm2093, %v2068, %v1817
        %v2103 = vsel %vm2093, %v2070, %v1819
        %v2105 = vsel %vm2093, %v2072, %v1821
        %v2107 = vsel %vm2093, %v2074, %v1823
        %v2109 = vsel %vm2093, %v2076, %v1825
        %v2111 = vsel %vm2093, %v2078, %v1827
        %v2113 = vsel %vm2093, %v2080, %v1829
        %v2115 = vsel %vm2093, %v2082, %v1831
        %v2117 = vsel %vm2093, %v2084, %v1833
        %v2119 = vsel %vm2093, %v2086, %v1835
        %v2121 = vsel %vm2093, %v2088, %v1837
        %v2123 = vsel %vm2093, %v2090, %v1839
        %v2125 = vsel %vm2093, %v2092, %v1841
        %vm2126 = vcmask 228352
        %v2128 = vsel %vm2126, %v2095, %v1846
        %v2130 = vsel %vm2126, %v2097, %v1848
        %v2132 = vsel %vm2126, %v2099, %v1850
        %v2134 = vsel %vm2126, %v2101, %v1852
        %v2136 = vsel %vm2126, %v2103, %v1854
        %v2138 = vsel %vm2126, %v2105, %v1856
        %v2140 = vsel %vm2126, %v2107, %v1858
        %v2142 = vsel %vm2126, %v2109, %v1860
        %v2144 = vsel %vm2126, %v2111, %v1862
        %v2146 = vsel %vm2126, %v2113, %v1864
        %v2148 = vsel %vm2126, %v2115, %v1866
        %v2150 = vsel %vm2126, %v2117, %v1868
        %v2152 = vsel %vm2126, %v2119, %v1870
        %v2154 = vsel %vm2126, %v2121, %v1872
        %v2156 = vsel %vm2126, %v2123, %v1874
        %v2158 = vsel %vm2126, %v2125, %v1876
        %vm2159 = vcmask 261120
        %v2161 = vsel %vm2159, %v2128, %v1881
        %v2163 = vsel %vm2159, %v2130, %v1883
        %v2165 = vsel %vm2159, %v2132, %v1885
        %v2167 = vsel %vm2159, %v2134, %v1887
        %v2169 = vsel %vm2159, %v2136, %v1889
        %v2171 = vsel %vm2159, %v2138, %v1891
        %v2173 = vsel %vm2159, %v2140, %v1893
        %v2175 = vsel %vm2159, %v2142, %v1895
        %v2177 = vsel %vm2159, %v2144, %v1897
        %v2179 = vsel %vm2159, %v2146, %v1899
        %v2181 = vsel %vm2159, %v2148, %v1901
        %v2183 = vsel %vm2159, %v2150, %v1903
        %v2185 = vsel %vm2159, %v2152, %v1905
        %v2187 = vsel %vm2159, %v2154, %v1907
        %v2189 = vsel %vm2159, %v2156, %v1909
        %v2191 = vsel %vm2159, %v2158, %v1911
        %v2192 = vld [vmem:[%s1] sm:$0xf]
        %v2193 = vld [vmem:[%s1 + $0x4] sm:$0xf]
        %v2194 = vld [vmem:[%s1 + $0x8] sm:$0xf]
        %v2195 = vld [vmem:[%s1 + $0xc] sm:$0xf]
        %v2196 = vld [vmem:[%s1 + $0x10] sm:$0x3]
        %v2202 = vunpack.c.l.b16 %v2192
        %v2203 = vunpack.c.l.b16 %v2193
        %v2204 = vunpack.c.l.b16 %v2194
        %v2205 = vunpack.c.l.b16 %v2195
        %v2206 = vunpack.c.l.b16 %v2196
        %v2207 = vpack.c.b16 %v2203, %v2202
        %v2208 = vpack.c.b16 %v2205, %v2204
        %v2209 = vpack.c.b16 %v2206, %v2206
        %vm2212 = vcmask 293888
        %v2213 = vsel %vm2212, %v2161, 0
        %v2215 = vsel %vm2212, %v2163, 0
        %v2217 = vsel %vm2212, %v2165, 0
        %v2219 = vsel %vm2212, %v2167, 0
        %v2221 = vsel %vm2212, %v2169, 0
        %v2223 = vsel %vm2212, %v2171, 0
        %v2225 = vsel %vm2212, %v2173, 0
        %v2227 = vsel %vm2212, %v2175, 0
        %v2229 = vsel %vm2212, %v2177, 0
        %v2231 = vsel %vm2212, %v2179, 0
        %v2233 = vsel %vm2212, %v2181, 0
        %v2235 = vsel %vm2212, %v2183, 0
        %v2237 = vsel %vm2212, %v2185, 0
        %v2239 = vsel %vm2212, %v2187, 0
        %v2241 = vsel %vm2212, %v2189, 0
        %v2243 = vsel %vm2212, %v2191, 0
        %vm2245 = vcmask 1041408
        %v2247 = vsel %vm2245, %v2209, 0
        %2249 = vmatprep.subr.bf16.mxu0 0
        %2250 = vmatpush1.bf16.msra.mxu0 %v2207
        %2251 = vmatprep.subr.bf16.mxu0 0
        %2252 = vmatpush1.bf16.msra.mxu0 %v2208
        %2253 = vmatprep.subr.bf16.mxu0 0
        %2254 = vmatpush1.bf16.msra.mxu0 %v2247
        %2255 = vmatprep.subr.bf16.mxu0 0
        %2256 = vmatpush1.bf16.msra.mxu0 0
        %2257 = vmatprep.subr.bf16.mxu0 0
        %2258 = vmatpush1.bf16.msra.mxu0 0
        %2259 = vmatprep.subr.bf16.mxu0 0
        %2260 = vmatpush1.bf16.msra.mxu0 0
        %2261 = vmatprep.subr.bf16.mxu0 0
        %2262 = vmatpush1.bf16.msra.mxu0 0
        %2263 = vmatprep.subr.bf16.mxu0 0
        %2264 = vmatpush1.bf16.msra.mxu0 0
        %2265 = vmatprep.subr.bf16.mxu0 0
        %2266 = vmatpush1.bf16.msra.mxu0 0
        %2267 = vmatprep.subr.bf16.mxu0 0
        %2268 = vmatpush1.bf16.msra.mxu0 0
        %2269 = vmatprep.subr.bf16.mxu0 0
        %2270 = vmatpush1.bf16.msra.mxu0 0
        %2271 = vmatprep.subr.bf16.mxu0 0
        %2272 = vmatpush1.bf16.msra.mxu0 0
        %2273 = vmatprep.subr.bf16.mxu0 0
        %2274 = vmatpush1.bf16.msra.mxu0 0
        %2275 = vmatprep.subr.bf16.mxu0 0
        %2276 = vmatpush1.bf16.msra.mxu0 0
        %2277 = vmatprep.subr.bf16.mxu0 0
        %2278 = vmatpush1.bf16.msra.mxu0 0
        %2279 = vmatprep.subr.bf16.mxu0 0
        %2280 = vmatpush1.bf16.msra.mxu0 0
        %2281 = vmatprep.mubr.bf16.mxu0 0
        %2282 = vmatmul.mubr.bf16.gmra.mrb[0].mxu0 %v2213
        %v2283 = vpop.f32.mrb[0].mxu0
        %v2284 = vadd.f32 0.0, %v2283
        %v2285 = vpop.f32.mrb[0].mxu0
        %v2286 = vpop.f32.mrb[0].mxu0
        %v2287 = vadd.f32 0.0, %v2286
        %v2288 = vpop.f32.mrb[0].mxu0
        %2289 = vmatprep.mubr.bf16.mxu0 0
        %2290 = vmatmul.mubr.bf16.gmra.mrb[0].mxu0 %v2215
        %v2291 = vpop.f32.mrb[0].mxu0
        %v2292 = vadd.f32 0.0, %v2291
        %v2293 = vpop.f32.mrb[0].mxu0
        %v2294 = vpop.f32.mrb[0].mxu0
        %v2295 = vadd.f32 0.0, %v2294
        %v2296 = vpop.f32.mrb[0].mxu0
        %2297 = vmatprep.mubr.bf16.mxu0 0
        %2298 = vmatmul.mubr.bf16.gmra.mrb[0].mxu0 %v2217
        %v2299 = vpop.f32.mrb[0].mxu0
        %v2300 = vadd.f32 0.0, %v2299
        %v2301 = vpop.f32.mrb[0].mxu0
        %v2302 = vpop.f32.mrb[0].mxu0
        %v2303 = vadd.f32 0.0, %v2302
        %v2304 = vpop.f32.mrb[0].mxu0
        %2305 = vmatprep.mubr.bf16.mxu0 0
        %2306 = vmatmul.mubr.bf16.gmra.mrb[0].mxu0 %v2219
        %v2307 = vpop.f32.mrb[0].mxu0
        %v2308 = vadd.f32 0.0, %v2307
        %v2309 = vpop.f32.mrb[0].mxu0
        %v2310 = vpop.f32.mrb[0].mxu0
        %v2311 = vadd.f32 0.0, %v2310
        %v2312 = vpop.f32.mrb[0].mxu0
        %2313 = vmatprep.mubr.bf16.mxu0 0
        %2314 = vmatmul.mubr.bf16.gmra.mrb[0].mxu0 %v2221
        %v2315 = vpop.f32.mrb[0].mxu0
        %v2316 = vadd.f32 0.0, %v2315
        %v2317 = vpop.f32.mrb[0].mxu0
        %v2318 = vpop.f32.mrb[0].mxu0
        %v2319 = vadd.f32 0.0, %v2318
        %v2320 = vpop.f32.mrb[0].mxu0
        %2321 = vmatprep.mubr.bf16.mxu0 0
        %2322 = vmatmul.mubr.bf16.gmra.mrb[0].mxu0 %v2223
        %v2323 = vpop.f32.mrb[0].mxu0
        %v2324 = vadd.f32 0.0, %v2323
        %v2325 = vpop.f32.mrb[0].mxu0
        %v2326 = vpop.f32.mrb[0].mxu0
        %v2327 = vadd.f32 0.0, %v2326
        %v2328 = vpop.f32.mrb[0].mxu0
        %2329 = vmatprep.mubr.bf16.mxu0 0
        %2330 = vmatmul.mubr.bf16.gmra.mrb[0].mxu0 %v2225
        %v2331 = vpop.f32.mrb[0].mxu0
        %v2332 = vadd.f32 0.0, %v2331
        %v2333 = vpop.f32.mrb[0].mxu0
        %v2334 = vpop.f32.mrb[0].mxu0
        %v2335 = vadd.f32 0.0, %v2334
        %v2336 = vpop.f32.mrb[0].mxu0
        %2337 = vmatprep.mubr.bf16.mxu0 0
        %2338 = vmatmul.mubr.bf16.gmra.mrb[0].mxu0 %v2227
        %v2339 = vpop.f32.mrb[0].mxu0
        %v2340 = vadd.f32 0.0, %v2339
        %v2341 = vpop.f32.mrb[0].mxu0
        %v2342 = vpop.f32.mrb[0].mxu0
        %v2343 = vadd.f32 0.0, %v2342
        %v2344 = vpop.f32.mrb[0].mxu0
        %2345 = vmatprep.mubr.bf16.mxu0 0
        %2346 = vmatmul.mubr.bf16.gmra.mrb[0].mxu0 %v2229
        %v2347 = vpop.f32.mrb[0].mxu0
        %v2348 = vadd.f32 0.0, %v2347
        %v2349 = vpop.f32.mrb[0].mxu0
        %v2350 = vpop.f32.mrb[0].mxu0
        %v2351 = vadd.f32 0.0, %v2350
        %v2352 = vpop.f32.mrb[0].mxu0
        %2353 = vmatprep.mubr.bf16.mxu0 0
        %2354 = vmatmul.mubr.bf16.gmra.mrb[0].mxu0 %v2231
        %v2355 = vpop.f32.mrb[0].mxu0
        %v2356 = vadd.f32 0.0, %v2355
        %v2357 = vpop.f32.mrb[0].mxu0
        %v2358 = vpop.f32.mrb[0].mxu0
        %v2359 = vadd.f32 0.0, %v2358
        %v2360 = vpop.f32.mrb[0].mxu0
        %2361 = vmatprep.mubr.bf16.mxu0 0
        %2362 = vmatmul.mubr.bf16.gmra.mrb[0].mxu0 %v2233
        %v2363 = vpop.f32.mrb[0].mxu0
        %v2364 = vadd.f32 0.0, %v2363
        %v2365 = vpop.f32.mrb[0].mxu0
        %v2366 = vpop.f32.mrb[0].mxu0
        %v2367 = vadd.f32 0.0, %v2366
        %v2368 = vpop.f32.mrb[0].mxu0
        %2369 = vmatprep.mubr.bf16.mxu0 0
        %2370 = vmatmul.mubr.bf16.gmra.mrb[0].mxu0 %v2235
        %v2371 = vpop.f32.mrb[0].mxu0
        %v2372 = vadd.f32 0.0, %v2371
        %v2373 = vpop.f32.mrb[0].mxu0
        %v2374 = vpop.f32.mrb[0].mxu0
        %v2375 = vadd.f32 0.0, %v2374
        %v2376 = vpop.f32.mrb[0].mxu0
        %2377 = vmatprep.mubr.bf16.mxu0 0
        %2378 = vmatmul.mubr.bf16.gmra.mrb[0].mxu0 %v2237
        %v2379 = vpop.f32.mrb[0].mxu0
        %v2380 = vadd.f32 0.0, %v2379
        %v2381 = vpop.f32.mrb[0].mxu0
        %v2382 = vpop.f32.mrb[0].mxu0
        %v2383 = vadd.f32 0.0, %v2382
        %v2384 = vpop.f32.mrb[0].mxu0
        %2385 = vmatprep.mubr.bf16.mxu0 0
        %2386 = vmatmul.mubr.bf16.gmra.mrb[0].mxu0 %v2239
        %v2387 = vpop.f32.mrb[0].mxu0
        %v2388 = vadd.f32 0.0, %v2387
        %v2389 = vpop.f32.mrb[0].mxu0
        %v2390 = vpop.f32.mrb[0].mxu0
        %v2391 = vadd.f32 0.0, %v2390
        %v2392 = vpop.f32.mrb[0].mxu0
        %2393 = vmatprep.mubr.bf16.mxu0 0
        %2394 = vmatmul.mubr.bf16.gmra.mrb[0].mxu0 %v2241
        %v2395 = vpop.f32.mrb[0].mxu0
        %v2396 = vadd.f32 0.0, %v2395
        %v2397 = vpop.f32.mrb[0].mxu0
        %v2398 = vpop.f32.mrb[0].mxu0
        %v2399 = vadd.f32 0.0, %v2398
        %v2400 = vpop.f32.mrb[0].mxu0
        %2401 = vmatprep.mubr.bf16.mxu0 0
        %2402 = vmatmul.mubr.bf16.gmra.mrb[0].mxu0 %v2243
        %v2403 = vpop.f32.mrb[0].mxu0
        %v2404 = vadd.f32 0.0, %v2403
        %v2405 = vpop.f32.mrb[0].mxu0
        %v2406 = vpop.f32.mrb[0].mxu0
        %v2407 = vadd.f32 0.0, %v2406
        %v2408 = vpop.f32.mrb[0].mxu0
        %2409 = vdwg.mxu0
        %v2410 = vld [vmem:[%s2] sm:$0x1]
        %v2412 = vlaneseq
        %v2413 = vshrl.u32 %v2412, 7
        %v2414 = vsub.s32 0, %v2413
        %v2415 = vrot.slane %v2410, %v2414
        %v2417 = vmul.f32 %v2284, %v2415
        %v2418 = vmul.f32 %v2287, %v2415
        %v2419 = vmul.f32 %v2292, %v2415
        %v2420 = vmul.f32 %v2295, %v2415
        %v2421 = vmul.f32 %v2300, %v2415
        %v2422 = vmul.f32 %v2303, %v2415
        %v2423 = vmul.f32 %v2308, %v2415
        %v2424 = vmul.f32 %v2311, %v2415
        %v2425 = vmul.f32 %v2316, %v2415
        %v2426 = vmul.f32 %v2319, %v2415
        %v2427 = vmul.f32 %v2324, %v2415
        %v2428 = vmul.f32 %v2327, %v2415
        %v2429 = vmul.f32 %v2332, %v2415
        %v2430 = vmul.f32 %v2335, %v2415
        %v2431 = vmul.f32 %v2340, %v2415
        %v2432 = vmul.f32 %v2343, %v2415
        %v2433 = vmul.f32 %v2348, %v2415
        %v2434 = vmul.f32 %v2351, %v2415
        %v2435 = vmul.f32 %v2356, %v2415
        %v2436 = vmul.f32 %v2359, %v2415
        %v2437 = vmul.f32 %v2364, %v2415
        %v2438 = vmul.f32 %v2367, %v2415
        %v2439 = vmul.f32 %v2372, %v2415
        %v2440 = vmul.f32 %v2375, %v2415
        %v2441 = vmul.f32 %v2380, %v2415
        %v2442 = vmul.f32 %v2383, %v2415
        %v2443 = vmul.f32 %v2388, %v2415
        %v2444 = vmul.f32 %v2391, %v2415
        %v2445 = vmul.f32 %v2396, %v2415
        %v2446 = vmul.f32 %v2399, %v2415
        %v2447 = vmul.f32 %v2404, %v2415
        %v2448 = vmul.f32 %v2407, %v2415
        %v2449 = vld [vmem:[%s3] sm:$0x1]
        %v2451 = vlaneseq
        %v2452 = vshrl.u32 %v2451, 7
        %v2453 = vsub.s32 0, %v2452
        %v2454 = vrot.slane %v2449, %v2453
        %v2456 = vadd.f32 %v2417, %v2454
        %v2457 = vadd.f32 %v2418, %v2454
        %v2458 = vadd.f32 %v2419, %v2454
        %v2459 = vadd.f32 %v2420, %v2454
        %v2460 = vadd.f32 %v2421, %v2454
        %v2461 = vadd.f32 %v2422, %v2454
        %v2462 = vadd.f32 %v2423, %v2454
        %v2463 = vadd.f32 %v2424, %v2454
        %v2464 = vadd.f32 %v2425, %v2454
        %v2465 = vadd.f32 %v2426, %v2454
        %v2466 = vadd.f32 %v2427, %v2454
        %v2467 = vadd.f32 %v2428, %v2454
        %v2468 = vadd.f32 %v2429, %v2454
        %v2469 = vadd.f32 %v2430, %v2454
        %v2470 = vadd.f32 %v2431, %v2454
        %v2471 = vadd.f32 %v2432, %v2454
        %v2472 = vadd.f32 %v2433, %v2454
        %v2473 = vadd.f32 %v2434, %v2454
        %v2474 = vadd.f32 %v2435, %v2454
        %v2475 = vadd.f32 %v2436, %v2454
        %v2476 = vadd.f32 %v2437, %v2454
        %v2477 = vadd.f32 %v2438, %v2454
        %v2478 = vadd.f32 %v2439, %v2454
        %v2479 = vadd.f32 %v2440, %v2454
        %v2480 = vadd.f32 %v2441, %v2454
        %v2481 = vadd.f32 %v2442, %v2454
        %v2482 = vadd.f32 %v2443, %v2454
        %v2483 = vadd.f32 %v2444, %v2454
        %v2484 = vadd.f32 %v2445, %v2454
        %v2485 = vadd.f32 %v2446, %v2454
        %v2486 = vadd.f32 %v2447, %v2454
        %v2487 = vadd.f32 %v2448, %v2454
        %v2488 = vmax.f32 %v2456, 0.0
        %v2489 = vmax.f32 %v2457, 0.0
        %v2490 = vmax.f32 %v2458, 0.0
        %v2491 = vmax.f32 %v2459, 0.0
        %v2492 = vmax.f32 %v2460, 0.0
        %v2493 = vmax.f32 %v2461, 0.0
        %v2494 = vmax.f32 %v2462, 0.0
        %v2495 = vmax.f32 %v2463, 0.0
        %v2496 = vmax.f32 %v2464, 0.0
        %v2497 = vmax.f32 %v2465, 0.0
        %v2498 = vmax.f32 %v2466, 0.0
        %v2499 = vmax.f32 %v2467, 0.0
        %v2500 = vmax.f32 %v2468, 0.0
        %v2501 = vmax.f32 %v2469, 0.0
        %v2502 = vmax.f32 %v2470, 0.0
        %v2503 = vmax.f32 %v2471, 0.0
        %v2504 = vmax.f32 %v2472, 0.0
        %v2505 = vmax.f32 %v2473, 0.0
        %v2506 = vmax.f32 %v2474, 0.0
        %v2507 = vmax.f32 %v2475, 0.0
        %v2508 = vmax.f32 %v2476, 0.0
        %v2509 = vmax.f32 %v2477, 0.0
        %v2510 = vmax.f32 %v2478, 0.0
        %v2511 = vmax.f32 %v2479, 0.0
        %v2512 = vmax.f32 %v2480, 0.0
        %v2513 = vmax.f32 %v2481, 0.0
        %v2514 = vmax.f32 %v2482, 0.0
        %v2515 = vmax.f32 %v2483, 0.0
        %v2516 = vmax.f32 %v2484, 0.0
        %v2517 = vmax.f32 %v2485, 0.0
        %v2518 = vmax.f32 %v2486, 0.0
        %v2519 = vmax.f32 %v2487, 0.0
        %v2520 = vpack.c.bf16 %v2489, %v2488
        %v2521 = vpack.c.bf16 %v2491, %v2490
        %v2522 = vpack.c.bf16 %v2493, %v2492
        %v2523 = vpack.c.bf16 %v2495, %v2494
        %v2524 = vpack.c.bf16 %v2497, %v2496
        %v2525 = vpack.c.bf16 %v2499, %v2498
        %v2526 = vpack.c.bf16 %v2501, %v2500
        %v2527 = vpack.c.bf16 %v2503, %v2502
        %v2528 = vpack.c.bf16 %v2505, %v2504
        %v2529 = vpack.c.bf16 %v2507, %v2506
        %v2530 = vpack.c.bf16 %v2509, %v2508
        %v2531 = vpack.c.bf16 %v2511, %v2510
        %v2532 = vpack.c.bf16 %v2513, %v2512
        %v2533 = vpack.c.bf16 %v2515, %v2514
        %v2534 = vpack.c.bf16 %v2517, %v2516
        %v2535 = vpack.c.bf16 %v2519, %v2518
        %2536 = vst [vmem:[#allocation3] sm:$0xf] 0
        %2537 = vst [vmem:[#allocation3 + $0x4] sm:$0xf] 0
        %2538 = vst [vmem:[#allocation3 + $0x8] sm:$0x1] 0
        %2539 = vst [vmem:[#allocation3 + $0xc] sm:$0xf] 0
        %2540 = vst [vmem:[#allocation3 + $0x10] sm:$0xf] 0
        %2541 = vst [vmem:[#allocation3 + $0x14] sm:$0x1] 0
        %2542 = vst [vmem:[#allocation3 + $0x18] sm:$0xf] 0
        %2543 = vst [vmem:[#allocation3 + $0x1c] sm:$0xf] 0
        %2544 = vst [vmem:[#allocation3 + $0x20] sm:$0x1] 0
        %2545 = vst [vmem:[#allocation3 + $0x24] sm:$0xf] 0
        %2546 = vst [vmem:[#allocation3 + $0x28] sm:$0xf] 0
        %2547 = vst [vmem:[#allocation3 + $0x2c] sm:$0x1] 0
        %2548 = vst [vmem:[#allocation3 + $0x30] sm:$0xf] 0
        %2549 = vst [vmem:[#allocation3 + $0x34] sm:$0xf] 0
        %2550 = vst [vmem:[#allocation3 + $0x38] sm:$0x1] 0
        %2551 = vst [vmem:[#allocation3 + $0x3c] sm:$0xf] 0
        %2552 = vst [vmem:[#allocation3 + $0x40] sm:$0xf] 0
        %2553 = vst [vmem:[#allocation3 + $0x44] sm:$0x1] 0
        %2554 = vst [vmem:[#allocation3 + $0x48] sm:$0xf] 0
        %2555 = vst [vmem:[#allocation3 + $0x4c] sm:$0xf] 0
        %2556 = vst [vmem:[#allocation3 + $0x50] sm:$0x1] 0
        %2557 = vst [vmem:[#allocation3 + $0x54] sm:$0xf] 0
        %2558 = vst [vmem:[#allocation3 + $0x58] sm:$0xf] 0
        %2559 = vst [vmem:[#allocation3 + $0x5c] sm:$0x1] 0
        %2560 = vst [vmem:[#allocation3 + $0x60] sm:$0xf] 0
        %2561 = vst [vmem:[#allocation3 + $0x64] sm:$0xf] 0
        %2562 = vst [vmem:[#allocation3 + $0x68] sm:$0x1] 0
        %2563 = vst [vmem:[#allocation3 + $0x6c] sm:$0xf] 0
        %2564 = vst [vmem:[#allocation3 + $0x70] sm:$0xf] 0
        %2565 = vst [vmem:[#allocation3 + $0x74] sm:$0x1] 0
        %2566 = vst [vmem:[#allocation3 + $0x78] sm:$0xf] 0
        %2567 = vst [vmem:[#allocation3 + $0x7c] sm:$0xf] 0
        %2568 = vst [vmem:[#allocation3 + $0x80] sm:$0x1] 0
        %2569 = vst [vmem:[#allocation3 + $0x84] sm:$0xf] 0
        %2570 = vst [vmem:[#allocation3 + $0x88] sm:$0xf] 0
        %2571 = vst [vmem:[#allocation3 + $0x8c] sm:$0x1] 0
        %2572 = vst [vmem:[#allocation3 + $0x90] sm:$0xf] 0
        %2573 = vst [vmem:[#allocation3 + $0x94] sm:$0xf] 0
        %2574 = vst [vmem:[#allocation3 + $0x98] sm:$0x1] 0
        %2575 = vst [vmem:[#allocation3 + $0x9c] sm:$0xf] 0
        %2576 = vst [vmem:[#allocation3 + $0xa0] sm:$0xf] 0
        %2577 = vst [vmem:[#allocation3 + $0xa4] sm:$0x1] 0
        %2578 = vst [vmem:[#allocation3 + $0xa8] sm:$0xf] 0
        %2579 = vst [vmem:[#allocation3 + $0xac] sm:$0xf] 0
        %2580 = vst [vmem:[#allocation3 + $0xb0] sm:$0x1] 0
        %2581 = vst [vmem:[#allocation3 + $0xb4] sm:$0xf] 0
        %2582 = vst [vmem:[#allocation3 + $0xb8] sm:$0xf] 0
        %2583 = vst [vmem:[#allocation3 + $0xbc] sm:$0x1] 0
        %2584 = vst [vmem:[#allocation3 + $0xc0] sm:$0xf] 0
        %2585 = vst [vmem:[#allocation3 + $0xc4] sm:$0xf] 0
        %2586 = vst [vmem:[#allocation3 + $0xc8] sm:$0x1] 0
        %2587 = vst [vmem:[#allocation3 + $0xcc] sm:$0xf] 0
        %2588 = vst [vmem:[#allocation3 + $0xd0] sm:$0xf] 0
        %2589 = vst [vmem:[#allocation3 + $0xd4] sm:$0x1] 0
        %v2606 = vunpack.c.l.b16 %v2520
        %v2607 = vunpack.c.h.b16 %v2520
        %v2608 = vunpack.c.l.b16 %v2521
        %v2609 = vunpack.c.h.b16 %v2521
        %v2610 = vunpack.c.l.b16 %v2522
        %v2611 = vunpack.c.h.b16 %v2522
        %v2612 = vunpack.c.l.b16 %v2523
        %v2613 = vunpack.c.h.b16 %v2523
        %v2614 = vunpack.c.l.b16 %v2524
        %v2615 = vunpack.c.h.b16 %v2524
        %v2616 = vunpack.c.l.b16 %v2525
        %v2617 = vunpack.c.h.b16 %v2525
        %v2618 = vunpack.c.l.b16 %v2526
        %v2619 = vunpack.c.h.b16 %v2526
        %v2620 = vunpack.c.l.b16 %v2527
        %v2621 = vunpack.c.h.b16 %v2527
        %v2622 = vunpack.c.l.b16 %v2528
        %v2623 = vunpack.c.h.b16 %v2528
        %v2624 = vunpack.c.l.b16 %v2529
        %v2625 = vunpack.c.h.b16 %v2529
        %v2626 = vunpack.c.l.b16 %v2530
        %v2627 = vunpack.c.h.b16 %v2530
        %v2628 = vunpack.c.l.b16 %v2531
        %v2629 = vunpack.c.h.b16 %v2531
        %v2630 = vunpack.c.l.b16 %v2532
        %v2631 = vunpack.c.h.b16 %v2532
        %v2632 = vunpack.c.l.b16 %v2533
        %v2633 = vunpack.c.h.b16 %v2533
        %v2634 = vunpack.c.l.b16 %v2534
        %v2635 = vunpack.c.h.b16 %v2534
        %v2636 = vunpack.c.l.b16 %v2535
        %v2637 = vunpack.c.h.b16 %v2535
        %v2638 = vpack.c.b16 %v2606, %v2606
        %v2639 = vpack.c.b16 %v2607, %v2607
        %v2640 = vpack.c.b16 %v2608, %v2608
        %v2641 = vpack.c.b16 %v2609, %v2609
        %v2642 = vpack.c.b16 %v2610, %v2610
        %v2643 = vpack.c.b16 %v2611, %v2611
        %v2644 = vpack.c.b16 %v2612, %v2612
        %v2645 = vpack.c.b16 %v2613, %v2613
        %v2646 = vpack.c.b16 %v2614, %v2614
        %v2647 = vpack.c.b16 %v2615, %v2615
        %v2648 = vpack.c.b16 %v2616, %v2616
        %v2649 = vpack.c.b16 %v2617, %v2617
        %v2650 = vpack.c.b16 %v2618, %v2618
        %v2651 = vpack.c.b16 %v2619, %v2619
        %v2652 = vpack.c.b16 %v2620, %v2620
        %v2653 = vpack.c.b16 %v2621, %v2621
        %v2654 = vpack.c.b16 %v2622, %v2622
        %v2655 = vpack.c.b16 %v2623, %v2623
        %v2656 = vpack.c.b16 %v2624, %v2624
        %v2657 = vpack.c.b16 %v2625, %v2625
        %v2658 = vpack.c.b16 %v2626, %v2626
        %v2659 = vpack.c.b16 %v2627, %v2627
        %v2660 = vpack.c.b16 %v2628, %v2628
        %v2661 = vpack.c.b16 %v2629, %v2629
        %v2662 = vpack.c.b16 %v2630, %v2630
        %v2663 = vpack.c.b16 %v2631, %v2631
        %v2664 = vpack.c.b16 %v2632, %v2632
        %v2665 = vpack.c.b16 %v2633, %v2633
        %v2666 = vpack.c.b16 %v2634, %v2634
        %v2667 = vpack.c.b16 %v2635, %v2635
        %v2668 = vpack.c.b16 %v2636, %v2636
        %v2669 = vpack.c.b16 %v2637, %v2637
        %v2671 = vshrl.u32 %v2638, 16
        %v2673 = vrot.slane %v2671, 7
        %v2674 = vshll.u32 %v2638, 16
        %v2676 = vor.u32 %v2673, %v2674
        %v2677 = vrot.slane %v2673, 4
        %v2679 = vshrl.u32 %v2639, 16
        %v2681 = vrot.slane %v2679, 7
        %v2682 = vshll.u32 %v2639, 16
        %v2684 = vor.u32 %v2681, %v2682
        %v2685 = vsel %vm383, %v2677, %v2684
        %v2686 = vrot.slane %v2681, 4
        %v2688 = vshrl.u32 %v2640, 16
        %v2690 = vrot.slane %v2688, 7
        %v2691 = vshll.u32 %v2640, 16
        %v2693 = vor.u32 %v2690, %v2691
        %v2694 = vrot.slane %v2690, 4
        %v2696 = vshrl.u32 %v2641, 16
        %v2698 = vrot.slane %v2696, 7
        %v2699 = vshll.u32 %v2641, 16
        %v2701 = vor.u32 %v2698, %v2699
        %v2702 = vsel %vm383, %v2694, %v2701
        %v2703 = vrot.slane %v2698, 4
        %v2705 = vshrl.u32 %v2642, 16
        %v2707 = vrot.slane %v2705, 7
        %v2708 = vshll.u32 %v2642, 16
        %v2710 = vor.u32 %v2707, %v2708
        %v2711 = vrot.slane %v2707, 4
        %v2713 = vshrl.u32 %v2643, 16
        %v2715 = vrot.slane %v2713, 7
        %v2716 = vshll.u32 %v2643, 16
        %v2718 = vor.u32 %v2715, %v2716
        %v2719 = vsel %vm383, %v2711, %v2718
        %v2720 = vrot.slane %v2715, 4
        %v2722 = vshrl.u32 %v2644, 16
        %v2724 = vrot.slane %v2722, 7
        %v2725 = vshll.u32 %v2644, 16
        %v2727 = vor.u32 %v2724, %v2725
        %v2728 = vrot.slane %v2724, 4
        %v2730 = vshrl.u32 %v2645, 16
        %v2732 = vrot.slane %v2730, 7
        %v2733 = vshll.u32 %v2645, 16
        %v2735 = vor.u32 %v2732, %v2733
        %v2736 = vsel %vm383, %v2728, %v2735
        %v2737 = vrot.slane %v2732, 4
        %v2739 = vshrl.u32 %v2646, 16
        %v2741 = vrot.slane %v2739, 7
        %v2742 = vshll.u32 %v2646, 16
        %v2744 = vor.u32 %v2741, %v2742
        %v2745 = vrot.slane %v2741, 4
        %v2747 = vshrl.u32 %v2647, 16
        %v2749 = vrot.slane %v2747, 7
        %v2750 = vshll.u32 %v2647, 16
        %v2752 = vor.u32 %v2749, %v2750
        %v2753 = vsel %vm383, %v2745, %v2752
        %v2754 = vrot.slane %v2749, 4
        %v2756 = vshrl.u32 %v2648, 16
        %v2758 = vrot.slane %v2756, 7
        %v2759 = vshll.u32 %v2648, 16
        %v2761 = vor.u32 %v2758, %v2759
        %v2762 = vrot.slane %v2758, 4
        %v2764 = vshrl.u32 %v2649, 16
        %v2766 = vrot.slane %v2764, 7
        %v2767 = vshll.u32 %v2649, 16
        %v2769 = vor.u32 %v2766, %v2767
        %v2770 = vsel %vm383, %v2762, %v2769
        %v2771 = vrot.slane %v2766, 4
        %v2773 = vshrl.u32 %v2650, 16
        %v2775 = vrot.slane %v2773, 7
        %v2776 = vshll.u32 %v2650, 16
        %v2778 = vor.u32 %v2775, %v2776
        %v2779 = vrot.slane %v2775, 4
        %v2781 = vshrl.u32 %v2651, 16
        %v2783 = vrot.slane %v2781, 7
        %v2784 = vshll.u32 %v2651, 16
        %v2786 = vor.u32 %v2783, %v2784
        %v2787 = vsel %vm383, %v2779, %v2786
        %v2788 = vrot.slane %v2783, 4
        %v2790 = vshrl.u32 %v2652, 16
        %v2792 = vrot.slane %v2790, 7
        %v2793 = vshll.u32 %v2652, 16
        %v2795 = vor.u32 %v2792, %v2793
        %v2796 = vrot.slane %v2792, 4
        %v2798 = vshrl.u32 %v2653, 16
        %v2800 = vrot.slane %v2798, 7
        %v2801 = vshll.u32 %v2653, 16
        %v2803 = vor.u32 %v2800, %v2801
        %v2804 = vsel %vm383, %v2796, %v2803
        %v2805 = vrot.slane %v2800, 4
        %v2807 = vshrl.u32 %v2654, 16
        %v2809 = vrot.slane %v2807, 7
        %v2810 = vshll.u32 %v2654, 16
        %v2812 = vor.u32 %v2809, %v2810
        %v2813 = vrot.slane %v2809, 4
        %v2815 = vshrl.u32 %v2655, 16
        %v2817 = vrot.slane %v2815, 7
        %v2818 = vshll.u32 %v2655, 16
        %v2820 = vor.u32 %v2817, %v2818
        %v2821 = vsel %vm383, %v2813, %v2820
        %v2822 = vrot.slane %v2817, 4
        %v2824 = vshrl.u32 %v2656, 16
        %v2826 = vrot.slane %v2824, 7
        %v2827 = vshll.u32 %v2656, 16
        %v2829 = vor.u32 %v2826, %v2827
        %v2830 = vrot.slane %v2826, 4
        %v2832 = vshrl.u32 %v2657, 16
        %v2834 = vrot.slane %v2832, 7
        %v2835 = vshll.u32 %v2657, 16
        %v2837 = vor.u32 %v2834, %v2835
        %v2838 = vsel %vm383, %v2830, %v2837
        %v2839 = vrot.slane %v2834, 4
        %v2841 = vshrl.u32 %v2658, 16
        %v2843 = vrot.slane %v2841, 7
        %v2844 = vshll.u32 %v2658, 16
        %v2846 = vor.u32 %v2843, %v2844
        %v2847 = vrot.slane %v2843, 4
        %v2849 = vshrl.u32 %v2659, 16
        %v2851 = vrot.slane %v2849, 7
        %v2852 = vshll.u32 %v2659, 16
        %v2854 = vor.u32 %v2851, %v2852
        %v2855 = vsel %vm383, %v2847, %v2854
        %v2856 = vrot.slane %v2851, 4
        %v2858 = vshrl.u32 %v2660, 16
        %v2860 = vrot.slane %v2858, 7
        %v2861 = vshll.u32 %v2660, 16
        %v2863 = vor.u32 %v2860, %v2861
        %v2864 = vrot.slane %v2860, 4
        %v2866 = vshrl.u32 %v2661, 16
        %v2868 = vrot.slane %v2866, 7
        %v2869 = vshll.u32 %v2661, 16
        %v2871 = vor.u32 %v2868, %v2869
        %v2872 = vsel %vm383, %v2864, %v2871
        %v2873 = vrot.slane %v2868, 4
        %v2875 = vshrl.u32 %v2662, 16
        %v2877 = vrot.slane %v2875, 7
        %v2878 = vshll.u32 %v2662, 16
        %v2880 = vor.u32 %v2877, %v2878
        %v2881 = vrot.slane %v2877, 4
        %v2883 = vshrl.u32 %v2663, 16
        %v2885 = vrot.slane %v2883, 7
        %v2886 = vshll.u32 %v2663, 16
        %v2888 = vor.u32 %v2885, %v2886
        %v2889 = vsel %vm383, %v2881, %v2888
        %v2890 = vrot.slane %v2885, 4
        %v2892 = vshrl.u32 %v2664, 16
        %v2894 = vrot.slane %v2892, 7
        %v2895 = vshll.u32 %v2664, 16
        %v2897 = vor.u32 %v2894, %v2895
        %v2898 = vrot.slane %v2894, 4
        %v2900 = vshrl.u32 %v2665, 16
        %v2902 = vrot.slane %v2900, 7
        %v2903 = vshll.u32 %v2665, 16
        %v2905 = vor.u32 %v2902, %v2903
        %v2906 = vsel %vm383, %v2898, %v2905
        %v2907 = vrot.slane %v2902, 4
        %v2909 = vshrl.u32 %v2666, 16
        %v2911 = vrot.slane %v2909, 7
        %v2912 = vshll.u32 %v2666, 16
        %v2914 = vor.u32 %v2911, %v2912
        %v2915 = vrot.slane %v2911, 4
        %v2917 = vshrl.u32 %v2667, 16
        %v2919 = vrot.slane %v2917, 7
        %v2920 = vshll.u32 %v2667, 16
        %v2922 = vor.u32 %v2919, %v2920
        %v2923 = vsel %vm383, %v2915, %v2922
        %v2924 = vrot.slane %v2919, 4
        %v2926 = vshrl.u32 %v2668, 16
        %v2928 = vrot.slane %v2926, 7
        %v2929 = vshll.u32 %v2668, 16
        %v2931 = vor.u32 %v2928, %v2929
        %v2932 = vrot.slane %v2928, 4
        %v2934 = vshrl.u32 %v2669, 16
        %v2936 = vrot.slane %v2934, 7
        %v2937 = vshll.u32 %v2669, 16
        %v2939 = vor.u32 %v2936, %v2937
        %v2940 = vsel %vm383, %v2932, %v2939
        %v2941 = vrot.slane %v2936, 4
        %s2990 = scalar_lea.vmem [#allocation3], 12
        %vm2991 = vcmask 1043456
        %vm2992 = vmand %vm2991, %vm706
        %v2993 = vld [vmem:[%s2990] sm:$0xf]
        %v2994 = vsel %vm2992, %v2676, %v2993
        %2995 = vst [vmem:[%s2990] sm:$0xf] %v2994
        %2996 = vst [vmem:[%s2990 + $0x4] sm:$0xf] %v2685
        %vm2997 = vcmask 1040384
        %vm2998 = vmand %vm2997, %vm381
        %v2999 = vld [vmem:[%s2990 + $0x8] sm:$0x1]
        %v3000 = vsel %vm2998, %v2686, %v2999
        %3001 = vst [vmem:[%s2990 + $0x8] sm:$0x1] %v3000
        %v3002 = vld [vmem:[%s2990 + $0xc] sm:$0xf]
        %v3003 = vsel %vm2992, %v2693, %v3002
        %3004 = vst [vmem:[%s2990 + $0xc] sm:$0xf] %v3003
        %3005 = vst [vmem:[%s2990 + $0x10] sm:$0xf] %v2702
        %v3006 = vld [vmem:[%s2990 + $0x14] sm:$0x1]
        %v3007 = vsel %vm2998, %v2703, %v3006
        %3008 = vst [vmem:[%s2990 + $0x14] sm:$0x1] %v3007
        %v3009 = vld [vmem:[%s2990 + $0x18] sm:$0xf]
        %v3010 = vsel %vm2992, %v2710, %v3009
        %3011 = vst [vmem:[%s2990 + $0x18] sm:$0xf] %v3010
        %3012 = vst [vmem:[%s2990 + $0x1c] sm:$0xf] %v2719
        %v3013 = vld [vmem:[%s2990 + $0x20] sm:$0x1]
        %v3014 = vsel %vm2998, %v2720, %v3013
        %3015 = vst [vmem:[%s2990 + $0x20] sm:$0x1] %v3014
        %v3016 = vld [vmem:[%s2990 + $0x24] sm:$0xf]
        %v3017 = vsel %vm2992, %v2727, %v3016
        %3018 = vst [vmem:[%s2990 + $0x24] sm:$0xf] %v3017
        %3019 = vst [vmem:[%s2990 + $0x28] sm:$0xf] %v2736
        %v3020 = vld [vmem:[%s2990 + $0x2c] sm:$0x1]
        %v3021 = vsel %vm2998, %v2737, %v3020
        %3022 = vst [vmem:[%s2990 + $0x2c] sm:$0x1] %v3021
        %v3023 = vld [vmem:[%s2990 + $0x30] sm:$0xf]
        %v3024 = vsel %vm2992, %v2744, %v3023
        %3025 = vst [vmem:[%s2990 + $0x30] sm:$0xf] %v3024
        %3026 = vst [vmem:[%s2990 + $0x34] sm:$0xf] %v2753
        %v3027 = vld [vmem:[%s2990 + $0x38] sm:$0x1]
        %v3028 = vsel %vm2998, %v2754, %v3027
        %3029 = vst [vmem:[%s2990 + $0x38] sm:$0x1] %v3028
        %v3030 = vld [vmem:[%s2990 + $0x3c] sm:$0xf]
        %v3031 = vsel %vm2992, %v2761, %v3030
        %3032 = vst [vmem:[%s2990 + $0x3c] sm:$0xf] %v3031
        %3033 = vst [vmem:[%s2990 + $0x40] sm:$0xf] %v2770
        %v3034 = vld [vmem:[%s2990 + $0x44] sm:$0x1]
        %v3035 = vsel %vm2998, %v2771, %v3034
        %3036 = vst [vmem:[%s2990 + $0x44] sm:$0x1] %v3035
        %v3037 = vld [vmem:[%s2990 + $0x48] sm:$0xf]
        %v3038 = vsel %vm2992, %v2778, %v3037
        %3039 = vst [vmem:[%s2990 + $0x48] sm:$0xf] %v3038
        %3040 = vst [vmem:[%s2990 + $0x4c] sm:$0xf] %v2787
        %v3041 = vld [vmem:[%s2990 + $0x50] sm:$0x1]
        %v3042 = vsel %vm2998, %v2788, %v3041
        %3043 = vst [vmem:[%s2990 + $0x50] sm:$0x1] %v3042
        %v3044 = vld [vmem:[%s2990 + $0x54] sm:$0xf]
        %v3045 = vsel %vm2992, %v2795, %v3044
        %3046 = vst [vmem:[%s2990 + $0x54] sm:$0xf] %v3045
        %3047 = vst [vmem:[%s2990 + $0x58] sm:$0xf] %v2804
        %v3048 = vld [vmem:[%s2990 + $0x5c] sm:$0x1]
        %v3049 = vsel %vm2998, %v2805, %v3048
        %3050 = vst [vmem:[%s2990 + $0x5c] sm:$0x1] %v3049
        %v3051 = vld [vmem:[%s2990 + $0x60] sm:$0xf]
        %v3052 = vsel %vm2992, %v2812, %v3051
        %3053 = vst [vmem:[%s2990 + $0x60] sm:$0xf] %v3052
        %3054 = vst [vmem:[%s2990 + $0x64] sm:$0xf] %v2821
        %v3055 = vld [vmem:[%s2990 + $0x68] sm:$0x1]
        %v3056 = vsel %vm2998, %v2822, %v3055
        %3057 = vst [vmem:[%s2990 + $0x68] sm:$0x1] %v3056
        %v3058 = vld [vmem:[%s2990 + $0x6c] sm:$0xf]
        %v3059 = vsel %vm2992, %v2829, %v3058
        %3060 = vst [vmem:[%s2990 + $0x6c] sm:$0xf] %v3059
        %3061 = vst [vmem:[%s2990 + $0x70] sm:$0xf] %v2838
        %v3062 = vld [vmem:[%s2990 + $0x74] sm:$0x1]
        %v3063 = vsel %vm2998, %v2839, %v3062
        %3064 = vst [vmem:[%s2990 + $0x74] sm:$0x1] %v3063
        %v3065 = vld [vmem:[%s2990 + $0x78] sm:$0xf]
        %v3066 = vsel %vm2992, %v2846, %v3065
        %3067 = vst [vmem:[%s2990 + $0x78] sm:$0xf] %v3066
        %3068 = vst [vmem:[%s2990 + $0x7c] sm:$0xf] %v2855
        %v3069 = vld [vmem:[%s2990 + $0x80] sm:$0x1]
        %v3070 = vsel %vm2998, %v2856, %v3069
        %3071 = vst [vmem:[%s2990 + $0x80] sm:$0x1] %v3070
        %v3072 = vld [vmem:[%s2990 + $0x84] sm:$0xf]
        %v3073 = vsel %vm2992, %v2863, %v3072
        %3074 = vst [vmem:[%s2990 + $0x84] sm:$0xf] %v3073
        %3075 = vst [vmem:[%s2990 + $0x88] sm:$0xf] %v2872
        %v3076 = vld [vmem:[%s2990 + $0x8c] sm:$0x1]
        %v3077 = vsel %vm2998, %v2873, %v3076
        %3078 = vst [vmem:[%s2990 + $0x8c] sm:$0x1] %v3077
        %v3079 = vld [vmem:[%s2990 + $0x90] sm:$0xf]
        %v3080 = vsel %vm2992, %v2880, %v3079
        %3081 = vst [vmem:[%s2990 + $0x90] sm:$0xf] %v3080
        %3082 = vst [vmem:[%s2990 + $0x94] sm:$0xf] %v2889
        %v3083 = vld [vmem:[%s2990 + $0x98] sm:$0x1]
        %v3084 = vsel %vm2998, %v2890, %v3083
        %3085 = vst [vmem:[%s2990 + $0x98] sm:$0x1] %v3084
        %v3086 = vld [vmem:[%s2990 + $0x9c] sm:$0xf]
        %v3087 = vsel %vm2992, %v2897, %v3086
        %3088 = vst [vmem:[%s2990 + $0x9c] sm:$0xf] %v3087
        %3089 = vst [vmem:[%s2990 + $0xa0] sm:$0xf] %v2906
        %v3090 = vld [vmem:[%s2990 + $0xa4] sm:$0x1]
        %v3091 = vsel %vm2998, %v2907, %v3090
        %3092 = vst [vmem:[%s2990 + $0xa4] sm:$0x1] %v3091
        %v3093 = vld [vmem:[%s2990 + $0xa8] sm:$0xf]
        %v3094 = vsel %vm2992, %v2914, %v3093
        %3095 = vst [vmem:[%s2990 + $0xa8] sm:$0xf] %v3094
        %3096 = vst [vmem:[%s2990 + $0xac] sm:$0xf] %v2923
        %v3097 = vld [vmem:[%s2990 + $0xb0] sm:$0x1]
        %v3098 = vsel %vm2998, %v2924, %v3097
        %3099 = vst [vmem:[%s2990 + $0xb0] sm:$0x1] %v3098
        %v3100 = vld [vmem:[%s2990 + $0xb4] sm:$0xf]
        %v3101 = vsel %vm2992, %v2931, %v3100
        %3102 = vst [vmem:[%s2990 + $0xb4] sm:$0xf] %v3101
        %3103 = vst [vmem:[%s2990 + $0xb8] sm:$0xf] %v2940
        %v3104 = vld [vmem:[%s2990 + $0xbc] sm:$0x1]
        %v3105 = vsel %vm2998, %v2941, %v3104
        %3106 = vst [vmem:[%s2990 + $0xbc] sm:$0x1] %v3105
        %v3107 = vld [vmem:[#allocation3] sm:$0xf]
        %v3108 = vld [vmem:[#allocation3 + $0x4] sm:$0xf]
        %v3109 = vld [vmem:[#allocation3 + $0x8] sm:$0x1]
        %v3110 = vld [vmem:[#allocation3 + $0xc] sm:$0xf]
        %v3111 = vld [vmem:[#allocation3 + $0x10] sm:$0xf]
        %v3112 = vld [vmem:[#allocation3 + $0x14] sm:$0x1]
        %v3113 = vld [vmem:[#allocation3 + $0x18] sm:$0xf]
        %v3114 = vld [vmem:[#allocation3 + $0x1c] sm:$0xf]
        %v3115 = vld [vmem:[#allocation3 + $0x20] sm:$0x1]
        %v3116 = vld [vmem:[#allocation3 + $0x24] sm:$0xf]
        %v3117 = vld [vmem:[#allocation3 + $0x28] sm:$0xf]
        %v3118 = vld [vmem:[#allocation3 + $0x2c] sm:$0x1]
        %v3119 = vld [vmem:[#allocation3 + $0x30] sm:$0xf]
        %v3120 = vld [vmem:[#allocation3 + $0x34] sm:$0xf]
        %v3121 = vld [vmem:[#allocation3 + $0x38] sm:$0x1]
        %v3122 = vld [vmem:[#allocation3 + $0x3c] sm:$0xf]
        %v3123 = vld [vmem:[#allocation3 + $0x40] sm:$0xf]
        %v3124 = vld [vmem:[#allocation3 + $0x44] sm:$0x1]
        %v3125 = vld [vmem:[#allocation3 + $0x48] sm:$0xf]
        %v3126 = vld [vmem:[#allocation3 + $0x4c] sm:$0xf]
        %v3127 = vld [vmem:[#allocation3 + $0x50] sm:$0x1]
        %v3128 = vld [vmem:[#allocation3 + $0x54] sm:$0xf]
        %v3129 = vld [vmem:[#allocation3 + $0x58] sm:$0xf]
        %v3130 = vld [vmem:[#allocation3 + $0x5c] sm:$0x1]
        %v3131 = vld [vmem:[#allocation3 + $0x60] sm:$0xf]
        %v3132 = vld [vmem:[#allocation3 + $0x64] sm:$0xf]
        %v3133 = vld [vmem:[#allocation3 + $0x68] sm:$0x1]
        %v3134 = vld [vmem:[#allocation3 + $0x6c] sm:$0xf]
        %v3135 = vld [vmem:[#allocation3 + $0x70] sm:$0xf]
        %v3136 = vld [vmem:[#allocation3 + $0x74] sm:$0x1]
        %v3137 = vld [vmem:[#allocation3 + $0x78] sm:$0xf]
        %v3138 = vld [vmem:[#allocation3 + $0x7c] sm:$0xf]
        %v3139 = vld [vmem:[#allocation3 + $0x80] sm:$0x1]
        %v3140 = vld [vmem:[#allocation3 + $0x84] sm:$0xf]
        %v3141 = vld [vmem:[#allocation3 + $0x88] sm:$0xf]
        %v3142 = vld [vmem:[#allocation3 + $0x8c] sm:$0x1]
        %v3143 = vld [vmem:[#allocation3 + $0x90] sm:$0xf]
        %v3144 = vld [vmem:[#allocation3 + $0x94] sm:$0xf]
        %v3145 = vld [vmem:[#allocation3 + $0x98] sm:$0x1]
        %v3146 = vld [vmem:[#allocation3 + $0x9c] sm:$0xf]
        %v3147 = vld [vmem:[#allocation3 + $0xa0] sm:$0xf]
        %v3148 = vld [vmem:[#allocation3 + $0xa4] sm:$0x1]
        %v3149 = vld [vmem:[#allocation3 + $0xa8] sm:$0xf]
        %v3150 = vld [vmem:[#allocation3 + $0xac] sm:$0xf]
        %v3151 = vld [vmem:[#allocation3 + $0xb0] sm:$0x1]
        %v3152 = vld [vmem:[#allocation3 + $0xb4] sm:$0xf]
        %v3153 = vld [vmem:[#allocation3 + $0xb8] sm:$0xf]
        %v3154 = vld [vmem:[#allocation3 + $0xbc] sm:$0x1]
        %v3155 = vld [vmem:[#allocation3 + $0xc0] sm:$0xf]
        %v3156 = vld [vmem:[#allocation3 + $0xc4] sm:$0xf]
        %v3157 = vld [vmem:[#allocation3 + $0xc8] sm:$0x1]
        %v3158 = vld [vmem:[#allocation3 + $0xcc] sm:$0xf]
        %v3159 = vld [vmem:[#allocation3 + $0xd0] sm:$0xf]
        %v3160 = vld [vmem:[#allocation3 + $0xd4] sm:$0x1]
        %v3162 = vshrl.u32 %v3107, 16
        %v3164 = vrot.slane %v3162, 4
        %v3165 = vshll.u32 %v3107, 16
        %v3167 = vrot.slane %v3165, 5
        %v3168 = vor.u32 %v3164, %v3167
        %v3169 = vrot.slane %v3168, 4
        %v3171 = vshll.u32 %v3108, 16
        %v3173 = vrot.slane %v3171, 5
        %v3174 = vsel %vm878, %v3169, %v3173
        %v3175 = vshrl.u32 %v3108, 16
        %v3177 = vrot.slane %v3175, 4
        %v3178 = vor.u32 %v3177, %v3173
        %v3179 = vrot.slane %v3178, 4
        %v3181 = vshll.u32 %v3109, 16
        %v3183 = vrot.slane %v3181, 5
        %v3184 = vsel %vm878, %v3179, %v3183
        %v3186 = vshrl.u32 %v3110, 16
        %v3188 = vrot.slane %v3186, 4
        %v3189 = vshll.u32 %v3110, 16
        %v3191 = vrot.slane %v3189, 5
        %v3192 = vor.u32 %v3188, %v3191
        %v3193 = vrot.slane %v3192, 4
        %v3195 = vshll.u32 %v3111, 16
        %v3197 = vrot.slane %v3195, 5
        %v3198 = vsel %vm878, %v3193, %v3197
        %v3199 = vshrl.u32 %v3111, 16
        %v3201 = vrot.slane %v3199, 4
        %v3202 = vor.u32 %v3201, %v3197
        %v3203 = vrot.slane %v3202, 4
        %v3205 = vshll.u32 %v3112, 16
        %v3207 = vrot.slane %v3205, 5
        %v3208 = vsel %vm878, %v3203, %v3207
        %v3210 = vshrl.u32 %v3113, 16
        %v3212 = vrot.slane %v3210, 4
        %v3213 = vshll.u32 %v3113, 16
        %v3215 = vrot.slane %v3213, 5
        %v3216 = vor.u32 %v3212, %v3215
        %v3217 = vrot.slane %v3216, 4
        %v3219 = vshll.u32 %v3114, 16
        %v3221 = vrot.slane %v3219, 5
        %v3222 = vsel %vm878, %v3217, %v3221
        %v3223 = vshrl.u32 %v3114, 16
        %v3225 = vrot.slane %v3223, 4
        %v3226 = vor.u32 %v3225, %v3221
        %v3227 = vrot.slane %v3226, 4
        %v3229 = vshll.u32 %v3115, 16
        %v3231 = vrot.slane %v3229, 5
        %v3232 = vsel %vm878, %v3227, %v3231
        %v3234 = vshrl.u32 %v3116, 16
        %v3236 = vrot.slane %v3234, 4
        %v3237 = vshll.u32 %v3116, 16
        %v3239 = vrot.slane %v3237, 5
        %v3240 = vor.u32 %v3236, %v3239
        %v3241 = vrot.slane %v3240, 4
        %v3243 = vshll.u32 %v3117, 16
        %v3245 = vrot.slane %v3243, 5
        %v3246 = vsel %vm878, %v3241, %v3245
        %v3247 = vshrl.u32 %v3117, 16
        %v3249 = vrot.slane %v3247, 4
        %v3250 = vor.u32 %v3249, %v3245
        %v3251 = vrot.slane %v3250, 4
        %v3253 = vshll.u32 %v3118, 16
        %v3255 = vrot.slane %v3253, 5
        %v3256 = vsel %vm878, %v3251, %v3255
        %v3258 = vshrl.u32 %v3119, 16
        %v3260 = vrot.slane %v3258, 4
        %v3261 = vshll.u32 %v3119, 16
        %v3263 = vrot.slane %v3261, 5
        %v3264 = vor.u32 %v3260, %v3263
        %v3265 = vrot.slane %v3264, 4
        %v3267 = vshll.u32 %v3120, 16
        %v3269 = vrot.slane %v3267, 5
        %v3270 = vsel %vm878, %v3265, %v3269
        %v3271 = vshrl.u32 %v3120, 16
        %v3273 = vrot.slane %v3271, 4
        %v3274 = vor.u32 %v3273, %v3269
        %v3275 = vrot.slane %v3274, 4
        %v3277 = vshll.u32 %v3121, 16
        %v3279 = vrot.slane %v3277, 5
        %v3280 = vsel %vm878, %v3275, %v3279
        %v3282 = vshrl.u32 %v3122, 16
        %v3284 = vrot.slane %v3282, 4
        %v3285 = vshll.u32 %v3122, 16
        %v3287 = vrot.slane %v3285, 5
        %v3288 = vor.u32 %v3284, %v3287
        %v3289 = vrot.slane %v3288, 4
        %v3291 = vshll.u32 %v3123, 16
        %v3293 = vrot.slane %v3291, 5
        %v3294 = vsel %vm878, %v3289, %v3293
        %v3295 = vshrl.u32 %v3123, 16
        %v3297 = vrot.slane %v3295, 4
        %v3298 = vor.u32 %v3297, %v3293
        %v3299 = vrot.slane %v3298, 4
        %v3301 = vshll.u32 %v3124, 16
        %v3303 = vrot.slane %v3301, 5
        %v3304 = vsel %vm878, %v3299, %v3303
        %v3306 = vshrl.u32 %v3125, 16
        %v3308 = vrot.slane %v3306, 4
        %v3309 = vshll.u32 %v3125, 16
        %v3311 = vrot.slane %v3309, 5
        %v3312 = vor.u32 %v3308, %v3311
        %v3313 = vrot.slane %v3312, 4
        %v3315 = vshll.u32 %v3126, 16
        %v3317 = vrot.slane %v3315, 5
        %v3318 = vsel %vm878, %v3313, %v3317
        %v3319 = vshrl.u32 %v3126, 16
        %v3321 = vrot.slane %v3319, 4
        %v3322 = vor.u32 %v3321, %v3317
        %v3323 = vrot.slane %v3322, 4
        %v3325 = vshll.u32 %v3127, 16
        %v3327 = vrot.slane %v3325, 5
        %v3328 = vsel %vm878, %v3323, %v3327
        %v3330 = vshrl.u32 %v3128, 16
        %v3332 = vrot.slane %v3330, 4
        %v3333 = vshll.u32 %v3128, 16
        %v3335 = vrot.slane %v3333, 5
        %v3336 = vor.u32 %v3332, %v3335
        %v3337 = vrot.slane %v3336, 4
        %v3339 = vshll.u32 %v3129, 16
        %v3341 = vrot.slane %v3339, 5
        %v3342 = vsel %vm878, %v3337, %v3341
        %v3343 = vshrl.u32 %v3129, 16
        %v3345 = vrot.slane %v3343, 4
        %v3346 = vor.u32 %v3345, %v3341
        %v3347 = vrot.slane %v3346, 4
        %v3349 = vshll.u32 %v3130, 16
        %v3351 = vrot.slane %v3349, 5
        %v3352 = vsel %vm878, %v3347, %v3351
        %v3354 = vshrl.u32 %v3131, 16
        %v3356 = vrot.slane %v3354, 4
        %v3357 = vshll.u32 %v3131, 16
        %v3359 = vrot.slane %v3357, 5
        %v3360 = vor.u32 %v3356, %v3359
        %v3361 = vrot.slane %v3360, 4
        %v3363 = vshll.u32 %v3132, 16
        %v3365 = vrot.slane %v3363, 5
        %v3366 = vsel %vm878, %v3361, %v3365
        %v3367 = vshrl.u32 %v3132, 16
        %v3369 = vrot.slane %v3367, 4
        %v3370 = vor.u32 %v3369, %v3365
        %v3371 = vrot.slane %v3370, 4
        %v3373 = vshll.u32 %v3133, 16
        %v3375 = vrot.slane %v3373, 5
        %v3376 = vsel %vm878, %v3371, %v3375
        %v3378 = vshrl.u32 %v3134, 16
        %v3380 = vrot.slane %v3378, 4
        %v3381 = vshll.u32 %v3134, 16
        %v3383 = vrot.slane %v3381, 5
        %v3384 = vor.u32 %v3380, %v3383
        %v3385 = vrot.slane %v3384, 4
        %v3387 = vshll.u32 %v3135, 16
        %v3389 = vrot.slane %v3387, 5
        %v3390 = vsel %vm878, %v3385, %v3389
        %v3391 = vshrl.u32 %v3135, 16
        %v3393 = vrot.slane %v3391, 4
        %v3394 = vor.u32 %v3393, %v3389
        %v3395 = vrot.slane %v3394, 4
        %v3397 = vshll.u32 %v3136, 16
        %v3399 = vrot.slane %v3397, 5
        %v3400 = vsel %vm878, %v3395, %v3399
        %v3402 = vshrl.u32 %v3137, 16
        %v3404 = vrot.slane %v3402, 4
        %v3405 = vshll.u32 %v3137, 16
        %v3407 = vrot.slane %v3405, 5
        %v3408 = vor.u32 %v3404, %v3407
        %v3409 = vrot.slane %v3408, 4
        %v3411 = vshll.u32 %v3138, 16
        %v3413 = vrot.slane %v3411, 5
        %v3414 = vsel %vm878, %v3409, %v3413
        %v3415 = vshrl.u32 %v3138, 16
        %v3417 = vrot.slane %v3415, 4
        %v3418 = vor.u32 %v3417, %v3413
        %v3419 = vrot.slane %v3418, 4
        %v3421 = vshll.u32 %v3139, 16
        %v3423 = vrot.slane %v3421, 5
        %v3424 = vsel %vm878, %v3419, %v3423
        %v3426 = vshrl.u32 %v3140, 16
        %v3428 = vrot.slane %v3426, 4
        %v3429 = vshll.u32 %v3140, 16
        %v3431 = vrot.slane %v3429, 5
        %v3432 = vor.u32 %v3428, %v3431
        %v3433 = vrot.slane %v3432, 4
        %v3435 = vshll.u32 %v3141, 16
        %v3437 = vrot.slane %v3435, 5
        %v3438 = vsel %vm878, %v3433, %v3437
        %v3439 = vshrl.u32 %v3141, 16
        %v3441 = vrot.slane %v3439, 4
        %v3442 = vor.u32 %v3441, %v3437
        %v3443 = vrot.slane %v3442, 4
        %v3445 = vshll.u32 %v3142, 16
        %v3447 = vrot.slane %v3445, 5
        %v3448 = vsel %vm878, %v3443, %v3447
        %v3450 = vshrl.u32 %v3143, 16
        %v3452 = vrot.slane %v3450, 4
        %v3453 = vshll.u32 %v3143, 16
        %v3455 = vrot.slane %v3453, 5
        %v3456 = vor.u32 %v3452, %v3455
        %v3457 = vrot.slane %v3456, 4
        %v3459 = vshll.u32 %v3144, 16
        %v3461 = vrot.slane %v3459, 5
        %v3462 = vsel %vm878, %v3457, %v3461
        %v3463 = vshrl.u32 %v3144, 16
        %v3465 = vrot.slane %v3463, 4
        %v3466 = vor.u32 %v3465, %v3461
        %v3467 = vrot.slane %v3466, 4
        %v3469 = vshll.u32 %v3145, 16
        %v3471 = vrot.slane %v3469, 5
        %v3472 = vsel %vm878, %v3467, %v3471
        %v3474 = vshrl.u32 %v3146, 16
        %v3476 = vrot.slane %v3474, 4
        %v3477 = vshll.u32 %v3146, 16
        %v3479 = vrot.slane %v3477, 5
        %v3480 = vor.u32 %v3476, %v3479
        %v3481 = vrot.slane %v3480, 4
        %v3483 = vshll.u32 %v3147, 16
        %v3485 = vrot.slane %v3483, 5
        %v3486 = vsel %vm878, %v3481, %v3485
        %v3487 = vshrl.u32 %v3147, 16
        %v3489 = vrot.slane %v3487, 4
        %v3490 = vor.u32 %v3489, %v3485
        %v3491 = vrot.slane %v3490, 4
        %v3493 = vshll.u32 %v3148, 16
        %v3495 = vrot.slane %v3493, 5
        %v3496 = vsel %vm878, %v3491, %v3495
        %v3498 = vshrl.u32 %v3149, 16
        %v3500 = vrot.slane %v3498, 4
        %v3501 = vshll.u32 %v3149, 16
        %v3503 = vrot.slane %v3501, 5
        %v3504 = vor.u32 %v3500, %v3503
        %v3505 = vrot.slane %v3504, 4
        %v3507 = vshll.u32 %v3150, 16
        %v3509 = vrot.slane %v3507, 5
        %v3510 = vsel %vm878, %v3505, %v3509
        %v3511 = vshrl.u32 %v3150, 16
        %v3513 = vrot.slane %v3511, 4
        %v3514 = vor.u32 %v3513, %v3509
        %v3515 = vrot.slane %v3514, 4
        %v3517 = vshll.u32 %v3151, 16
        %v3519 = vrot.slane %v3517, 5
        %v3520 = vsel %vm878, %v3515, %v3519
        %v3522 = vshrl.u32 %v3152, 16
        %v3524 = vrot.slane %v3522, 4
        %v3525 = vshll.u32 %v3152, 16
        %v3527 = vrot.slane %v3525, 5
        %v3528 = vor.u32 %v3524, %v3527
        %v3529 = vrot.slane %v3528, 4
        %v3531 = vshll.u32 %v3153, 16
        %v3533 = vrot.slane %v3531, 5
        %v3534 = vsel %vm878, %v3529, %v3533
        %v3535 = vshrl.u32 %v3153, 16
        %v3537 = vrot.slane %v3535, 4
        %v3538 = vor.u32 %v3537, %v3533
        %v3539 = vrot.slane %v3538, 4
        %v3541 = vshll.u32 %v3154, 16
        %v3543 = vrot.slane %v3541, 5
        %v3544 = vsel %vm878, %v3539, %v3543
        %v3593 = vrot.slane %v3107, 5
        %v3594 = vrot.slane %v3593, 4
        %v3595 = vrot.slane %v3108, 5
        %v3596 = vsel %vm1313, %v3594, %v3595
        %v3597 = vrot.slane %v3595, 4
        %v3598 = vrot.slane %v3109, 5
        %v3599 = vsel %vm1313, %v3597, %v3598
        %v3600 = vrot.slane %v3110, 5
        %v3601 = vrot.slane %v3600, 4
        %v3602 = vrot.slane %v3111, 5
        %v3603 = vsel %vm1313, %v3601, %v3602
        %v3604 = vrot.slane %v3602, 4
        %v3605 = vrot.slane %v3112, 5
        %v3606 = vsel %vm1313, %v3604, %v3605
        %v3607 = vrot.slane %v3113, 5
        %v3608 = vrot.slane %v3607, 4
        %v3609 = vrot.slane %v3114, 5
        %v3610 = vsel %vm1313, %v3608, %v3609
        %v3611 = vrot.slane %v3609, 4
        %v3612 = vrot.slane %v3115, 5
        %v3613 = vsel %vm1313, %v3611, %v3612
        %v3614 = vrot.slane %v3116, 5
        %v3615 = vrot.slane %v3614, 4
        %v3616 = vrot.slane %v3117, 5
        %v3617 = vsel %vm1313, %v3615, %v3616
        %v3618 = vrot.slane %v3616, 4
        %v3619 = vrot.slane %v3118, 5
        %v3620 = vsel %vm1313, %v3618, %v3619
        %v3621 = vrot.slane %v3119, 5
        %v3622 = vrot.slane %v3621, 4
        %v3623 = vrot.slane %v3120, 5
        %v3624 = vsel %vm1313, %v3622, %v3623
        %v3625 = vrot.slane %v3623, 4
        %v3626 = vrot.slane %v3121, 5
        %v3627 = vsel %vm1313, %v3625, %v3626
        %v3628 = vrot.slane %v3122, 5
        %v3629 = vrot.slane %v3628, 4
        %v3630 = vrot.slane %v3123, 5
        %v3631 = vsel %vm1313, %v3629, %v3630
        %v3632 = vrot.slane %v3630, 4
        %v3633 = vrot.slane %v3124, 5
        %v3634 = vsel %vm1313, %v3632, %v3633
        %v3635 = vrot.slane %v3125, 5
        %v3636 = vrot.slane %v3635, 4
        %v3637 = vrot.slane %v3126, 5
        %v3638 = vsel %vm1313, %v3636, %v3637
        %v3639 = vrot.slane %v3637, 4
        %v3640 = vrot.slane %v3127, 5
        %v3641 = vsel %vm1313, %v3639, %v3640
        %v3642 = vrot.slane %v3128, 5
        %v3643 = vrot.slane %v3642, 4
        %v3644 = vrot.slane %v3129, 5
        %v3645 = vsel %vm1313, %v3643, %v3644
        %v3646 = vrot.slane %v3644, 4
        %v3647 = vrot.slane %v3130, 5
        %v3648 = vsel %vm1313, %v3646, %v3647
        %v3649 = vrot.slane %v3131, 5
        %v3650 = vrot.slane %v3649, 4
        %v3651 = vrot.slane %v3132, 5
        %v3652 = vsel %vm1313, %v3650, %v3651
        %v3653 = vrot.slane %v3651, 4
        %v3654 = vrot.slane %v3133, 5
        %v3655 = vsel %vm1313, %v3653, %v3654
        %v3656 = vrot.slane %v3134, 5
        %v3657 = vrot.slane %v3656, 4
        %v3658 = vrot.slane %v3135, 5
        %v3659 = vsel %vm1313, %v3657, %v3658
        %v3660 = vrot.slane %v3658, 4
        %v3661 = vrot.slane %v3136, 5
        %v3662 = vsel %vm1313, %v3660, %v3661
        %v3663 = vrot.slane %v3137, 5
        %v3664 = vrot.slane %v3663, 4
        %v3665 = vrot.slane %v3138, 5
        %v3666 = vsel %vm1313, %v3664, %v3665
        %v3667 = vrot.slane %v3665, 4
        %v3668 = vrot.slane %v3139, 5
        %v3669 = vsel %vm1313, %v3667, %v3668
        %v3670 = vrot.slane %v3140, 5
        %v3671 = vrot.slane %v3670, 4
        %v3672 = vrot.slane %v3141, 5
        %v3673 = vsel %vm1313, %v3671, %v3672
        %v3674 = vrot.slane %v3672, 4
        %v3675 = vrot.slane %v3142, 5
        %v3676 = vsel %vm1313, %v3674, %v3675
        %v3677 = vrot.slane %v3143, 5
        %v3678 = vrot.slane %v3677, 4
        %v3679 = vrot.slane %v3144, 5
        %v3680 = vsel %vm1313, %v3678, %v3679
        %v3681 = vrot.slane %v3679, 4
        %v3682 = vrot.slane %v3145, 5
        %v3683 = vsel %vm1313, %v3681, %v3682
        %v3684 = vrot.slane %v3146, 5
        %v3685 = vrot.slane %v3684, 4
        %v3686 = vrot.slane %v3147, 5
        %v3687 = vsel %vm1313, %v3685, %v3686
        %v3688 = vrot.slane %v3686, 4
        %v3689 = vrot.slane %v3148, 5
        %v3690 = vsel %vm1313, %v3688, %v3689
        %v3691 = vrot.slane %v3149, 5
        %v3692 = vrot.slane %v3691, 4
        %v3693 = vrot.slane %v3150, 5
        %v3694 = vsel %vm1313, %v3692, %v3693
        %v3695 = vrot.slane %v3693, 4
        %v3696 = vrot.slane %v3151, 5
        %v3697 = vsel %vm1313, %v3695, %v3696
        %v3698 = vrot.slane %v3152, 5
        %v3699 = vrot.slane %v3698, 4
        %v3700 = vrot.slane %v3153, 5
        %v3701 = vsel %vm1313, %v3699, %v3700
        %v3702 = vrot.slane %v3700, 4
        %v3703 = vrot.slane %v3154, 5
        %v3704 = vsel %vm1313, %v3702, %v3703
        %v3706 = vshrl.u32 %v3155, 16
        %v3708 = vrot.slane %v3706, 4
        %v3709 = vshll.u32 %v3155, 16
        %v3711 = vrot.slane %v3709, 5
        %v3712 = vor.u32 %v3708, %v3711
        %v3713 = vrot.slane %v3712, 4
        %v3715 = vshll.u32 %v3156, 16
        %v3717 = vrot.slane %v3715, 5
        %v3718 = vsel %vm878, %v3713, %v3717
        %v3719 = vshrl.u32 %v3156, 16
        %v3721 = vrot.slane %v3719, 4
        %v3722 = vor.u32 %v3721, %v3717
        %v3723 = vrot.slane %v3722, 4
        %v3725 = vshll.u32 %v3157, 16
        %v3727 = vrot.slane %v3725, 5
        %v3728 = vsel %vm878, %v3723, %v3727
        %v3732 = vrot.slane %v3155, 5
        %v3733 = vrot.slane %v3732, 4
        %v3734 = vrot.slane %v3156, 5
        %v3735 = vsel %vm1313, %v3733, %v3734
        %v3736 = vrot.slane %v3734, 4
        %v3737 = vrot.slane %v3157, 5
        %v3738 = vsel %vm1313, %v3736, %v3737
        %v3740 = vshrl.u32 %v3158, 16
        %v3742 = vrot.slane %v3740, 4
        %v3743 = vshll.u32 %v3158, 16
        %v3745 = vrot.slane %v3743, 5
        %v3746 = vor.u32 %v3742, %v3745
        %v3747 = vrot.slane %v3746, 4
        %v3749 = vshll.u32 %v3159, 16
        %v3751 = vrot.slane %v3749, 5
        %v3752 = vsel %vm878, %v3747, %v3751
        %v3753 = vshrl.u32 %v3159, 16
        %v3755 = vrot.slane %v3753, 4
        %v3756 = vor.u32 %v3755, %v3751
        %v3757 = vrot.slane %v3756, 4
        %v3759 = vshll.u32 %v3160, 16
        %v3761 = vrot.slane %v3759, 5
        %v3762 = vsel %vm878, %v3757, %v3761
        %v3766 = vrot.slane %v3158, 5
        %v3767 = vrot.slane %v3766, 4
        %v3768 = vrot.slane %v3159, 5
        %v3769 = vsel %vm1313, %v3767, %v3768
        %v3770 = vrot.slane %v3768, 4
        %v3771 = vrot.slane %v3160, 5
        %v3772 = vsel %vm1313, %v3770, %v3771
        %v3773 = vunpack.c.l.b16 %v3107
        %v3774 = vunpack.c.l.b16 %v3108
        %v3775 = vunpack.c.l.b16 %v3110
        %v3776 = vunpack.c.l.b16 %v3111
        %v3777 = vunpack.c.l.b16 %v3113
        %v3778 = vunpack.c.l.b16 %v3114
        %v3779 = vunpack.c.l.b16 %v3116
        %v3780 = vunpack.c.l.b16 %v3117
        %v3781 = vunpack.c.l.b16 %v3119
        %v3782 = vunpack.c.l.b16 %v3120
        %v3783 = vunpack.c.l.b16 %v3122
        %v3784 = vunpack.c.l.b16 %v3123
        %v3785 = vunpack.c.l.b16 %v3125
        %v3786 = vunpack.c.l.b16 %v3126
        %v3787 = vunpack.c.l.b16 %v3128
        %v3788 = vunpack.c.l.b16 %v3129
        %v3789 = vunpack.c.l.b16 %v3131
        %v3790 = vunpack.c.l.b16 %v3132
        %v3791 = vunpack.c.l.b16 %v3134
        %v3792 = vunpack.c.l.b16 %v3135
        %v3793 = vunpack.c.l.b16 %v3137
        %v3794 = vunpack.c.l.b16 %v3138
        %v3795 = vunpack.c.l.b16 %v3140
        %v3796 = vunpack.c.l.b16 %v3141
        %v3797 = vunpack.c.l.b16 %v3143
        %v3798 = vunpack.c.l.b16 %v3144
        %v3799 = vunpack.c.l.b16 %v3146
        %v3800 = vunpack.c.l.b16 %v3147
        %v3801 = vunpack.c.l.b16 %v3149
        %v3802 = vunpack.c.l.b16 %v3150
        %v3803 = vunpack.c.l.b16 %v3152
        %v3804 = vunpack.c.l.b16 %v3153
        %v3805 = vpack.c.b16 %v3774, %v3773
        %v3806 = vpack.c.b16 %v3776, %v3775
        %v3807 = vpack.c.b16 %v3778, %v3777
        %v3808 = vpack.c.b16 %v3780, %v3779
        %v3809 = vpack.c.b16 %v3782, %v3781
        %v3810 = vpack.c.b16 %v3784, %v3783
        %v3811 = vpack.c.b16 %v3786, %v3785
        %v3812 = vpack.c.b16 %v3788, %v3787
        %v3813 = vpack.c.b16 %v3790, %v3789
        %v3814 = vpack.c.b16 %v3792, %v3791
        %v3815 = vpack.c.b16 %v3794, %v3793
        %v3816 = vpack.c.b16 %v3796, %v3795
        %v3817 = vpack.c.b16 %v3798, %v3797
        %v3818 = vpack.c.b16 %v3800, %v3799
        %v3819 = vpack.c.b16 %v3802, %v3801
        %v3820 = vpack.c.b16 %v3804, %v3803
        %v3837 = vunpack.c.l.b16 %v3174
        %v3838 = vunpack.c.l.b16 %v3184
        %v3839 = vunpack.c.l.b16 %v3198
        %v3840 = vunpack.c.l.b16 %v3208
        %v3841 = vunpack.c.l.b16 %v3222
        %v3842 = vunpack.c.l.b16 %v3232
        %v3843 = vunpack.c.l.b16 %v3246
        %v3844 = vunpack.c.l.b16 %v3256
        %v3845 = vunpack.c.l.b16 %v3270
        %v3846 = vunpack.c.l.b16 %v3280
        %v3847 = vunpack.c.l.b16 %v3294
        %v3848 = vunpack.c.l.b16 %v3304
        %v3849 = vunpack.c.l.b16 %v3318
        %v3850 = vunpack.c.l.b16 %v3328
        %v3851 = vunpack.c.l.b16 %v3342
        %v3852 = vunpack.c.l.b16 %v3352
        %v3853 = vunpack.c.l.b16 %v3366
        %v3854 = vunpack.c.l.b16 %v3376
        %v3855 = vunpack.c.l.b16 %v3390
        %v3856 = vunpack.c.l.b16 %v3400
        %v3857 = vunpack.c.l.b16 %v3414
        %v3858 = vunpack.c.l.b16 %v3424
        %v3859 = vunpack.c.l.b16 %v3438
        %v3860 = vunpack.c.l.b16 %v3448
        %v3861 = vunpack.c.l.b16 %v3462
        %v3862 = vunpack.c.l.b16 %v3472
        %v3863 = vunpack.c.l.b16 %v3486
        %v3864 = vunpack.c.l.b16 %v3496
        %v3865 = vunpack.c.l.b16 %v3510
        %v3866 = vunpack.c.l.b16 %v3520
        %v3867 = vunpack.c.l.b16 %v3534
        %v3868 = vunpack.c.l.b16 %v3544
        %v3869 = vpack.c.b16 %v3838, %v3837
        %v3870 = vpack.c.b16 %v3840, %v3839
        %v3871 = vpack.c.b16 %v3842, %v3841
        %v3872 = vpack.c.b16 %v3844, %v3843
        %v3873 = vpack.c.b16 %v3846, %v3845
        %v3874 = vpack.c.b16 %v3848, %v3847
        %v3875 = vpack.c.b16 %v3850, %v3849
        %v3876 = vpack.c.b16 %v3852, %v3851
        %v3877 = vpack.c.b16 %v3854, %v3853
        %v3878 = vpack.c.b16 %v3856, %v3855
        %v3879 = vpack.c.b16 %v3858, %v3857
        %v3880 = vpack.c.b16 %v3860, %v3859
        %v3881 = vpack.c.b16 %v3862, %v3861
        %v3882 = vpack.c.b16 %v3864, %v3863
        %v3883 = vpack.c.b16 %v3866, %v3865
        %v3884 = vpack.c.b16 %v3868, %v3867
        %v3901 = vunpack.c.l.b16 %v3596
        %v3902 = vunpack.c.l.b16 %v3599
        %v3903 = vunpack.c.l.b16 %v3603
        %v3904 = vunpack.c.l.b16 %v3606
        %v3905 = vunpack.c.l.b16 %v3610
        %v3906 = vunpack.c.l.b16 %v3613
        %v3907 = vunpack.c.l.b16 %v3617
        %v3908 = vunpack.c.l.b16 %v3620
        %v3909 = vunpack.c.l.b16 %v3624
        %v3910 = vunpack.c.l.b16 %v3627
        %v3911 = vunpack.c.l.b16 %v3631
        %v3912 = vunpack.c.l.b16 %v3634
        %v3913 = vunpack.c.l.b16 %v3638
        %v3914 = vunpack.c.l.b16 %v3641
        %v3915 = vunpack.c.l.b16 %v3645
        %v3916 = vunpack.c.l.b16 %v3648
        %v3917 = vunpack.c.l.b16 %v3652
        %v3918 = vunpack.c.l.b16 %v3655
        %v3919 = vunpack.c.l.b16 %v3659
        %v3920 = vunpack.c.l.b16 %v3662
        %v3921 = vunpack.c.l.b16 %v3666
        %v3922 = vunpack.c.l.b16 %v3669
        %v3923 = vunpack.c.l.b16 %v3673
        %v3924 = vunpack.c.l.b16 %v3676
        %v3925 = vunpack.c.l.b16 %v3680
        %v3926 = vunpack.c.l.b16 %v3683
        %v3927 = vunpack.c.l.b16 %v3687
        %v3928 = vunpack.c.l.b16 %v3690
        %v3929 = vunpack.c.l.b16 %v3694
        %v3930 = vunpack.c.l.b16 %v3697
        %v3931 = vunpack.c.l.b16 %v3701
        %v3932 = vunpack.c.l.b16 %v3704
        %v3933 = vpack.c.b16 %v3902, %v3901
        %v3934 = vpack.c.b16 %v3904, %v3903
        %v3935 = vpack.c.b16 %v3906, %v3905
        %v3936 = vpack.c.b16 %v3908, %v3907
        %v3937 = vpack.c.b16 %v3910, %v3909
        %v3938 = vpack.c.b16 %v3912, %v3911
        %v3939 = vpack.c.b16 %v3914, %v3913
        %v3940 = vpack.c.b16 %v3916, %v3915
        %v3941 = vpack.c.b16 %v3918, %v3917
        %v3942 = vpack.c.b16 %v3920, %v3919
        %v3943 = vpack.c.b16 %v3922, %v3921
        %v3944 = vpack.c.b16 %v3924, %v3923
        %v3945 = vpack.c.b16 %v3926, %v3925
        %v3946 = vpack.c.b16 %v3928, %v3927
        %v3947 = vpack.c.b16 %v3930, %v3929
        %v3948 = vpack.c.b16 %v3932, %v3931
        %v3965 = vunpack.c.l.b16 %v3155
        %v3966 = vunpack.c.l.b16 %v3156
        %v3967 = vpack.c.b16 %v3966, %v3965
        %v3969 = vunpack.c.l.b16 %v3718
        %v3970 = vunpack.c.l.b16 %v3728
        %v3971 = vpack.c.b16 %v3970, %v3969
        %v3973 = vunpack.c.l.b16 %v3735
        %v3974 = vunpack.c.l.b16 %v3738
        %v3975 = vpack.c.b16 %v3974, %v3973
        %v3977 = vunpack.c.l.b16 %v3158
        %v3978 = vunpack.c.l.b16 %v3159
        %v3979 = vpack.c.b16 %v3978, %v3977
        %v3981 = vunpack.c.l.b16 %v3752
        %v3982 = vunpack.c.l.b16 %v3762
        %v3983 = vpack.c.b16 %v3982, %v3981
        %v3985 = vunpack.c.l.b16 %v3769
        %v3986 = vunpack.c.l.b16 %v3772
        %v3987 = vpack.c.b16 %v3986, %v3985
        %v3989 = vld [vmem:[#allocation4] sm:$0xf]
        %v3990 = vld [vmem:[#allocation4 + $0x4] sm:$0xf]
        %v3991 = vld [vmem:[#allocation4 + $0x8] sm:$0xf]
        %v3992 = vld [vmem:[#allocation4 + $0xc] sm:$0xf]
        %v3993 = vld [vmem:[#allocation4 + $0x10] sm:$0xf]
        %v3994 = vld [vmem:[#allocation4 + $0x14] sm:$0xf]
        %v3995 = vld [vmem:[#allocation4 + $0x18] sm:$0xf]
        %v3996 = vld [vmem:[#allocation4 + $0x1c] sm:$0xf]
        %v3997 = vld [vmem:[#allocation4 + $0x20] sm:$0xf]
        %v3998 = vld [vmem:[#allocation4 + $0x24] sm:$0xf]
        %v3999 = vld [vmem:[#allocation4 + $0x28] sm:$0xf]
        %v4000 = vld [vmem:[#allocation4 + $0x2c] sm:$0xf]
        %v4001 = vld [vmem:[#allocation4 + $0x30] sm:$0xf]
        %v4002 = vld [vmem:[#allocation4 + $0x34] sm:$0xf]
        %v4003 = vld [vmem:[#allocation4 + $0x38] sm:$0xf]
        %v4004 = vld [vmem:[#allocation4 + $0x3c] sm:$0xf]
        %v4005 = vld [vmem:[#allocation4 + $0x40] sm:$0xf]
        %v4006 = vld [vmem:[#allocation4 + $0x44] sm:$0xf]
        %v4007 = vld [vmem:[#allocation4 + $0x48] sm:$0xf]
        %v4008 = vld [vmem:[#allocation4 + $0x4c] sm:$0xf]
        %v4009 = vld [vmem:[#allocation4 + $0x50] sm:$0xf]
        %v4010 = vld [vmem:[#allocation4 + $0x54] sm:$0xf]
        %v4011 = vld [vmem:[#allocation4 + $0x58] sm:$0xf]
        %v4012 = vld [vmem:[#allocation4 + $0x5c] sm:$0xf]
        %v4013 = vld [vmem:[#allocation4 + $0x60] sm:$0xf]
        %v4014 = vld [vmem:[#allocation4 + $0x64] sm:$0xf]
        %v4015 = vld [vmem:[#allocation4 + $0x68] sm:$0xf]
        %v4016 = vld [vmem:[#allocation4 + $0x6c] sm:$0xf]
        %v4017 = vld [vmem:[#allocation4 + $0x70] sm:$0xf]
        %v4018 = vld [vmem:[#allocation4 + $0x74] sm:$0xf]
        %v4019 = vld [vmem:[#allocation4 + $0x78] sm:$0xf]
        %v4020 = vld [vmem:[#allocation4 + $0x7c] sm:$0xf]
        %v4021 = vld [vmem:[#allocation4 + $0x80] sm:$0xf]
        %v4022 = vld [vmem:[#allocation4 + $0x84] sm:$0xf]
        %v4023 = vld [vmem:[#allocation4 + $0x88] sm:$0xf]
        %v4024 = vld [vmem:[#allocation4 + $0x8c] sm:$0xf]
        %v4025 = vld [vmem:[#allocation4 + $0x90] sm:$0xf]
        %v4026 = vld [vmem:[#allocation4 + $0x94] sm:$0xf]
        %v4027 = vld [vmem:[#allocation4 + $0x98] sm:$0xf]
        %v4028 = vld [vmem:[#allocation4 + $0x9c] sm:$0xf]
        %v4029 = vld [vmem:[#allocation4 + $0xa0] sm:$0xf]
        %v4030 = vld [vmem:[#allocation4 + $0xa4] sm:$0xf]
        %v4031 = vld [vmem:[#allocation4 + $0xa8] sm:$0xf]
        %v4032 = vld [vmem:[#allocation4 + $0xac] sm:$0xf]
        %v4033 = vld [vmem:[#allocation4 + $0xb0] sm:$0xf]
        %v4034 = vld [vmem:[#allocation4 + $0xb4] sm:$0xf]
        %v4035 = vld [vmem:[#allocation4 + $0xb8] sm:$0xf]
        %v4036 = vld [vmem:[#allocation4 + $0xbc] sm:$0xf]
        %v4037 = vld [vmem:[#allocation4 + $0xc0] sm:$0xf]
        %v4038 = vld [vmem:[#allocation4 + $0xc4] sm:$0xf]
        %v4039 = vld [vmem:[#allocation4 + $0xc8] sm:$0xf]
        %v4040 = vld [vmem:[#allocation4 + $0xcc] sm:$0xf]
        %v4041 = vld [vmem:[#allocation4 + $0xd0] sm:$0xf]
        %v4042 = vld [vmem:[#allocation4 + $0xd4] sm:$0xf]
        %v4043 = vld [vmem:[#allocation4 + $0xd8] sm:$0xf]
        %v4044 = vld [vmem:[#allocation4 + $0xdc] sm:$0xf]
        %v4045 = vld [vmem:[#allocation4 + $0xe0] sm:$0xf]
        %v4046 = vld [vmem:[#allocation4 + $0xe4] sm:$0xf]
        %v4047 = vld [vmem:[#allocation4 + $0xe8] sm:$0xf]
        %v4048 = vld [vmem:[#allocation4 + $0xec] sm:$0xf]
        %v4049 = vld [vmem:[#allocation4 + $0xf0] sm:$0xf]
        %v4050 = vld [vmem:[#allocation4 + $0xf4] sm:$0xf]
        %v4051 = vld [vmem:[#allocation4 + $0xf8] sm:$0xf]
        %v4052 = vld [vmem:[#allocation4 + $0xfc] sm:$0xf]
        %v4053 = vld [vmem:[#allocation4 + $0x100] sm:$0xf]
        %v4054 = vld [vmem:[#allocation4 + $0x104] sm:$0xf]
        %v4055 = vld [vmem:[#allocation4 + $0x108] sm:$0xf]
        %v4056 = vld [vmem:[#allocation4 + $0x10c] sm:$0xf]
        %v4057 = vld [vmem:[#allocation4 + $0x110] sm:$0xf]
        %v4058 = vld [vmem:[#allocation4 + $0x114] sm:$0xf]
        %v4059 = vld [vmem:[#allocation4 + $0x118] sm:$0xf]
        %v4060 = vld [vmem:[#allocation4 + $0x11c] sm:$0xf]
        %v4061 = vld [vmem:[#allocation4 + $0x120] sm:$0xf]
        %v4062 = vld [vmem:[#allocation4 + $0x124] sm:$0xf]
        %v4063 = vld [vmem:[#allocation4 + $0x128] sm:$0xf]
        %v4064 = vld [vmem:[#allocation4 + $0x12c] sm:$0xf]
        %v4065 = vld [vmem:[#allocation4 + $0x130] sm:$0xf]
        %v4066 = vld [vmem:[#allocation4 + $0x134] sm:$0xf]
        %v4067 = vld [vmem:[#allocation4 + $0x138] sm:$0xf]
        %v4068 = vld [vmem:[#allocation4 + $0x13c] sm:$0xf]
        %v4069 = vld [vmem:[#allocation4 + $0x140] sm:$0xf]
        %v4070 = vld [vmem:[#allocation4 + $0x144] sm:$0xf]
        %v4071 = vld [vmem:[#allocation4 + $0x148] sm:$0xf]
        %v4072 = vld [vmem:[#allocation4 + $0x14c] sm:$0xf]
        %v4073 = vld [vmem:[#allocation4 + $0x150] sm:$0xf]
        %v4074 = vld [vmem:[#allocation4 + $0x154] sm:$0xf]
        %v4075 = vld [vmem:[#allocation4 + $0x158] sm:$0xf]
        %v4076 = vld [vmem:[#allocation4 + $0x15c] sm:$0xf]
        %v4077 = vld [vmem:[#allocation4 + $0x160] sm:$0xf]
        %v4078 = vld [vmem:[#allocation4 + $0x164] sm:$0xf]
        %v4079 = vld [vmem:[#allocation4 + $0x168] sm:$0xf]
        %v4080 = vld [vmem:[#allocation4 + $0x16c] sm:$0xf]
        %v4081 = vld [vmem:[#allocation4 + $0x170] sm:$0xf]
        %v4082 = vld [vmem:[#allocation4 + $0x174] sm:$0xf]
        %v4083 = vld [vmem:[#allocation4 + $0x178] sm:$0xf]
        %v4084 = vld [vmem:[#allocation4 + $0x17c] sm:$0xf]
        %v4085 = vld [vmem:[#allocation4 + $0x180] sm:$0xf]
        %v4086 = vld [vmem:[#allocation4 + $0x184] sm:$0xf]
        %v4087 = vld [vmem:[#allocation4 + $0x188] sm:$0xf]
        %v4088 = vld [vmem:[#allocation4 + $0x18c] sm:$0xf]
        %v4089 = vld [vmem:[#allocation4 + $0x190] sm:$0xf]
        %v4090 = vld [vmem:[#allocation4 + $0x194] sm:$0xf]
        %v4091 = vld [vmem:[#allocation4 + $0x198] sm:$0xf]
        %v4092 = vld [vmem:[#allocation4 + $0x19c] sm:$0xf]
        %v4093 = vld [vmem:[#allocation4 + $0x1a0] sm:$0xf]
        %v4094 = vld [vmem:[#allocation4 + $0x1a4] sm:$0xf]
        %v4095 = vld [vmem:[#allocation4 + $0x1a8] sm:$0xf]
        %v4096 = vld [vmem:[#allocation4 + $0x1ac] sm:$0xf]
        %v4097 = vld [vmem:[#allocation4 + $0x1b0] sm:$0xf]
        %v4098 = vld [vmem:[#allocation4 + $0x1b4] sm:$0xf]
        %v4099 = vld [vmem:[#allocation4 + $0x1b8] sm:$0xf]
        %v4100 = vld [vmem:[#allocation4 + $0x1bc] sm:$0xf]
        %v4101 = vld [vmem:[#allocation4 + $0x1c0] sm:$0xf]
        %v4102 = vld [vmem:[#allocation4 + $0x1c4] sm:$0xf]
        %v4103 = vld [vmem:[#allocation4 + $0x1c8] sm:$0xf]
        %v4104 = vld [vmem:[#allocation4 + $0x1cc] sm:$0xf]
        %v4105 = vld [vmem:[#allocation4 + $0x1d0] sm:$0xf]
        %v4106 = vld [vmem:[#allocation4 + $0x1d4] sm:$0xf]
        %v4107 = vld [vmem:[#allocation4 + $0x1d8] sm:$0xf]
        %v4108 = vld [vmem:[#allocation4 + $0x1dc] sm:$0xf]
        %v4109 = vld [vmem:[#allocation4 + $0x1e0] sm:$0xf]
        %v4110 = vld [vmem:[#allocation4 + $0x1e4] sm:$0xf]
        %v4111 = vld [vmem:[#allocation4 + $0x1e8] sm:$0xf]
        %v4112 = vld [vmem:[#allocation4 + $0x1ec] sm:$0xf]
        %v4113 = vld [vmem:[#allocation4 + $0x1f0] sm:$0xf]
        %v4114 = vld [vmem:[#allocation4 + $0x1f4] sm:$0xf]
        %v4115 = vld [vmem:[#allocation4 + $0x1f8] sm:$0xf]
        %v4116 = vld [vmem:[#allocation4 + $0x1fc] sm:$0xf]
        %v4117 = vld [vmem:[#allocation4 + $0x200] sm:$0xf]
        %v4118 = vld [vmem:[#allocation4 + $0x204] sm:$0xf]
        %v4119 = vld [vmem:[#allocation4 + $0x208] sm:$0xf]
        %v4120 = vld [vmem:[#allocation4 + $0x20c] sm:$0xf]
        %v4121 = vld [vmem:[#allocation4 + $0x210] sm:$0xf]
        %v4122 = vld [vmem:[#allocation4 + $0x214] sm:$0xf]
        %v4123 = vld [vmem:[#allocation4 + $0x218] sm:$0xf]
        %v4124 = vld [vmem:[#allocation4 + $0x21c] sm:$0xf]
        %v4125 = vld [vmem:[#allocation4 + $0x220] sm:$0xf]
        %v4126 = vld [vmem:[#allocation4 + $0x224] sm:$0xf]
        %v4127 = vld [vmem:[#allocation4 + $0x228] sm:$0xf]
        %v4128 = vld [vmem:[#allocation4 + $0x22c] sm:$0xf]
        %v4129 = vld [vmem:[#allocation4 + $0x230] sm:$0xf]
        %v4130 = vld [vmem:[#allocation4 + $0x234] sm:$0xf]
        %v4131 = vld [vmem:[#allocation4 + $0x238] sm:$0xf]
        %v4132 = vld [vmem:[#allocation4 + $0x23c] sm:$0xf]
        %v4277 = vunpack.c.l.b16 %v3989
        %v4278 = vunpack.c.l.b16 %v3990
        %v4279 = vunpack.c.l.b16 %v3991
        %v4280 = vunpack.c.l.b16 %v3992
        %v4281 = vunpack.c.l.b16 %v3993
        %v4282 = vunpack.c.l.b16 %v3994
        %v4283 = vunpack.c.l.b16 %v3995
        %v4284 = vunpack.c.l.b16 %v3996
        %v4285 = vunpack.c.l.b16 %v3997
        %v4286 = vunpack.c.l.b16 %v3998
        %v4287 = vunpack.c.l.b16 %v3999
        %v4288 = vunpack.c.l.b16 %v4000
        %v4289 = vunpack.c.l.b16 %v4001
        %v4290 = vunpack.c.l.b16 %v4002
        %v4291 = vunpack.c.l.b16 %v4003
        %v4292 = vunpack.c.l.b16 %v4004
        %v4293 = vunpack.c.l.b16 %v4005
        %v4294 = vunpack.c.l.b16 %v4006
        %v4295 = vunpack.c.l.b16 %v4007
        %v4296 = vunpack.c.l.b16 %v4008
        %v4297 = vunpack.c.l.b16 %v4009
        %v4298 = vunpack.c.l.b16 %v4010
        %v4299 = vunpack.c.l.b16 %v4011
        %v4300 = vunpack.c.l.b16 %v4012
        %v4301 = vunpack.c.l.b16 %v4013
        %v4302 = vunpack.c.l.b16 %v4014
        %v4303 = vunpack.c.l.b16 %v4015
        %v4304 = vunpack.c.l.b16 %v4016
        %v4305 = vunpack.c.l.b16 %v4017
        %v4306 = vunpack.c.l.b16 %v4018
        %v4307 = vunpack.c.l.b16 %v4019
        %v4308 = vunpack.c.l.b16 %v4020
        %v4309 = vunpack.c.l.b16 %v4021
        %v4310 = vunpack.c.l.b16 %v4022
        %v4311 = vunpack.c.l.b16 %v4023
        %v4312 = vunpack.c.l.b16 %v4024
        %v4313 = vunpack.c.l.b16 %v4025
        %v4314 = vunpack.c.l.b16 %v4026
        %v4315 = vunpack.c.l.b16 %v4027
        %v4316 = vunpack.c.l.b16 %v4028
        %v4317 = vunpack.c.l.b16 %v4029
        %v4318 = vunpack.c.l.b16 %v4030
        %v4319 = vunpack.c.l.b16 %v4031
        %v4320 = vunpack.c.l.b16 %v4032
        %v4321 = vunpack.c.l.b16 %v4033
        %v4322 = vunpack.c.l.b16 %v4034
        %v4323 = vunpack.c.l.b16 %v4035
        %v4324 = vunpack.c.l.b16 %v4036
        %v4325 = vunpack.c.l.b16 %v4037
        %v4326 = vunpack.c.l.b16 %v4038
        %v4327 = vunpack.c.l.b16 %v4039
        %v4328 = vunpack.c.l.b16 %v4040
        %v4329 = vunpack.c.l.b16 %v4041
        %v4330 = vunpack.c.l.b16 %v4042
        %v4331 = vunpack.c.l.b16 %v4043
        %v4332 = vunpack.c.l.b16 %v4044
        %v4333 = vunpack.c.l.b16 %v4045
        %v4334 = vunpack.c.l.b16 %v4046
        %v4335 = vunpack.c.l.b16 %v4047
        %v4336 = vunpack.c.l.b16 %v4048
        %v4337 = vunpack.c.l.b16 %v4049
        %v4338 = vunpack.c.l.b16 %v4050
        %v4339 = vunpack.c.l.b16 %v4051
        %v4340 = vunpack.c.l.b16 %v4052
        %v4341 = vunpack.c.l.b16 %v4053
        %v4342 = vunpack.c.l.b16 %v4054
        %v4343 = vunpack.c.l.b16 %v4055
        %v4344 = vunpack.c.l.b16 %v4056
        %v4345 = vunpack.c.l.b16 %v4057
        %v4346 = vunpack.c.l.b16 %v4058
        %v4347 = vunpack.c.l.b16 %v4059
        %v4348 = vunpack.c.l.b16 %v4060
        %v4349 = vunpack.c.l.b16 %v4061
        %v4350 = vunpack.c.l.b16 %v4062
        %v4351 = vunpack.c.l.b16 %v4063
        %v4352 = vunpack.c.l.b16 %v4064
        %v4353 = vunpack.c.l.b16 %v4065
        %v4354 = vunpack.c.l.b16 %v4066
        %v4355 = vunpack.c.l.b16 %v4067
        %v4356 = vunpack.c.l.b16 %v4068
        %v4357 = vunpack.c.l.b16 %v4069
        %v4358 = vunpack.c.l.b16 %v4070
        %v4359 = vunpack.c.l.b16 %v4071
        %v4360 = vunpack.c.l.b16 %v4072
        %v4361 = vunpack.c.l.b16 %v4073
        %v4362 = vunpack.c.l.b16 %v4074
        %v4363 = vunpack.c.l.b16 %v4075
        %v4364 = vunpack.c.l.b16 %v4076
        %v4365 = vunpack.c.l.b16 %v4077
        %v4366 = vunpack.c.l.b16 %v4078
        %v4367 = vunpack.c.l.b16 %v4079
        %v4368 = vunpack.c.l.b16 %v4080
        %v4369 = vunpack.c.l.b16 %v4081
        %v4370 = vunpack.c.l.b16 %v4082
        %v4371 = vunpack.c.l.b16 %v4083
        %v4372 = vunpack.c.l.b16 %v4084
        %v4373 = vunpack.c.l.b16 %v4085
        %v4374 = vunpack.c.l.b16 %v4086
        %v4375 = vunpack.c.l.b16 %v4087
        %v4376 = vunpack.c.l.b16 %v4088
        %v4377 = vunpack.c.l.b16 %v4089
        %v4378 = vunpack.c.l.b16 %v4090
        %v4379 = vunpack.c.l.b16 %v4091
        %v4380 = vunpack.c.l.b16 %v4092
        %v4381 = vunpack.c.l.b16 %v4093
        %v4382 = vunpack.c.l.b16 %v4094
        %v4383 = vunpack.c.l.b16 %v4095
        %v4384 = vunpack.c.l.b16 %v4096
        %v4385 = vunpack.c.l.b16 %v4097
        %v4386 = vunpack.c.l.b16 %v4098
        %v4387 = vunpack.c.l.b16 %v4099
        %v4388 = vunpack.c.l.b16 %v4100
        %v4389 = vunpack.c.l.b16 %v4101
        %v4390 = vunpack.c.l.b16 %v4102
        %v4391 = vunpack.c.l.b16 %v4103
        %v4392 = vunpack.c.l.b16 %v4104
        %v4393 = vunpack.c.l.b16 %v4105
        %v4394 = vunpack.c.l.b16 %v4106
        %v4395 = vunpack.c.l.b16 %v4107
        %v4396 = vunpack.c.l.b16 %v4108
        %v4397 = vunpack.c.l.b16 %v4109
        %v4398 = vunpack.c.l.b16 %v4110
        %v4399 = vunpack.c.l.b16 %v4111
        %v4400 = vunpack.c.l.b16 %v4112
        %v4401 = vunpack.c.l.b16 %v4113
        %v4402 = vunpack.c.l.b16 %v4114
        %v4403 = vunpack.c.l.b16 %v4115
        %v4404 = vunpack.c.l.b16 %v4116
        %v4405 = vunpack.c.l.b16 %v4117
        %v4406 = vunpack.c.l.b16 %v4118
        %v4407 = vunpack.c.l.b16 %v4119
        %v4408 = vunpack.c.l.b16 %v4120
        %v4409 = vunpack.c.l.b16 %v4121
        %v4410 = vunpack.c.l.b16 %v4122
        %v4411 = vunpack.c.l.b16 %v4123
        %v4412 = vunpack.c.l.b16 %v4124
        %v4413 = vunpack.c.l.b16 %v4125
        %v4414 = vunpack.c.l.b16 %v4126
        %v4415 = vunpack.c.l.b16 %v4127
        %v4416 = vunpack.c.l.b16 %v4128
        %v4417 = vunpack.c.l.b16 %v4129
        %v4418 = vunpack.c.l.b16 %v4130
        %v4419 = vunpack.c.l.b16 %v4131
        %v4420 = vunpack.c.l.b16 %v4132
        %v4421 = vpack.c.b16 %v4278, %v4277
        %v4422 = vpack.c.b16 %v4280, %v4279
        %v4423 = vpack.c.b16 %v4282, %v4281
        %v4424 = vpack.c.b16 %v4284, %v4283
        %v4425 = vpack.c.b16 %v4286, %v4285
        %v4426 = vpack.c.b16 %v4288, %v4287
        %v4427 = vpack.c.b16 %v4290, %v4289
        %v4428 = vpack.c.b16 %v4292, %v4291
        %v4429 = vpack.c.b16 %v4294, %v4293
        %v4430 = vpack.c.b16 %v4296, %v4295
        %v4431 = vpack.c.b16 %v4298, %v4297
        %v4432 = vpack.c.b16 %v4300, %v4299
        %v4433 = vpack.c.b16 %v4302, %v4301
        %v4434 = vpack.c.b16 %v4304, %v4303
        %v4435 = vpack.c.b16 %v4306, %v4305
        %v4436 = vpack.c.b16 %v4308, %v4307
        %v4437 = vpack.c.b16 %v4310, %v4309
        %v4438 = vpack.c.b16 %v4312, %v4311
        %v4439 = vpack.c.b16 %v4314, %v4313
        %v4440 = vpack.c.b16 %v4316, %v4315
        %v4441 = vpack.c.b16 %v4318, %v4317
        %v4442 = vpack.c.b16 %v4320, %v4319
        %v4443 = vpack.c.b16 %v4322, %v4321
        %v4444 = vpack.c.b16 %v4324, %v4323
        %v4445 = vpack.c.b16 %v4326, %v4325
        %v4446 = vpack.c.b16 %v4328, %v4327
        %v4447 = vpack.c.b16 %v4330, %v4329
        %v4448 = vpack.c.b16 %v4332, %v4331
        %v4449 = vpack.c.b16 %v4334, %v4333
        %v4450 = vpack.c.b16 %v4336, %v4335
        %v4451 = vpack.c.b16 %v4338, %v4337
        %v4452 = vpack.c.b16 %v4340, %v4339
        %v4453 = vpack.c.b16 %v4342, %v4341
        %v4454 = vpack.c.b16 %v4344, %v4343
        %v4455 = vpack.c.b16 %v4346, %v4345
        %v4456 = vpack.c.b16 %v4348, %v4347
        %v4457 = vpack.c.b16 %v4350, %v4349
        %v4458 = vpack.c.b16 %v4352, %v4351
        %v4459 = vpack.c.b16 %v4354, %v4353
        %v4460 = vpack.c.b16 %v4356, %v4355
        %v4461 = vpack.c.b16 %v4358, %v4357
        %v4462 = vpack.c.b16 %v4360, %v4359
        %v4463 = vpack.c.b16 %v4362, %v4361
        %v4464 = vpack.c.b16 %v4364, %v4363
        %v4465 = vpack.c.b16 %v4366, %v4365
        %v4466 = vpack.c.b16 %v4368, %v4367
        %v4467 = vpack.c.b16 %v4370, %v4369
        %v4468 = vpack.c.b16 %v4372, %v4371
        %v4469 = vpack.c.b16 %v4374, %v4373
        %v4470 = vpack.c.b16 %v4376, %v4375
        %v4471 = vpack.c.b16 %v4378, %v4377
        %v4472 = vpack.c.b16 %v4380, %v4379
        %v4473 = vpack.c.b16 %v4382, %v4381
        %v4474 = vpack.c.b16 %v4384, %v4383
        %v4475 = vpack.c.b16 %v4386, %v4385
        %v4476 = vpack.c.b16 %v4388, %v4387
        %v4477 = vpack.c.b16 %v4390, %v4389
        %v4478 = vpack.c.b16 %v4392, %v4391
        %v4479 = vpack.c.b16 %v4394, %v4393
        %v4480 = vpack.c.b16 %v4396, %v4395
        %v4481 = vpack.c.b16 %v4398, %v4397
        %v4482 = vpack.c.b16 %v4400, %v4399
        %v4483 = vpack.c.b16 %v4402, %v4401
        %v4484 = vpack.c.b16 %v4404, %v4403
        %v4485 = vpack.c.b16 %v4406, %v4405
        %v4486 = vpack.c.b16 %v4408, %v4407
        %v4487 = vpack.c.b16 %v4410, %v4409
        %v4488 = vpack.c.b16 %v4412, %v4411
        %v4489 = vpack.c.b16 %v4414, %v4413
        %v4490 = vpack.c.b16 %v4416, %v4415
        %v4491 = vpack.c.b16 %v4418, %v4417
        %v4492 = vpack.c.b16 %v4420, %v4419
        %4565 = vmatprep.subr.bf16.mxu0 0
        %4566 = vmatpush1.bf16.msra.mxu0 %v4421
        %4567 = vmatprep.subr.bf16.mxu0 0
        %4568 = vmatpush1.bf16.msra.mxu0 %v4422
        %4569 = vmatprep.subr.bf16.mxu0 0
        %4570 = vmatpush1.bf16.msra.mxu0 %v4423
        %4571 = vmatprep.subr.bf16.mxu0 0
        %4572 = vmatpush1.bf16.msra.mxu0 %v4424
        %4573 = vmatprep.subr.bf16.mxu0 0
        %4574 = vmatpush1.bf16.msra.mxu0 %v4425
        %4575 = vmatprep.subr.bf16.mxu0 0
        %4576 = vmatpush1.bf16.msra.mxu0 %v4426
        %4577 = vmatprep.subr.bf16.mxu0 0
        %4578 = vmatpush1.bf16.msra.mxu0 %v4427
        %4579 = vmatprep.subr.bf16.mxu0 0
        %4580 = vmatpush1.bf16.msra.mxu0 %v4428
        %4581 = vmatprep.subr.bf16.mxu0 0
        %4582 = vmatpush1.bf16.msra.mxu0 %v4429
        %4583 = vmatprep.subr.bf16.mxu0 0
        %4584 = vmatpush1.bf16.msra.mxu0 %v4430
        %4585 = vmatprep.subr.bf16.mxu0 0
        %4586 = vmatpush1.bf16.msra.mxu0 %v4431
        %4587 = vmatprep.subr.bf16.mxu0 0
        %4588 = vmatpush1.bf16.msra.mxu0 %v4432
        %4589 = vmatprep.subr.bf16.mxu0 0
        %4590 = vmatpush1.bf16.msra.mxu0 %v4433
        %4591 = vmatprep.subr.bf16.mxu0 0
        %4592 = vmatpush1.bf16.msra.mxu0 %v4434
        %4593 = vmatprep.subr.bf16.mxu0 0
        %4594 = vmatpush1.bf16.msra.mxu0 %v4435
        %4595 = vmatprep.subr.bf16.mxu0 0
        %4596 = vmatpush1.bf16.msra.mxu0 %v4436
        %4597 = vmatprep.mubr.bf16.mxu0 %v3869
        %4598 = vmatmul.mubr.bf16.gmra.mrb[0].mxu0 %v3805
        %v4599 = vpop.f32.mrb[0].mxu0
        %v4600 = vadd.f32 0.0, %v4599
        %v4601 = vpop.f32.mrb[0].mxu0
        %v4602 = vpop.f32.mrb[0].mxu0
        %v4603 = vadd.f32 0.0, %v4602
        %v4604 = vpop.f32.mrb[0].mxu0
        %4605 = vmatprep.mubr.bf16.mxu0 %v3870
        %4606 = vmatmul.mubr.bf16.gmra.mrb[0].mxu0 %v3806
        %v4607 = vpop.f32.mrb[0].mxu0
        %v4608 = vadd.f32 0.0, %v4607
        %v4609 = vpop.f32.mrb[0].mxu0
        %v4610 = vpop.f32.mrb[0].mxu0
        %v4611 = vadd.f32 0.0, %v4610
        %v4612 = vpop.f32.mrb[0].mxu0
        %4613 = vmatprep.mubr.bf16.mxu0 %v3871
        %4614 = vmatmul.mubr.bf16.gmra.mrb[0].mxu0 %v3807
        %v4615 = vpop.f32.mrb[0].mxu0
        %v4616 = vadd.f32 0.0, %v4615
        %v4617 = vpop.f32.mrb[0].mxu0
        %v4618 = vpop.f32.mrb[0].mxu0
        %v4619 = vadd.f32 0.0, %v4618
        %v4620 = vpop.f32.mrb[0].mxu0
        %4621 = vmatprep.mubr.bf16.mxu0 %v3872
        %4622 = vmatmul.mubr.bf16.gmra.mrb[0].mxu0 %v3808
        %v4623 = vpop.f32.mrb[0].mxu0
        %v4624 = vadd.f32 0.0, %v4623
        %v4625 = vpop.f32.mrb[0].mxu0
        %v4626 = vpop.f32.mrb[0].mxu0
        %v4627 = vadd.f32 0.0, %v4626
        %v4628 = vpop.f32.mrb[0].mxu0
        %4629 = vmatprep.mubr.bf16.mxu0 %v3873
        %4630 = vmatmul.mubr.bf16.gmra.mrb[0].mxu0 %v3809
        %v4631 = vpop.f32.mrb[0].mxu0
        %v4632 = vadd.f32 0.0, %v4631
        %v4633 = vpop.f32.mrb[0].mxu0
        %v4634 = vpop.f32.mrb[0].mxu0
        %v4635 = vadd.f32 0.0, %v4634
        %v4636 = vpop.f32.mrb[0].mxu0
        %4637 = vmatprep.mubr.bf16.mxu0 %v3874
        %4638 = vmatmul.mubr.bf16.gmra.mrb[0].mxu0 %v3810
        %v4639 = vpop.f32.mrb[0].mxu0
        %v4640 = vadd.f32 0.0, %v4639
        %v4641 = vpop.f32.mrb[0].mxu0
        %v4642 = vpop.f32.mrb[0].mxu0
        %v4643 = vadd.f32 0.0, %v4642
        %v4644 = vpop.f32.mrb[0].mxu0
        %4645 = vmatprep.mubr.bf16.mxu0 %v3875
        %4646 = vmatmul.mubr.bf16.gmra.mrb[0].mxu0 %v3811
        %v4647 = vpop.f32.mrb[0].mxu0
        %v4648 = vadd.f32 0.0, %v4647
        %v4649 = vpop.f32.mrb[0].mxu0
        %v4650 = vpop.f32.mrb[0].mxu0
        %v4651 = vadd.f32 0.0, %v4650
        %v4652 = vpop.f32.mrb[0].mxu0
        %4653 = vmatprep.mubr.bf16.mxu0 %v3876
        %4654 = vmatmul.mubr.bf16.gmra.mrb[0].mxu0 %v3812
        %v4655 = vpop.f32.mrb[0].mxu0
        %v4656 = vadd.f32 0.0, %v4655
        %v4657 = vpop.f32.mrb[0].mxu0
        %v4658 = vpop.f32.mrb[0].mxu0
        %v4659 = vadd.f32 0.0, %v4658
        %v4660 = vpop.f32.mrb[0].mxu0
        %4661 = vmatprep.mubr.bf16.mxu0 %v3877
        %4662 = vmatmul.mubr.bf16.gmra.mrb[0].mxu0 %v3813
        %v4663 = vpop.f32.mrb[0].mxu0
        %v4664 = vadd.f32 0.0, %v4663
        %v4665 = vpop.f32.mrb[0].mxu0
        %v4666 = vpop.f32.mrb[0].mxu0
        %v4667 = vadd.f32 0.0, %v4666
        %v4668 = vpop.f32.mrb[0].mxu0
        %4669 = vmatprep.mubr.bf16.mxu0 %v3878
        %4670 = vmatmul.mubr.bf16.gmra.mrb[0].mxu0 %v3814
        %v4671 = vpop.f32.mrb[0].mxu0
        %v4672 = vadd.f32 0.0, %v4671
        %v4673 = vpop.f32.mrb[0].mxu0
        %v4674 = vpop.f32.mrb[0].mxu0
        %v4675 = vadd.f32 0.0, %v4674
        %v4676 = vpop.f32.mrb[0].mxu0
        %4677 = vmatprep.mubr.bf16.mxu0 %v3879
        %4678 = vmatmul.mubr.bf16.gmra.mrb[0].mxu0 %v3815
        %v4679 = vpop.f32.mrb[0].mxu0
        %v4680 = vadd.f32 0.0, %v4679
        %v4681 = vpop.f32.mrb[0].mxu0
        %v4682 = vpop.f32.mrb[0].mxu0
        %v4683 = vadd.f32 0.0, %v4682
        %v4684 = vpop.f32.mrb[0].mxu0
        %4685 = vmatprep.mubr.bf16.mxu0 %v3880
        %4686 = vmatmul.mubr.bf16.gmra.mrb[0].mxu0 %v3816
        %v4687 = vpop.f32.mrb[0].mxu0
        %v4688 = vadd.f32 0.0, %v4687
        %v4689 = vpop.f32.mrb[0].mxu0
        %v4690 = vpop.f32.mrb[0].mxu0
        %v4691 = vadd.f32 0.0, %v4690
        %v4692 = vpop.f32.mrb[0].mxu0
        %4693 = vmatprep.mubr.bf16.mxu0 %v3881
        %4694 = vmatmul.mubr.bf16.gmra.mrb[0].mxu0 %v3817
        %v4695 = vpop.f32.mrb[0].mxu0
        %v4696 = vadd.f32 0.0, %v4695
        %v4697 = vpop.f32.mrb[0].mxu0
        %v4698 = vpop.f32.mrb[0].mxu0
        %v4699 = vadd.f32 0.0, %v4698
        %v4700 = vpop.f32.mrb[0].mxu0
        %4701 = vmatprep.mubr.bf16.mxu0 %v3882
        %4702 = vmatmul.mubr.bf16.gmra.mrb[0].mxu0 %v3818
        %v4703 = vpop.f32.mrb[0].mxu0
        %v4704 = vadd.f32 0.0, %v4703
        %v4705 = vpop.f32.mrb[0].mxu0
        %v4706 = vpop.f32.mrb[0].mxu0
        %v4707 = vadd.f32 0.0, %v4706
        %v4708 = vpop.f32.mrb[0].mxu0
        %4709 = vmatprep.mubr.bf16.mxu0 %v3883
        %4710 = vmatmul.mubr.bf16.gmra.mrb[0].mxu0 %v3819
        %v4711 = vpop.f32.mrb[0].mxu0
        %v4712 = vadd.f32 0.0, %v4711
        %v4713 = vpop.f32.mrb[0].mxu0
        %v4714 = vpop.f32.mrb[0].mxu0
        %v4715 = vadd.f32 0.0, %v4714
        %v4716 = vpop.f32.mrb[0].mxu0
        %4717 = vmatprep.mubr.bf16.mxu0 %v3884
        %4718 = vmatmul.mubr.bf16.gmra.mrb[0].mxu0 %v3820
        %v4719 = vpop.f32.mrb[0].mxu0
        %v4720 = vadd.f32 0.0, %v4719
        %v4721 = vpop.f32.mrb[0].mxu0
        %v4722 = vpop.f32.mrb[0].mxu0
        %v4723 = vadd.f32 0.0, %v4722
        %v4724 = vpop.f32.mrb[0].mxu0
        %4725 = vdwg.mxu0
        %4726 = vmatprep.subr.bf16.mxu0 0
        %4727 = vmatpush1.bf16.msra.mxu0 %v4437
        %4728 = vmatprep.subr.bf16.mxu0 0
        %4729 = vmatpush1.bf16.msra.mxu0 %v4438
        %4730 = vmatprep.subr.bf16.mxu0 0
        %4731 = vmatpush1.bf16.msra.mxu0 %v4439
        %4732 = vmatprep.subr.bf16.mxu0 0
        %4733 = vmatpush1.bf16.msra.mxu0 %v4440
        %4734 = vmatprep.subr.bf16.mxu0 0
        %4735 = vmatpush1.bf16.msra.mxu0 %v4441
        %4736 = vmatprep.subr.bf16.mxu0 0
        %4737 = vmatpush1.bf16.msra.mxu0 %v4442
        %4738 = vmatprep.subr.bf16.mxu0 0
        %4739 = vmatpush1.bf16.msra.mxu0 %v4443
        %4740 = vmatprep.subr.bf16.mxu0 0
        %4741 = vmatpush1.bf16.msra.mxu0 %v4444
        %4742 = vmatprep.subr.bf16.mxu0 0
        %4743 = vmatpush1.bf16.msra.mxu0 %v4445
        %4744 = vmatprep.subr.bf16.mxu0 0
        %4745 = vmatpush1.bf16.msra.mxu0 %v4446
        %4746 = vmatprep.subr.bf16.mxu0 0
        %4747 = vmatpush1.bf16.msra.mxu0 %v4447
        %4748 = vmatprep.subr.bf16.mxu0 0
        %4749 = vmatpush1.bf16.msra.mxu0 %v4448
        %4750 = vmatprep.subr.bf16.mxu0 0
        %4751 = vmatpush1.bf16.msra.mxu0 %v4449
        %4752 = vmatprep.subr.bf16.mxu0 0
        %4753 = vmatpush1.bf16.msra.mxu0 %v4450
        %4754 = vmatprep.subr.bf16.mxu0 0
        %4755 = vmatpush1.bf16.msra.mxu0 %v4451
        %4756 = vmatprep.subr.bf16.mxu0 0
        %4757 = vmatpush1.bf16.msra.mxu0 %v4452
        %4758 = vmatprep.mubr.bf16.mxu0 %v3806
        %4759 = vmatmul.mubr.bf16.gmra.mrb[0].mxu0 %v3933
        %v4760 = vpop.f32.mrb[0].mxu0
        %v4761 = vadd.f32 %v4600, %v4760
        %v4762 = vpop.f32.mrb[0].mxu0
        %v4763 = vpop.f32.mrb[0].mxu0
        %v4764 = vadd.f32 %v4603, %v4763
        %v4765 = vpop.f32.mrb[0].mxu0
        %4766 = vmatprep.mubr.bf16.mxu0 %v3807
        %4767 = vmatmul.mubr.bf16.gmra.mrb[0].mxu0 %v3934
        %v4768 = vpop.f32.mrb[0].mxu0
        %v4769 = vadd.f32 %v4608, %v4768
        %v4770 = vpop.f32.mrb[0].mxu0
        %v4771 = vpop.f32.mrb[0].mxu0
        %v4772 = vadd.f32 %v4611, %v4771
        %v4773 = vpop.f32.mrb[0].mxu0
        %4774 = vmatprep.mubr.bf16.mxu0 %v3808
        %4775 = vmatmul.mubr.bf16.gmra.mrb[0].mxu0 %v3935
        %v4776 = vpop.f32.mrb[0].mxu0
        %v4777 = vadd.f32 %v4616, %v4776
        %v4778 = vpop.f32.mrb[0].mxu0
        %v4779 = vpop.f32.mrb[0].mxu0
        %v4780 = vadd.f32 %v4619, %v4779
        %v4781 = vpop.f32.mrb[0].mxu0
        %4782 = vmatprep.mubr.bf16.mxu0 %v3809
        %4783 = vmatmul.mubr.bf16.gmra.mrb[0].mxu0 %v3936
        %v4784 = vpop.f32.mrb[0].mxu0
        %v4785 = vadd.f32 %v4624, %v4784
        %v4786 = vpop.f32.mrb[0].mxu0
        %v4787 = vpop.f32.mrb[0].mxu0
        %v4788 = vadd.f32 %v4627, %v4787
        %v4789 = vpop.f32.mrb[0].mxu0
        %4790 = vmatprep.mubr.bf16.mxu0 %v3810
        %4791 = vmatmul.mubr.bf16.gmra.mrb[0].mxu0 %v3937
        %v4792 = vpop.f32.mrb[0].mxu0
        %v4793 = vadd.f32 %v4632, %v4792
        %v4794 = vpop.f32.mrb[0].mxu0
        %v4795 = vpop.f32.mrb[0].mxu0
        %v4796 = vadd.f32 %v4635, %v4795
        %v4797 = vpop.f32.mrb[0].mxu0
        %4798 = vmatprep.mubr.bf16.mxu0 %v3811
        %4799 = vmatmul.mubr.bf16.gmra.mrb[0].mxu0 %v3938
        %v4800 = vpop.f32.mrb[0].mxu0
        %v4801 = vadd.f32 %v4640, %v4800
        %v4802 = vpop.f32.mrb[0].mxu0
        %v4803 = vpop.f32.mrb[0].mxu0
        %v4804 = vadd.f32 %v4643, %v4803
        %v4805 = vpop.f32.mrb[0].mxu0
        %4806 = vmatprep.mubr.bf16.mxu0 %v3812
        %4807 = vmatmul.mubr.bf16.gmra.mrb[0].mxu0 %v3939
        %v4808 = vpop.f32.mrb[0].mxu0
        %v4809 = vadd.f32 %v4648, %v4808
        %v4810 = vpop.f32.mrb[0].mxu0
        %v4811 = vpop.f32.mrb[0].mxu0
        %v4812 = vadd.f32 %v4651, %v4811
        %v4813 = vpop.f32.mrb[0].mxu0
        %4814 = vmatprep.mubr.bf16.mxu0 %v3813
        %4815 = vmatmul.mubr.bf16.gmra.mrb[0].mxu0 %v3940
        %v4816 = vpop.f32.mrb[0].mxu0
        %v4817 = vadd.f32 %v4656, %v4816
        %v4818 = vpop.f32.mrb[0].mxu0
        %v4819 = vpop.f32.mrb[0].mxu0
        %v4820 = vadd.f32 %v4659, %v4819
        %v4821 = vpop.f32.mrb[0].mxu0
        %4822 = vmatprep.mubr.bf16.mxu0 %v3814
        %4823 = vmatmul.mubr.bf16.gmra.mrb[0].mxu0 %v3941
        %v4824 = vpop.f32.mrb[0].mxu0
        %v4825 = vadd.f32 %v4664, %v4824
        %v4826 = vpop.f32.mrb[0].mxu0
        %v4827 = vpop.f32.mrb[0].mxu0
        %v4828 = vadd.f32 %v4667, %v4827
        %v4829 = vpop.f32.mrb[0].mxu0
        %4830 = vmatprep.mubr.bf16.mxu0 %v3815
        %4831 = vmatmul.mubr.bf16.gmra.mrb[0].mxu0 %v3942
        %v4832 = vpop.f32.mrb[0].mxu0
        %v4833 = vadd.f32 %v4672, %v4832
        %v4834 = vpop.f32.mrb[0].mxu0
        %v4835 = vpop.f32.mrb[0].mxu0
        %v4836 = vadd.f32 %v4675, %v4835
        %v4837 = vpop.f32.mrb[0].mxu0
        %4838 = vmatprep.mubr.bf16.mxu0 %v3816
        %4839 = vmatmul.mubr.bf16.gmra.mrb[0].mxu0 %v3943
        %v4840 = vpop.f32.mrb[0].mxu0
        %v4841 = vadd.f32 %v4680, %v4840
        %v4842 = vpop.f32.mrb[0].mxu0
        %v4843 = vpop.f32.mrb[0].mxu0
        %v4844 = vadd.f32 %v4683, %v4843
        %v4845 = vpop.f32.mrb[0].mxu0
        %4846 = vmatprep.mubr.bf16.mxu0 %v3817
        %4847 = vmatmul.mubr.bf16.gmra.mrb[0].mxu0 %v3944
        %v4848 = vpop.f32.mrb[0].mxu0
        %v4849 = vadd.f32 %v4688, %v4848
        %v4850 = vpop.f32.mrb[0].mxu0
        %v4851 = vpop.f32.mrb[0].mxu0
        %v4852 = vadd.f32 %v4691, %v4851
        %v4853 = vpop.f32.mrb[0].mxu0
        %4854 = vmatprep.mubr.bf16.mxu0 %v3818
        %4855 = vmatmul.mubr.bf16.gmra.mrb[0].mxu0 %v3945
        %v4856 = vpop.f32.mrb[0].mxu0
        %v4857 = vadd.f32 %v4696, %v4856
        %v4858 = vpop.f32.mrb[0].mxu0
        %v4859 = vpop.f32.mrb[0].mxu0
        %v4860 = vadd.f32 %v4699, %v4859
        %v4861 = vpop.f32.mrb[0].mxu0
        %4862 = vmatprep.mubr.bf16.mxu0 %v3819
        %4863 = vmatmul.mubr.bf16.gmra.mrb[0].mxu0 %v3946
        %v4864 = vpop.f32.mrb[0].mxu0
        %v4865 = vadd.f32 %v4704, %v4864
        %v4866 = vpop.f32.mrb[0].mxu0
        %v4867 = vpop.f32.mrb[0].mxu0
        %v4868 = vadd.f32 %v4707, %v4867
        %v4869 = vpop.f32.mrb[0].mxu0
        %4870 = vmatprep.mubr.bf16.mxu0 %v3820
        %4871 = vmatmul.mubr.bf16.gmra.mrb[0].mxu0 %v3947
        %v4872 = vpop.f32.mrb[0].mxu0
        %v4873 = vadd.f32 %v4712, %v4872
        %v4874 = vpop.f32.mrb[0].mxu0
        %v4875 = vpop.f32.mrb[0].mxu0
        %v4876 = vadd.f32 %v4715, %v4875
        %v4877 = vpop.f32.mrb[0].mxu0
        %4878 = vmatprep.mubr.bf16.mxu0 %v3967
        %4879 = vmatmul.mubr.bf16.gmra.mrb[0].mxu0 %v3948
        %v4880 = vpop.f32.mrb[0].mxu0
        %v4881 = vadd.f32 %v4720, %v4880
        %v4882 = vpop.f32.mrb[0].mxu0
        %v4883 = vpop.f32.mrb[0].mxu0
        %v4884 = vadd.f32 %v4723, %v4883
        %v4885 = vpop.f32.mrb[0].mxu0
        %4886 = vdwg.mxu0
        %4887 = vmatprep.subr.bf16.mxu0 0
        %4888 = vmatpush1.bf16.msra.mxu0 %v4453
        %4889 = vmatprep.subr.bf16.mxu0 0
        %4890 = vmatpush1.bf16.msra.mxu0 %v4454
        %4891 = vmatprep.subr.bf16.mxu0 0
        %4892 = vmatpush1.bf16.msra.mxu0 %v4455
        %4893 = vmatprep.subr.bf16.mxu0 0
        %4894 = vmatpush1.bf16.msra.mxu0 %v4456
        %4895 = vmatprep.subr.bf16.mxu0 0
        %4896 = vmatpush1.bf16.msra.mxu0 %v4457
        %4897 = vmatprep.subr.bf16.mxu0 0
        %4898 = vmatpush1.bf16.msra.mxu0 %v4458
        %4899 = vmatprep.subr.bf16.mxu0 0
        %4900 = vmatpush1.bf16.msra.mxu0 %v4459
        %4901 = vmatprep.subr.bf16.mxu0 0
        %4902 = vmatpush1.bf16.msra.mxu0 %v4460
        %4903 = vmatprep.subr.bf16.mxu0 0
        %4904 = vmatpush1.bf16.msra.mxu0 %v4461
        %4905 = vmatprep.subr.bf16.mxu0 0
        %4906 = vmatpush1.bf16.msra.mxu0 %v4462
        %4907 = vmatprep.subr.bf16.mxu0 0
        %4908 = vmatpush1.bf16.msra.mxu0 %v4463
        %4909 = vmatprep.subr.bf16.mxu0 0
        %4910 = vmatpush1.bf16.msra.mxu0 %v4464
        %4911 = vmatprep.subr.bf16.mxu0 0
        %4912 = vmatpush1.bf16.msra.mxu0 %v4465
        %4913 = vmatprep.subr.bf16.mxu0 0
        %4914 = vmatpush1.bf16.msra.mxu0 %v4466
        %4915 = vmatprep.subr.bf16.mxu0 0
        %4916 = vmatpush1.bf16.msra.mxu0 %v4467
        %4917 = vmatprep.subr.bf16.mxu0 0
        %4918 = vmatpush1.bf16.msra.mxu0 %v4468
        %4919 = vmatprep.mubr.bf16.mxu0 %v3934
        %4920 = vmatmul.mubr.bf16.gmra.mrb[0].mxu0 %v3870
        %v4921 = vpop.f32.mrb[0].mxu0
        %v4922 = vadd.f32 %v4761, %v4921
        %v4923 = vpop.f32.mrb[0].mxu0
        %v4924 = vpop.f32.mrb[0].mxu0
        %v4925 = vadd.f32 %v4764, %v4924
        %v4926 = vpop.f32.mrb[0].mxu0
        %4927 = vmatprep.mubr.bf16.mxu0 %v3935
        %4928 = vmatmul.mubr.bf16.gmra.mrb[0].mxu0 %v3871
        %v4929 = vpop.f32.mrb[0].mxu0
        %v4930 = vadd.f32 %v4769, %v4929
        %v4931 = vpop.f32.mrb[0].mxu0
        %v4932 = vpop.f32.mrb[0].mxu0
        %v4933 = vadd.f32 %v4772, %v4932
        %v4934 = vpop.f32.mrb[0].mxu0
        %4935 = vmatprep.mubr.bf16.mxu0 %v3936
        %4936 = vmatmul.mubr.bf16.gmra.mrb[0].mxu0 %v3872
        %v4937 = vpop.f32.mrb[0].mxu0
        %v4938 = vadd.f32 %v4777, %v4937
        %v4939 = vpop.f32.mrb[0].mxu0
        %v4940 = vpop.f32.mrb[0].mxu0
        %v4941 = vadd.f32 %v4780, %v4940
        %v4942 = vpop.f32.mrb[0].mxu0
        %4943 = vmatprep.mubr.bf16.mxu0 %v3937
        %4944 = vmatmul.mubr.bf16.gmra.mrb[0].mxu0 %v3873
        %v4945 = vpop.f32.mrb[0].mxu0
        %v4946 = vadd.f32 %v4785, %v4945
        %v4947 = vpop.f32.mrb[0].mxu0
        %v4948 = vpop.f32.mrb[0].mxu0
        %v4949 = vadd.f32 %v4788, %v4948
        %v4950 = vpop.f32.mrb[0].mxu0
        %4951 = vmatprep.mubr.bf16.mxu0 %v3938
        %4952 = vmatmul.mubr.bf16.gmra.mrb[0].mxu0 %v3874
        %v4953 = vpop.f32.mrb[0].mxu0
        %v4954 = vadd.f32 %v4793, %v4953
        %v4955 = vpop.f32.mrb[0].mxu0
        %v4956 = vpop.f32.mrb[0].mxu0
        %v4957 = vadd.f32 %v4796, %v4956
        %v4958 = vpop.f32.mrb[0].mxu0
        %4959 = vmatprep.mubr.bf16.mxu0 %v3939
        %4960 = vmatmul.mubr.bf16.gmra.mrb[0].mxu0 %v3875
        %v4961 = vpop.f32.mrb[0].mxu0
        %v4962 = vadd.f32 %v4801, %v4961
        %v4963 = vpop.f32.mrb[0].mxu0
        %v4964 = vpop.f32.mrb[0].mxu0
        %v4965 = vadd.f32 %v4804, %v4964
        %v4966 = vpop.f32.mrb[0].mxu0
        %4967 = vmatprep.mubr.bf16.mxu0 %v3940
        %4968 = vmatmul.mubr.bf16.gmra.mrb[0].mxu0 %v3876
        %v4969 = vpop.f32.mrb[0].mxu0
        %v4970 = vadd.f32 %v4809, %v4969
        %v4971 = vpop.f32.mrb[0].mxu0
        %v4972 = vpop.f32.mrb[0].mxu0
        %v4973 = vadd.f32 %v4812, %v4972
        %v4974 = vpop.f32.mrb[0].mxu0
        %4975 = vmatprep.mubr.bf16.mxu0 %v3941
        %4976 = vmatmul.mubr.bf16.gmra.mrb[0].mxu0 %v3877
        %v4977 = vpop.f32.mrb[0].mxu0
        %v4978 = vadd.f32 %v4817, %v4977
        %v4979 = vpop.f32.mrb[0].mxu0
        %v4980 = vpop.f32.mrb[0].mxu0
        %v4981 = vadd.f32 %v4820, %v4980
        %v4982 = vpop.f32.mrb[0].mxu0
        %4983 = vmatprep.mubr.bf16.mxu0 %v3942
        %4984 = vmatmul.mubr.bf16.gmra.mrb[0].mxu0 %v3878
        %v4985 = vpop.f32.mrb[0].mxu0
        %v4986 = vadd.f32 %v4825, %v4985
        %v4987 = vpop.f32.mrb[0].mxu0
        %v4988 = vpop.f32.mrb[0].mxu0
        %v4989 = vadd.f32 %v4828, %v4988
        %v4990 = vpop.f32.mrb[0].mxu0
        %4991 = vmatprep.mubr.bf16.mxu0 %v3943
        %4992 = vmatmul.mubr.bf16.gmra.mrb[0].mxu0 %v3879
        %v4993 = vpop.f32.mrb[0].mxu0
        %v4994 = vadd.f32 %v4833, %v4993
        %v4995 = vpop.f32.mrb[0].mxu0
        %v4996 = vpop.f32.mrb[0].mxu0
        %v4997 = vadd.f32 %v4836, %v4996
        %v4998 = vpop.f32.mrb[0].mxu0
        %4999 = vmatprep.mubr.bf16.mxu0 %v3944
        %5000 = vmatmul.mubr.bf16.gmra.mrb[0].mxu0 %v3880
        %v5001 = vpop.f32.mrb[0].mxu0
        %v5002 = vadd.f32 %v4841, %v5001
        %v5003 = vpop.f32.mrb[0].mxu0
        %v5004 = vpop.f32.mrb[0].mxu0
        %v5005 = vadd.f32 %v4844, %v5004
        %v5006 = vpop.f32.mrb[0].mxu0
        %5007 = vmatprep.mubr.bf16.mxu0 %v3945
        %5008 = vmatmul.mubr.bf16.gmra.mrb[0].mxu0 %v3881
        %v5009 = vpop.f32.mrb[0].mxu0
        %v5010 = vadd.f32 %v4849, %v5009
        %v5011 = vpop.f32.mrb[0].mxu0
        %v5012 = vpop.f32.mrb[0].mxu0
        %v5013 = vadd.f32 %v4852, %v5012
        %v5014 = vpop.f32.mrb[0].mxu0
        %5015 = vmatprep.mubr.bf16.mxu0 %v3946
        %5016 = vmatmul.mubr.bf16.gmra.mrb[0].mxu0 %v3882
        %v5017 = vpop.f32.mrb[0].mxu0
        %v5018 = vadd.f32 %v4857, %v5017
        %v5019 = vpop.f32.mrb[0].mxu0
        %v5020 = vpop.f32.mrb[0].mxu0
        %v5021 = vadd.f32 %v4860, %v5020
        %v5022 = vpop.f32.mrb[0].mxu0
        %5023 = vmatprep.mubr.bf16.mxu0 %v3947
        %5024 = vmatmul.mubr.bf16.gmra.mrb[0].mxu0 %v3883
        %v5025 = vpop.f32.mrb[0].mxu0
        %v5026 = vadd.f32 %v4865, %v5025
        %v5027 = vpop.f32.mrb[0].mxu0
        %v5028 = vpop.f32.mrb[0].mxu0
        %v5029 = vadd.f32 %v4868, %v5028
        %v5030 = vpop.f32.mrb[0].mxu0
        %5031 = vmatprep.mubr.bf16.mxu0 %v3948
        %5032 = vmatmul.mubr.bf16.gmra.mrb[0].mxu0 %v3884
        %v5033 = vpop.f32.mrb[0].mxu0
        %v5034 = vadd.f32 %v4873, %v5033
        %v5035 = vpop.f32.mrb[0].mxu0
        %v5036 = vpop.f32.mrb[0].mxu0
        %v5037 = vadd.f32 %v4876, %v5036
        %v5038 = vpop.f32.mrb[0].mxu0
        %5039 = vmatprep.mubr.bf16.mxu0 %v3975
        %5040 = vmatmul.mubr.bf16.gmra.mrb[0].mxu0 %v3971
        %v5041 = vpop.f32.mrb[0].mxu0
        %v5042 = vadd.f32 %v4881, %v5041
        %v5043 = vpop.f32.mrb[0].mxu0
        %v5044 = vpop.f32.mrb[0].mxu0
        %v5045 = vadd.f32 %v4884, %v5044
        %v5046 = vpop.f32.mrb[0].mxu0
        %5047 = vdwg.mxu0
        %5048 = vmatprep.subr.bf16.mxu0 0
        %5049 = vmatpush1.bf16.msra.mxu0 %v4469
        %5050 = vmatprep.subr.bf16.mxu0 0
        %5051 = vmatpush1.bf16.msra.mxu0 %v4470
        %5052 = vmatprep.subr.bf16.mxu0 0
        %5053 = vmatpush1.bf16.msra.mxu0 %v4471
        %5054 = vmatprep.subr.bf16.mxu0 0
        %5055 = vmatpush1.bf16.msra.mxu0 %v4472
        %5056 = vmatprep.subr.bf16.mxu0 0
        %5057 = vmatpush1.bf16.msra.mxu0 %v4473
        %5058 = vmatprep.subr.bf16.mxu0 0
        %5059 = vmatpush1.bf16.msra.mxu0 %v4474
        %5060 = vmatprep.subr.bf16.mxu0 0
        %5061 = vmatpush1.bf16.msra.mxu0 %v4475
        %5062 = vmatprep.subr.bf16.mxu0 0
        %5063 = vmatpush1.bf16.msra.mxu0 %v4476
        %5064 = vmatprep.subr.bf16.mxu0 0
        %5065 = vmatpush1.bf16.msra.mxu0 %v4477
        %5066 = vmatprep.subr.bf16.mxu0 0
        %5067 = vmatpush1.bf16.msra.mxu0 %v4478
        %5068 = vmatprep.subr.bf16.mxu0 0
        %5069 = vmatpush1.bf16.msra.mxu0 %v4479
        %5070 = vmatprep.subr.bf16.mxu0 0
        %5071 = vmatpush1.bf16.msra.mxu0 %v4480
        %5072 = vmatprep.subr.bf16.mxu0 0
        %5073 = vmatpush1.bf16.msra.mxu0 %v4481
        %5074 = vmatprep.subr.bf16.mxu0 0
        %5075 = vmatpush1.bf16.msra.mxu0 %v4482
        %5076 = vmatprep.subr.bf16.mxu0 0
        %5077 = vmatpush1.bf16.msra.mxu0 %v4483
        %5078 = vmatprep.subr.bf16.mxu0 0
        %5079 = vmatpush1.bf16.msra.mxu0 %v4484
        %5080 = vmatprep.mubr.bf16.mxu0 %v3871
        %5081 = vmatmul.mubr.bf16.gmra.mrb[0].mxu0 %v3807
        %v5082 = vpop.f32.mrb[0].mxu0
        %v5083 = vadd.f32 %v4922, %v5082
        %v5084 = vpop.f32.mrb[0].mxu0
        %v5085 = vpop.f32.mrb[0].mxu0
        %v5086 = vadd.f32 %v4925, %v5085
        %v5087 = vpop.f32.mrb[0].mxu0
        %5088 = vmatprep.mubr.bf16.mxu0 %v3872
        %5089 = vmatmul.mubr.bf16.gmra.mrb[0].mxu0 %v3808
        %v5090 = vpop.f32.mrb[0].mxu0
        %v5091 = vadd.f32 %v4930, %v5090
        %v5092 = vpop.f32.mrb[0].mxu0
        %v5093 = vpop.f32.mrb[0].mxu0
        %v5094 = vadd.f32 %v4933, %v5093
        %v5095 = vpop.f32.mrb[0].mxu0
        %5096 = vmatprep.mubr.bf16.mxu0 %v3873
        %5097 = vmatmul.mubr.bf16.gmra.mrb[0].mxu0 %v3809
        %v5098 = vpop.f32.mrb[0].mxu0
        %v5099 = vadd.f32 %v4938, %v5098
        %v5100 = vpop.f32.mrb[0].mxu0
        %v5101 = vpop.f32.mrb[0].mxu0
        %v5102 = vadd.f32 %v4941, %v5101
        %v5103 = vpop.f32.mrb[0].mxu0
        %5104 = vmatprep.mubr.bf16.mxu0 %v3874
        %5105 = vmatmul.mubr.bf16.gmra.mrb[0].mxu0 %v3810
        %v5106 = vpop.f32.mrb[0].mxu0
        %v5107 = vadd.f32 %v4946, %v5106
        %v5108 = vpop.f32.mrb[0].mxu0
        %v5109 = vpop.f32.mrb[0].mxu0
        %v5110 = vadd.f32 %v4949, %v5109
        %v5111 = vpop.f32.mrb[0].mxu0
        %5112 = vmatprep.mubr.bf16.mxu0 %v3875
        %5113 = vmatmul.mubr.bf16.gmra.mrb[0].mxu0 %v3811
        %v5114 = vpop.f32.mrb[0].mxu0
        %v5115 = vadd.f32 %v4954, %v5114
        %v5116 = vpop.f32.mrb[0].mxu0
        %v5117 = vpop.f32.mrb[0].mxu0
        %v5118 = vadd.f32 %v4957, %v5117
        %v5119 = vpop.f32.mrb[0].mxu0
        %5120 = vmatprep.mubr.bf16.mxu0 %v3876
        %5121 = vmatmul.mubr.bf16.gmra.mrb[0].mxu0 %v3812
        %v5122 = vpop.f32.mrb[0].mxu0
        %v5123 = vadd.f32 %v4962, %v5122
        %v5124 = vpop.f32.mrb[0].mxu0
        %v5125 = vpop.f32.mrb[0].mxu0
        %v5126 = vadd.f32 %v4965, %v5125
        %v5127 = vpop.f32.mrb[0].mxu0
        %5128 = vmatprep.mubr.bf16.mxu0 %v3877
        %5129 = vmatmul.mubr.bf16.gmra.mrb[0].mxu0 %v3813
        %v5130 = vpop.f32.mrb[0].mxu0
        %v5131 = vadd.f32 %v4970, %v5130
        %v5132 = vpop.f32.mrb[0].mxu0
        %v5133 = vpop.f32.mrb[0].mxu0
        %v5134 = vadd.f32 %v4973, %v5133
        %v5135 = vpop.f32.mrb[0].mxu0
        %5136 = vmatprep.mubr.bf16.mxu0 %v3878
        %5137 = vmatmul.mubr.bf16.gmra.mrb[0].mxu0 %v3814
        %v5138 = vpop.f32.mrb[0].mxu0
        %v5139 = vadd.f32 %v4978, %v5138
        %v5140 = vpop.f32.mrb[0].mxu0
        %v5141 = vpop.f32.mrb[0].mxu0
        %v5142 = vadd.f32 %v4981, %v5141
        %v5143 = vpop.f32.mrb[0].mxu0
        %5144 = vmatprep.mubr.bf16.mxu0 %v3879
        %5145 = vmatmul.mubr.bf16.gmra.mrb[0].mxu0 %v3815
        %v5146 = vpop.f32.mrb[0].mxu0
        %v5147 = vadd.f32 %v4986, %v5146
        %v5148 = vpop.f32.mrb[0].mxu0
        %v5149 = vpop.f32.mrb[0].mxu0
        %v5150 = vadd.f32 %v4989, %v5149
        %v5151 = vpop.f32.mrb[0].mxu0
        %5152 = vmatprep.mubr.bf16.mxu0 %v3880
        %5153 = vmatmul.mubr.bf16.gmra.mrb[0].mxu0 %v3816
        %v5154 = vpop.f32.mrb[0].mxu0
        %v5155 = vadd.f32 %v4994, %v5154
        %v5156 = vpop.f32.mrb[0].mxu0
        %v5157 = vpop.f32.mrb[0].mxu0
        %v5158 = vadd.f32 %v4997, %v5157
        %v5159 = vpop.f32.mrb[0].mxu0
        %5160 = vmatprep.mubr.bf16.mxu0 %v3881
        %5161 = vmatmul.mubr.bf16.gmra.mrb[0].mxu0 %v3817
        %v5162 = vpop.f32.mrb[0].mxu0
        %v5163 = vadd.f32 %v5002, %v5162
        %v5164 = vpop.f32.mrb[0].mxu0
        %v5165 = vpop.f32.mrb[0].mxu0
        %v5166 = vadd.f32 %v5005, %v5165
        %v5167 = vpop.f32.mrb[0].mxu0
        %5168 = vmatprep.mubr.bf16.mxu0 %v3882
        %5169 = vmatmul.mubr.bf16.gmra.mrb[0].mxu0 %v3818
        %v5170 = vpop.f32.mrb[0].mxu0
        %v5171 = vadd.f32 %v5010, %v5170
        %v5172 = vpop.f32.mrb[0].mxu0
        %v5173 = vpop.f32.mrb[0].mxu0
        %v5174 = vadd.f32 %v5013, %v5173
        %v5175 = vpop.f32.mrb[0].mxu0
        %5176 = vmatprep.mubr.bf16.mxu0 %v3883
        %5177 = vmatmul.mubr.bf16.gmra.mrb[0].mxu0 %v3819
        %v5178 = vpop.f32.mrb[0].mxu0
        %v5179 = vadd.f32 %v5018, %v5178
        %v5180 = vpop.f32.mrb[0].mxu0
        %v5181 = vpop.f32.mrb[0].mxu0
        %v5182 = vadd.f32 %v5021, %v5181
        %v5183 = vpop.f32.mrb[0].mxu0
        %5184 = vmatprep.mubr.bf16.mxu0 %v3884
        %5185 = vmatmul.mubr.bf16.gmra.mrb[0].mxu0 %v3820
        %v5186 = vpop.f32.mrb[0].mxu0
        %v5187 = vadd.f32 %v5026, %v5186
        %v5188 = vpop.f32.mrb[0].mxu0
        %v5189 = vpop.f32.mrb[0].mxu0
        %v5190 = vadd.f32 %v5029, %v5189
        %v5191 = vpop.f32.mrb[0].mxu0
        %5192 = vmatprep.mubr.bf16.mxu0 %v3971
        %5193 = vmatmul.mubr.bf16.gmra.mrb[0].mxu0 %v3967
        %v5194 = vpop.f32.mrb[0].mxu0
        %v5195 = vadd.f32 %v5034, %v5194
        %v5196 = vpop.f32.mrb[0].mxu0
        %v5197 = vpop.f32.mrb[0].mxu0
        %v5198 = vadd.f32 %v5037, %v5197
        %v5199 = vpop.f32.mrb[0].mxu0
        %5200 = vmatprep.mubr.bf16.mxu0 %v3983
        %5201 = vmatmul.mubr.bf16.gmra.mrb[0].mxu0 %v3979
        %v5202 = vpop.f32.mrb[0].mxu0
        %v5203 = vadd.f32 %v5042, %v5202
        %v5204 = vpop.f32.mrb[0].mxu0
        %v5205 = vpop.f32.mrb[0].mxu0
        %v5206 = vadd.f32 %v5045, %v5205
        %v5207 = vpop.f32.mrb[0].mxu0
        %5208 = vdwg.mxu0
        %5209 = vmatprep.subr.bf16.mxu0 0
        %5210 = vmatpush1.bf16.msra.mxu0 %v4485
        %5211 = vmatprep.subr.bf16.mxu0 0
        %5212 = vmatpush1.bf16.msra.mxu0 %v4486
        %5213 = vmatprep.subr.bf16.mxu0 0
        %5214 = vmatpush1.bf16.msra.mxu0 %v4487
        %5215 = vmatprep.subr.bf16.mxu0 0
        %5216 = vmatpush1.bf16.msra.mxu0 %v4488
        %5217 = vmatprep.subr.bf16.mxu0 0
        %5218 = vmatpush1.bf16.msra.mxu0 %v4489
        %5219 = vmatprep.subr.bf16.mxu0 0
        %5220 = vmatpush1.bf16.msra.mxu0 %v4490
        %5221 = vmatprep.subr.bf16.mxu0 0
        %5222 = vmatpush1.bf16.msra.mxu0 %v4491
        %5223 = vmatprep.subr.bf16.mxu0 0
        %5224 = vmatpush1.bf16.msra.mxu0 %v4492
        %5225 = vmatprep.subr.bf16.mxu0 0
        %5226 = vmatpush1.bf16.msra.mxu0 0
        %5227 = vmatprep.subr.bf16.mxu0 0
        %5228 = vmatpush1.bf16.msra.mxu0 0
        %5229 = vmatprep.subr.bf16.mxu0 0
        %5230 = vmatpush1.bf16.msra.mxu0 0
        %5231 = vmatprep.subr.bf16.mxu0 0
        %5232 = vmatpush1.bf16.msra.mxu0 0
        %5233 = vmatprep.subr.bf16.mxu0 0
        %5234 = vmatpush1.bf16.msra.mxu0 0
        %5235 = vmatprep.subr.bf16.mxu0 0
        %5236 = vmatpush1.bf16.msra.mxu0 0
        %5237 = vmatprep.subr.bf16.mxu0 0
        %5238 = vmatpush1.bf16.msra.mxu0 0
        %5239 = vmatprep.subr.bf16.mxu0 0
        %5240 = vmatpush1.bf16.msra.mxu0 0
        %5241 = vmatprep.mubr.bf16.mxu0 0
        %5242 = vmatmul.mubr.bf16.gmra.mrb[0].mxu0 %v3935
        %v5243 = vpop.f32.mrb[0].mxu0
        %v5244 = vadd.f32 %v5083, %v5243
        %v5245 = vpop.f32.mrb[0].mxu0
        %v5246 = vpop.f32.mrb[0].mxu0
        %v5247 = vadd.f32 %v5086, %v5246
        %v5248 = vpop.f32.mrb[0].mxu0
        %5249 = vmatprep.mubr.bf16.mxu0 0
        %5250 = vmatmul.mubr.bf16.gmra.mrb[0].mxu0 %v3936
        %v5251 = vpop.f32.mrb[0].mxu0
        %v5252 = vadd.f32 %v5091, %v5251
        %v5253 = vpop.f32.mrb[0].mxu0
        %v5254 = vpop.f32.mrb[0].mxu0
        %v5255 = vadd.f32 %v5094, %v5254
        %v5256 = vpop.f32.mrb[0].mxu0
        %5257 = vmatprep.mubr.bf16.mxu0 0
        %5258 = vmatmul.mubr.bf16.gmra.mrb[0].mxu0 %v3937
        %v5259 = vpop.f32.mrb[0].mxu0
        %v5260 = vadd.f32 %v5099, %v5259
        %v5261 = vpop.f32.mrb[0].mxu0
        %v5262 = vpop.f32.mrb[0].mxu0
        %v5263 = vadd.f32 %v5102, %v5262
        %v5264 = vpop.f32.mrb[0].mxu0
        %5265 = vmatprep.mubr.bf16.mxu0 0
        %5266 = vmatmul.mubr.bf16.gmra.mrb[0].mxu0 %v3938
        %v5267 = vpop.f32.mrb[0].mxu0
        %v5268 = vadd.f32 %v5107, %v5267
        %v5269 = vpop.f32.mrb[0].mxu0
        %v5270 = vpop.f32.mrb[0].mxu0
        %v5271 = vadd.f32 %v5110, %v5270
        %v5272 = vpop.f32.mrb[0].mxu0
        %5273 = vmatprep.mubr.bf16.mxu0 0
        %5274 = vmatmul.mubr.bf16.gmra.mrb[0].mxu0 %v3939
        %v5275 = vpop.f32.mrb[0].mxu0
        %v5276 = vadd.f32 %v5115, %v5275
        %v5277 = vpop.f32.mrb[0].mxu0
        %v5278 = vpop.f32.mrb[0].mxu0
        %v5279 = vadd.f32 %v5118, %v5278
        %v5280 = vpop.f32.mrb[0].mxu0
        %5281 = vmatprep.mubr.bf16.mxu0 0
        %5282 = vmatmul.mubr.bf16.gmra.mrb[0].mxu0 %v3940
        %v5283 = vpop.f32.mrb[0].mxu0
        %v5284 = vadd.f32 %v5123, %v5283
        %v5285 = vpop.f32.mrb[0].mxu0
        %v5286 = vpop.f32.mrb[0].mxu0
        %v5287 = vadd.f32 %v5126, %v5286
        %v5288 = vpop.f32.mrb[0].mxu0
        %5289 = vmatprep.mubr.bf16.mxu0 0
        %5290 = vmatmul.mubr.bf16.gmra.mrb[0].mxu0 %v3941
        %v5291 = vpop.f32.mrb[0].mxu0
        %v5292 = vadd.f32 %v5131, %v5291
        %v5293 = vpop.f32.mrb[0].mxu0
        %v5294 = vpop.f32.mrb[0].mxu0
        %v5295 = vadd.f32 %v5134, %v5294
        %v5296 = vpop.f32.mrb[0].mxu0
        %5297 = vmatprep.mubr.bf16.mxu0 0
        %5298 = vmatmul.mubr.bf16.gmra.mrb[0].mxu0 %v3942
        %v5299 = vpop.f32.mrb[0].mxu0
        %v5300 = vadd.f32 %v5139, %v5299
        %v5301 = vpop.f32.mrb[0].mxu0
        %v5302 = vpop.f32.mrb[0].mxu0
        %v5303 = vadd.f32 %v5142, %v5302
        %v5304 = vpop.f32.mrb[0].mxu0
        %5305 = vmatprep.mubr.bf16.mxu0 0
        %5306 = vmatmul.mubr.bf16.gmra.mrb[0].mxu0 %v3943
        %v5307 = vpop.f32.mrb[0].mxu0
        %v5308 = vadd.f32 %v5147, %v5307
        %v5309 = vpop.f32.mrb[0].mxu0
        %v5310 = vpop.f32.mrb[0].mxu0
        %v5311 = vadd.f32 %v5150, %v5310
        %v5312 = vpop.f32.mrb[0].mxu0
        %5313 = vmatprep.mubr.bf16.mxu0 0
        %5314 = vmatmul.mubr.bf16.gmra.mrb[0].mxu0 %v3944
        %v5315 = vpop.f32.mrb[0].mxu0
        %v5316 = vadd.f32 %v5155, %v5315
        %v5317 = vpop.f32.mrb[0].mxu0
        %v5318 = vpop.f32.mrb[0].mxu0
        %v5319 = vadd.f32 %v5158, %v5318
        %v5320 = vpop.f32.mrb[0].mxu0
        %5321 = vmatprep.mubr.bf16.mxu0 0
        %5322 = vmatmul.mubr.bf16.gmra.mrb[0].mxu0 %v3945
        %v5323 = vpop.f32.mrb[0].mxu0
        %v5324 = vadd.f32 %v5163, %v5323
        %v5325 = vpop.f32.mrb[0].mxu0
        %v5326 = vpop.f32.mrb[0].mxu0
        %v5327 = vadd.f32 %v5166, %v5326
        %v5328 = vpop.f32.mrb[0].mxu0
        %5329 = vmatprep.mubr.bf16.mxu0 0
        %5330 = vmatmul.mubr.bf16.gmra.mrb[0].mxu0 %v3946
        %v5331 = vpop.f32.mrb[0].mxu0
        %v5332 = vadd.f32 %v5171, %v5331
        %v5333 = vpop.f32.mrb[0].mxu0
        %v5334 = vpop.f32.mrb[0].mxu0
        %v5335 = vadd.f32 %v5174, %v5334
        %v5336 = vpop.f32.mrb[0].mxu0
        %5337 = vmatprep.mubr.bf16.mxu0 0
        %5338 = vmatmul.mubr.bf16.gmra.mrb[0].mxu0 %v3947
        %v5339 = vpop.f32.mrb[0].mxu0
        %v5340 = vadd.f32 %v5179, %v5339
        %v5341 = vpop.f32.mrb[0].mxu0
        %v5342 = vpop.f32.mrb[0].mxu0
        %v5343 = vadd.f32 %v5182, %v5342
        %v5344 = vpop.f32.mrb[0].mxu0
        %5345 = vmatprep.mubr.bf16.mxu0 0
        %5346 = vmatmul.mubr.bf16.gmra.mrb[0].mxu0 %v3948
        %v5347 = vpop.f32.mrb[0].mxu0
        %v5348 = vadd.f32 %v5187, %v5347
        %v5349 = vpop.f32.mrb[0].mxu0
        %v5350 = vpop.f32.mrb[0].mxu0
        %v5351 = vadd.f32 %v5190, %v5350
        %v5352 = vpop.f32.mrb[0].mxu0
        %5353 = vmatprep.mubr.bf16.mxu0 0
        %5354 = vmatmul.mubr.bf16.gmra.mrb[0].mxu0 %v3975
        %v5355 = vpop.f32.mrb[0].mxu0
        %v5356 = vadd.f32 %v5195, %v5355
        %v5357 = vpop.f32.mrb[0].mxu0
        %v5358 = vpop.f32.mrb[0].mxu0
        %v5359 = vadd.f32 %v5198, %v5358
        %v5360 = vpop.f32.mrb[0].mxu0
        %5361 = vmatprep.mubr.bf16.mxu0 0
        %5362 = vmatmul.mubr.bf16.gmra.mrb[0].mxu0 %v3987
        %v5363 = vpop.f32.mrb[0].mxu0
        %v5364 = vadd.f32 %v5203, %v5363
        %v5365 = vpop.f32.mrb[0].mxu0
        %v5366 = vpop.f32.mrb[0].mxu0
        %v5367 = vadd.f32 %v5206, %v5366
        %v5368 = vpop.f32.mrb[0].mxu0
        %5369 = vdwg.mxu0
        %v5370 = vld [vmem:[%s5] sm:$0x1]
        %v5372 = vlaneseq
        %v5373 = vshrl.u32 %v5372, 7
        %v5374 = vsub.s32 0, %v5373
        %v5375 = vrot.slane %v5370, %v5374
        %v5377 = vmul.f32 %v5244, %v5375
        %v5378 = vmul.f32 %v5247, %v5375
        %v5379 = vmul.f32 %v5252, %v5375
        %v5380 = vmul.f32 %v5255, %v5375
        %v5381 = vmul.f32 %v5260, %v5375
        %v5382 = vmul.f32 %v5263, %v5375
        %v5383 = vmul.f32 %v5268, %v5375
        %v5384 = vmul.f32 %v5271, %v5375
        %v5385 = vmul.f32 %v5276, %v5375
        %v5386 = vmul.f32 %v5279, %v5375
        %v5387 = vmul.f32 %v5284, %v5375
        %v5388 = vmul.f32 %v5287, %v5375
        %v5389 = vmul.f32 %v5292, %v5375
        %v5390 = vmul.f32 %v5295, %v5375
        %v5391 = vmul.f32 %v5300, %v5375
        %v5392 = vmul.f32 %v5303, %v5375
        %v5393 = vmul.f32 %v5308, %v5375
        %v5394 = vmul.f32 %v5311, %v5375
        %v5395 = vmul.f32 %v5316, %v5375
        %v5396 = vmul.f32 %v5319, %v5375
        %v5397 = vmul.f32 %v5324, %v5375
        %v5398 = vmul.f32 %v5327, %v5375
        %v5399 = vmul.f32 %v5332, %v5375
        %v5400 = vmul.f32 %v5335, %v5375
        %v5401 = vmul.f32 %v5340, %v5375
        %v5402 = vmul.f32 %v5343, %v5375
        %v5403 = vmul.f32 %v5348, %v5375
        %v5404 = vmul.f32 %v5351, %v5375
        %v5405 = vmul.f32 %v5356, %v5375
        %v5406 = vmul.f32 %v5359, %v5375
        %v5407 = vmul.f32 %v5364, %v5375
        %v5408 = vmul.f32 %v5367, %v5375
        %v5409 = vld [vmem:[%s6] sm:$0x1]
        %v5411 = vlaneseq
        %v5412 = vshrl.u32 %v5411, 7
        %v5413 = vsub.s32 0, %v5412
        %v5414 = vrot.slane %v5409, %v5413
        %v5416 = vadd.f32 %v5377, %v5414
        %v5417 = vadd.f32 %v5378, %v5414
        %v5418 = vadd.f32 %v5379, %v5414
        %v5419 = vadd.f32 %v5380, %v5414
        %v5420 = vadd.f32 %v5381, %v5414
        %v5421 = vadd.f32 %v5382, %v5414
        %v5422 = vadd.f32 %v5383, %v5414
        %v5423 = vadd.f32 %v5384, %v5414
        %v5424 = vadd.f32 %v5385, %v5414
        %v5425 = vadd.f32 %v5386, %v5414
        %v5426 = vadd.f32 %v5387, %v5414
        %v5427 = vadd.f32 %v5388, %v5414
        %v5428 = vadd.f32 %v5389, %v5414
        %v5429 = vadd.f32 %v5390, %v5414
        %v5430 = vadd.f32 %v5391, %v5414
        %v5431 = vadd.f32 %v5392, %v5414
        %v5432 = vadd.f32 %v5393, %v5414
        %v5433 = vadd.f32 %v5394, %v5414
        %v5434 = vadd.f32 %v5395, %v5414
        %v5435 = vadd.f32 %v5396, %v5414
        %v5436 = vadd.f32 %v5397, %v5414
        %v5437 = vadd.f32 %v5398, %v5414
        %v5438 = vadd.f32 %v5399, %v5414
        %v5439 = vadd.f32 %v5400, %v5414
        %v5440 = vadd.f32 %v5401, %v5414
        %v5441 = vadd.f32 %v5402, %v5414
        %v5442 = vadd.f32 %v5403, %v5414
        %v5443 = vadd.f32 %v5404, %v5414
        %v5444 = vadd.f32 %v5405, %v5414
        %v5445 = vadd.f32 %v5406, %v5414
        %v5446 = vadd.f32 %v5407, %v5414
        %v5447 = vadd.f32 %v5408, %v5414
        %v5448 = vmax.f32 %v5416, 0.0
        %v5449 = vmax.f32 %v5417, 0.0
        %v5450 = vmax.f32 %v5418, 0.0
        %v5451 = vmax.f32 %v5419, 0.0
        %v5452 = vmax.f32 %v5420, 0.0
        %v5453 = vmax.f32 %v5421, 0.0
        %v5454 = vmax.f32 %v5422, 0.0
        %v5455 = vmax.f32 %v5423, 0.0
        %v5456 = vmax.f32 %v5424, 0.0
        %v5457 = vmax.f32 %v5425, 0.0
        %v5458 = vmax.f32 %v5426, 0.0
        %v5459 = vmax.f32 %v5427, 0.0
        %v5460 = vmax.f32 %v5428, 0.0
        %v5461 = vmax.f32 %v5429, 0.0
        %v5462 = vmax.f32 %v5430, 0.0
        %v5463 = vmax.f32 %v5431, 0.0
        %v5464 = vmax.f32 %v5432, 0.0
        %v5465 = vmax.f32 %v5433, 0.0
        %v5466 = vmax.f32 %v5434, 0.0
        %v5467 = vmax.f32 %v5435, 0.0
        %v5468 = vmax.f32 %v5436, 0.0
        %v5469 = vmax.f32 %v5437, 0.0
        %v5470 = vmax.f32 %v5438, 0.0
        %v5471 = vmax.f32 %v5439, 0.0
        %v5472 = vmax.f32 %v5440, 0.0
        %v5473 = vmax.f32 %v5441, 0.0
        %v5474 = vmax.f32 %v5442, 0.0
        %v5475 = vmax.f32 %v5443, 0.0
        %v5476 = vmax.f32 %v5444, 0.0
        %v5477 = vmax.f32 %v5445, 0.0
        %v5478 = vmax.f32 %v5446, 0.0
        %v5479 = vmax.f32 %v5447, 0.0
        %v5480 = vadd.f32 %v5448, %v5450
        %v5481 = vadd.f32 %v5449, %v5451
        %v5482 = vadd.f32 %v5452, %v5454
        %v5483 = vadd.f32 %v5453, %v5455
        %v5484 = vadd.f32 %v5456, %v5458
        %v5485 = vadd.f32 %v5457, %v5459
        %v5486 = vadd.f32 %v5460, %v5462
        %v5487 = vadd.f32 %v5461, %v5463
        %v5488 = vadd.f32 %v5464, %v5466
        %v5489 = vadd.f32 %v5465, %v5467
        %v5490 = vadd.f32 %v5468, %v5470
        %v5491 = vadd.f32 %v5469, %v5471
        %v5492 = vadd.f32 %v5472, %v5474
        %v5493 = vadd.f32 %v5473, %v5475
        %v5494 = vadd.f32 %v5476, %v5478
        %v5495 = vadd.f32 %v5477, %v5479
        %v5512 = vcombine.high %v5480, %v5480
        %v5514 = vunpack.c.l.s4 1983009808
        %v5515 = vunpack.c.0.s8 %v5514
        %v5516 = vlaneseq
        %v5517 = vshrl.u32 %v5516, 7
        %v5518 = vsub.s32 %v5515, %v5517
        %v5519 = vrot.slane %v5480, %v5518
        %v5521 = vunpack.c.l.s4 1983009808
        %v5522 = vunpack.c.0.s8 %v5521
        %v5523 = vlaneseq
        %v5524 = vshrl.u32 %v5523, 7
        %v5525 = vsub.s32 %v5522, %v5524
        %v5526 = vrot.slane %v5512, %v5525
        %v5527 = vcombine.high %v5519, %v5519
        %v5528 = vcombine.high %v5526, %v5526
        %v5529 = vcombine.high %v5481, %v5481
        %v5531 = vunpack.c.l.s4 1983009808
        %v5532 = vunpack.c.0.s8 %v5531
        %v5533 = vlaneseq
        %v5534 = vshrl.u32 %v5533, 7
        %v5535 = vsub.s32 %v5532, %v5534
        %v5536 = vrot.slane %v5481, %v5535
        %v5538 = vunpack.c.l.s4 1983009808
        %v5539 = vunpack.c.0.s8 %v5538
        %v5540 = vlaneseq
        %v5541 = vshrl.u32 %v5540, 7
        %v5542 = vsub.s32 %v5539, %v5541
        %v5543 = vrot.slane %v5529, %v5542
        %v5544 = vcombine.high %v5536, %v5536
        %v5545 = vcombine.high %v5543, %v5543
        %v5546 = vcombine.high %v5482, %v5482
        %v5548 = vunpack.c.l.s4 1983009808
        %v5549 = vunpack.c.0.s8 %v5548
        %v5550 = vlaneseq
        %v5551 = vshrl.u32 %v5550, 7
        %v5552 = vsub.s32 %v5549, %v5551
        %v5553 = vrot.slane %v5482, %v5552
        %v5555 = vunpack.c.l.s4 1983009808
        %v5556 = vunpack.c.0.s8 %v5555
        %v5557 = vlaneseq
        %v5558 = vshrl.u32 %v5557, 7
        %v5559 = vsub.s32 %v5556, %v5558
        %v5560 = vrot.slane %v5546, %v5559
        %v5561 = vcombine.high %v5553, %v5553
        %v5562 = vcombine.high %v5560, %v5560
        %v5563 = vcombine.high %v5483, %v5483
        %v5565 = vunpack.c.l.s4 1983009808
        %v5566 = vunpack.c.0.s8 %v5565
        %v5567 = vlaneseq
        %v5568 = vshrl.u32 %v5567, 7
        %v5569 = vsub.s32 %v5566, %v5568
        %v5570 = vrot.slane %v5483, %v5569
        %v5572 = vunpack.c.l.s4 1983009808
        %v5573 = vunpack.c.0.s8 %v5572
        %v5574 = vlaneseq
        %v5575 = vshrl.u32 %v5574, 7
        %v5576 = vsub.s32 %v5573, %v5575
        %v5577 = vrot.slane %v5563, %v5576
        %v5578 = vcombine.high %v5570, %v5570
        %v5579 = vcombine.high %v5577, %v5577
        %v5580 = vcombine.high %v5484, %v5484
        %v5582 = vunpack.c.l.s4 1983009808
        %v5583 = vunpack.c.0.s8 %v5582
        %v5584 = vlaneseq
        %v5585 = vshrl.u32 %v5584, 7
        %v5586 = vsub.s32 %v5583, %v5585
        %v5587 = vrot.slane %v5484, %v5586
        %v5589 = vunpack.c.l.s4 1983009808
        %v5590 = vunpack.c.0.s8 %v5589
        %v5591 = vlaneseq
        %v5592 = vshrl.u32 %v5591, 7
        %v5593 = vsub.s32 %v5590, %v5592
        %v5594 = vrot.slane %v5580, %v5593
        %v5595 = vcombine.high %v5587, %v5587
        %v5596 = vcombine.high %v5594, %v5594
        %v5597 = vcombine.high %v5485, %v5485
        %v5599 = vunpack.c.l.s4 1983009808
        %v5600 = vunpack.c.0.s8 %v5599
        %v5601 = vlaneseq
        %v5602 = vshrl.u32 %v5601, 7
        %v5603 = vsub.s32 %v5600, %v5602
        %v5604 = vrot.slane %v5485, %v5603
        %v5606 = vunpack.c.l.s4 1983009808
        %v5607 = vunpack.c.0.s8 %v5606
        %v5608 = vlaneseq
        %v5609 = vshrl.u32 %v5608, 7
        %v5610 = vsub.s32 %v5607, %v5609
        %v5611 = vrot.slane %v5597, %v5610
        %v5612 = vcombine.high %v5604, %v5604
        %v5613 = vcombine.high %v5611, %v5611
        %v5614 = vcombine.high %v5486, %v5486
        %v5616 = vunpack.c.l.s4 1983009808
        %v5617 = vunpack.c.0.s8 %v5616
        %v5618 = vlaneseq
        %v5619 = vshrl.u32 %v5618, 7
        %v5620 = vsub.s32 %v5617, %v5619
        %v5621 = vrot.slane %v5486, %v5620
        %v5623 = vunpack.c.l.s4 1983009808
        %v5624 = vunpack.c.0.s8 %v5623
        %v5625 = vlaneseq
        %v5626 = vshrl.u32 %v5625, 7
        %v5627 = vsub.s32 %v5624, %v5626
        %v5628 = vrot.slane %v5614, %v5627
        %v5629 = vcombine.high %v5621, %v5621
        %v5630 = vcombine.high %v5628, %v5628
        %v5631 = vcombine.high %v5487, %v5487
        %v5633 = vunpack.c.l.s4 1983009808
        %v5634 = vunpack.c.0.s8 %v5633
        %v5635 = vlaneseq
        %v5636 = vshrl.u32 %v5635, 7
        %v5637 = vsub.s32 %v5634, %v5636
        %v5638 = vrot.slane %v5487, %v5637
        %v5640 = vunpack.c.l.s4 1983009808
        %v5641 = vunpack.c.0.s8 %v5640
        %v5642 = vlaneseq
        %v5643 = vshrl.u32 %v5642, 7
        %v5644 = vsub.s32 %v5641, %v5643
        %v5645 = vrot.slane %v5631, %v5644
        %v5646 = vcombine.high %v5638, %v5638
        %v5647 = vcombine.high %v5645, %v5645
        %v5648 = vcombine.high %v5488, %v5488
        %v5650 = vunpack.c.l.s4 1983009808
        %v5651 = vunpack.c.0.s8 %v5650
        %v5652 = vlaneseq
        %v5653 = vshrl.u32 %v5652, 7
        %v5654 = vsub.s32 %v5651, %v5653
        %v5655 = vrot.slane %v5488, %v5654
        %v5657 = vunpack.c.l.s4 1983009808
        %v5658 = vunpack.c.0.s8 %v5657
        %v5659 = vlaneseq
        %v5660 = vshrl.u32 %v5659, 7
        %v5661 = vsub.s32 %v5658, %v5660
        %v5662 = vrot.slane %v5648, %v5661
        %v5663 = vcombine.high %v5655, %v5655
        %v5664 = vcombine.high %v5662, %v5662
        %v5665 = vcombine.high %v5489, %v5489
        %v5667 = vunpack.c.l.s4 1983009808
        %v5668 = vunpack.c.0.s8 %v5667
        %v5669 = vlaneseq
        %v5670 = vshrl.u32 %v5669, 7
        %v5671 = vsub.s32 %v5668, %v5670
        %v5672 = vrot.slane %v5489, %v5671
        %v5674 = vunpack.c.l.s4 1983009808
        %v5675 = vunpack.c.0.s8 %v5674
        %v5676 = vlaneseq
        %v5677 = vshrl.u32 %v5676, 7
        %v5678 = vsub.s32 %v5675, %v5677
        %v5679 = vrot.slane %v5665, %v5678
        %v5680 = vcombine.high %v5672, %v5672
        %v5681 = vcombine.high %v5679, %v5679
        %v5682 = vcombine.high %v5490, %v5490
        %v5684 = vunpack.c.l.s4 1983009808
        %v5685 = vunpack.c.0.s8 %v5684
        %v5686 = vlaneseq
        %v5687 = vshrl.u32 %v5686, 7
        %v5688 = vsub.s32 %v5685, %v5687
        %v5689 = vrot.slane %v5490, %v5688
        %v5691 = vunpack.c.l.s4 1983009808
        %v5692 = vunpack.c.0.s8 %v5691
        %v5693 = vlaneseq
        %v5694 = vshrl.u32 %v5693, 7
        %v5695 = vsub.s32 %v5692, %v5694
        %v5696 = vrot.slane %v5682, %v5695
        %v5697 = vcombine.high %v5689, %v5689
        %v5698 = vcombine.high %v5696, %v5696
        %v5699 = vcombine.high %v5491, %v5491
        %v5701 = vunpack.c.l.s4 1983009808
        %v5702 = vunpack.c.0.s8 %v5701
        %v5703 = vlaneseq
        %v5704 = vshrl.u32 %v5703, 7
        %v5705 = vsub.s32 %v5702, %v5704
        %v5706 = vrot.slane %v5491, %v5705
        %v5708 = vunpack.c.l.s4 1983009808
        %v5709 = vunpack.c.0.s8 %v5708
        %v5710 = vlaneseq
        %v5711 = vshrl.u32 %v5710, 7
        %v5712 = vsub.s32 %v5709, %v5711
        %v5713 = vrot.slane %v5699, %v5712
        %v5714 = vcombine.high %v5706, %v5706
        %v5715 = vcombine.high %v5713, %v5713
        %v5716 = vcombine.high %v5492, %v5492
        %v5718 = vunpack.c.l.s4 1983009808
        %v5719 = vunpack.c.0.s8 %v5718
        %v5720 = vlaneseq
        %v5721 = vshrl.u32 %v5720, 7
        %v5722 = vsub.s32 %v5719, %v5721
        %v5723 = vrot.slane %v5492, %v5722
        %v5725 = vunpack.c.l.s4 1983009808
        %v5726 = vunpack.c.0.s8 %v5725
        %v5727 = vlaneseq
        %v5728 = vshrl.u32 %v5727, 7
        %v5729 = vsub.s32 %v5726, %v5728
        %v5730 = vrot.slane %v5716, %v5729
        %v5731 = vcombine.high %v5723, %v5723
        %v5732 = vcombine.high %v5730, %v5730
        %v5733 = vcombine.high %v5493, %v5493
        %v5735 = vunpack.c.l.s4 1983009808
        %v5736 = vunpack.c.0.s8 %v5735
        %v5737 = vlaneseq
        %v5738 = vshrl.u32 %v5737, 7
        %v5739 = vsub.s32 %v5736, %v5738
        %v5740 = vrot.slane %v5493, %v5739
        %v5742 = vunpack.c.l.s4 1983009808
        %v5743 = vunpack.c.0.s8 %v5742
        %v5744 = vlaneseq
        %v5745 = vshrl.u32 %v5744, 7
        %v5746 = vsub.s32 %v5743, %v5745
        %v5747 = vrot.slane %v5733, %v5746
        %v5748 = vcombine.high %v5740, %v5740
        %v5749 = vcombine.high %v5747, %v5747
        %v5750 = vcombine.high %v5494, %v5494
        %v5752 = vunpack.c.l.s4 1983009808
        %v5753 = vunpack.c.0.s8 %v5752
        %v5754 = vlaneseq
        %v5755 = vshrl.u32 %v5754, 7
        %v5756 = vsub.s32 %v5753, %v5755
        %v5757 = vrot.slane %v5494, %v5756
        %v5759 = vunpack.c.l.s4 1983009808
        %v5760 = vunpack.c.0.s8 %v5759
        %v5761 = vlaneseq
        %v5762 = vshrl.u32 %v5761, 7
        %v5763 = vsub.s32 %v5760, %v5762
        %v5764 = vrot.slane %v5750, %v5763
        %v5765 = vcombine.high %v5757, %v5757
        %v5766 = vcombine.high %v5764, %v5764
        %v5767 = vcombine.high %v5495, %v5495
        %v5769 = vunpack.c.l.s4 1983009808
        %v5770 = vunpack.c.0.s8 %v5769
        %v5771 = vlaneseq
        %v5772 = vshrl.u32 %v5771, 7
        %v5773 = vsub.s32 %v5770, %v5772
        %v5774 = vrot.slane %v5495, %v5773
        %v5776 = vunpack.c.l.s4 1983009808
        %v5777 = vunpack.c.0.s8 %v5776
        %v5778 = vlaneseq
        %v5779 = vshrl.u32 %v5778, 7
        %v5780 = vsub.s32 %v5777, %v5779
        %v5781 = vrot.slane %v5767, %v5780
        %v5782 = vcombine.high %v5774, %v5774
        %v5783 = vcombine.high %v5781, %v5781
        %v5848 = vsel %vm2245, %v5519, 0.0
        %v5849 = vrot.slane %v5848, 4
        %v5850 = vadd.f32 %v5848, %v5849
        %v5851 = vrot.slane %v5850, 2
        %v5852 = vadd.f32 %v5850, %v5851
        %v5853 = vrot.slane %v5852, 1
        %v5854 = vadd.f32 %v5852, %v5853
        %v5855 = vsel %vm2245, %v5527, 0.0
        %v5856 = vrot.slane %v5855, 4
        %v5857 = vadd.f32 %v5855, %v5856
        %v5858 = vrot.slane %v5857, 2
        %v5859 = vadd.f32 %v5857, %v5858
        %v5860 = vrot.slane %v5859, 1
        %v5861 = vadd.f32 %v5859, %v5860
        %v5862 = vsel %vm2245, %v5526, 0.0
        %v5863 = vrot.slane %v5862, 4
        %v5864 = vadd.f32 %v5862, %v5863
        %v5865 = vrot.slane %v5864, 2
        %v5866 = vadd.f32 %v5864, %v5865
        %v5867 = vrot.slane %v5866, 1
        %v5868 = vadd.f32 %v5866, %v5867
        %v5869 = vsel %vm2245, %v5528, 0.0
        %v5870 = vrot.slane %v5869, 4
        %v5871 = vadd.f32 %v5869, %v5870
        %v5872 = vrot.slane %v5871, 2
        %v5873 = vadd.f32 %v5871, %v5872
        %v5874 = vrot.slane %v5873, 1
        %v5875 = vadd.f32 %v5873, %v5874
        %v5876 = vsel %vm2245, %v5536, 0.0
        %v5877 = vrot.slane %v5876, 4
        %v5878 = vadd.f32 %v5876, %v5877
        %v5879 = vrot.slane %v5878, 2
        %v5880 = vadd.f32 %v5878, %v5879
        %v5881 = vrot.slane %v5880, 1
        %v5882 = vadd.f32 %v5880, %v5881
        %v5883 = vsel %vm2245, %v5544, 0.0
        %v5884 = vrot.slane %v5883, 4
        %v5885 = vadd.f32 %v5883, %v5884
        %v5886 = vrot.slane %v5885, 2
        %v5887 = vadd.f32 %v5885, %v5886
        %v5888 = vrot.slane %v5887, 1
        %v5889 = vadd.f32 %v5887, %v5888
        %v5890 = vsel %vm2245, %v5543, 0.0
        %v5891 = vrot.slane %v5890, 4
        %v5892 = vadd.f32 %v5890, %v5891
        %v5893 = vrot.slane %v5892, 2
        %v5894 = vadd.f32 %v5892, %v5893
        %v5895 = vrot.slane %v5894, 1
        %v5896 = vadd.f32 %v5894, %v5895
        %v5897 = vsel %vm2245, %v5545, 0.0
        %v5898 = vrot.slane %v5897, 4
        %v5899 = vadd.f32 %v5897, %v5898
        %v5900 = vrot.slane %v5899, 2
        %v5901 = vadd.f32 %v5899, %v5900
        %v5902 = vrot.slane %v5901, 1
        %v5903 = vadd.f32 %v5901, %v5902
        %v5904 = vsel %vm2245, %v5553, 0.0
        %v5905 = vrot.slane %v5904, 4
        %v5906 = vadd.f32 %v5904, %v5905
        %v5907 = vrot.slane %v5906, 2
        %v5908 = vadd.f32 %v5906, %v5907
        %v5909 = vrot.slane %v5908, 1
        %v5910 = vadd.f32 %v5908, %v5909
        %v5911 = vsel %vm2245, %v5561, 0.0
        %v5912 = vrot.slane %v5911, 4
        %v5913 = vadd.f32 %v5911, %v5912
        %v5914 = vrot.slane %v5913, 2
        %v5915 = vadd.f32 %v5913, %v5914
        %v5916 = vrot.slane %v5915, 1
        %v5917 = vadd.f32 %v5915, %v5916
        %v5918 = vsel %vm2245, %v5560, 0.0
        %v5919 = vrot.slane %v5918, 4
        %v5920 = vadd.f32 %v5918, %v5919
        %v5921 = vrot.slane %v5920, 2
        %v5922 = vadd.f32 %v5920, %v5921
        %v5923 = vrot.slane %v5922, 1
        %v5924 = vadd.f32 %v5922, %v5923
        %v5925 = vsel %vm2245, %v5562, 0.0
        %v5926 = vrot.slane %v5925, 4
        %v5927 = vadd.f32 %v5925, %v5926
        %v5928 = vrot.slane %v5927, 2
        %v5929 = vadd.f32 %v5927, %v5928
        %v5930 = vrot.slane %v5929, 1
        %v5931 = vadd.f32 %v5929, %v5930
        %v5932 = vsel %vm2245, %v5570, 0.0
        %v5933 = vrot.slane %v5932, 4
        %v5934 = vadd.f32 %v5932, %v5933
        %v5935 = vrot.slane %v5934, 2
        %v5936 = vadd.f32 %v5934, %v5935
        %v5937 = vrot.slane %v5936, 1
        %v5938 = vadd.f32 %v5936, %v5937
        %v5939 = vsel %vm2245, %v5578, 0.0
        %v5940 = vrot.slane %v5939, 4
        %v5941 = vadd.f32 %v5939, %v5940
        %v5942 = vrot.slane %v5941, 2
        %v5943 = vadd.f32 %v5941, %v5942
        %v5944 = vrot.slane %v5943, 1
        %v5945 = vadd.f32 %v5943, %v5944
        %v5946 = vsel %vm2245, %v5577, 0.0
        %v5947 = vrot.slane %v5946, 4
        %v5948 = vadd.f32 %v5946, %v5947
        %v5949 = vrot.slane %v5948, 2
        %v5950 = vadd.f32 %v5948, %v5949
        %v5951 = vrot.slane %v5950, 1
        %v5952 = vadd.f32 %v5950, %v5951
        %v5953 = vsel %vm2245, %v5579, 0.0
        %v5954 = vrot.slane %v5953, 4
        %v5955 = vadd.f32 %v5953, %v5954
        %v5956 = vrot.slane %v5955, 2
        %v5957 = vadd.f32 %v5955, %v5956
        %v5958 = vrot.slane %v5957, 1
        %v5959 = vadd.f32 %v5957, %v5958
        %v5960 = vsel %vm2245, %v5587, 0.0
        %v5961 = vrot.slane %v5960, 4
        %v5962 = vadd.f32 %v5960, %v5961
        %v5963 = vrot.slane %v5962, 2
        %v5964 = vadd.f32 %v5962, %v5963
        %v5965 = vrot.slane %v5964, 1
        %v5966 = vadd.f32 %v5964, %v5965
        %v5967 = vsel %vm2245, %v5595, 0.0
        %v5968 = vrot.slane %v5967, 4
        %v5969 = vadd.f32 %v5967, %v5968
        %v5970 = vrot.slane %v5969, 2
        %v5971 = vadd.f32 %v5969, %v5970
        %v5972 = vrot.slane %v5971, 1
        %v5973 = vadd.f32 %v5971, %v5972
        %v5974 = vsel %vm2245, %v5594, 0.0
        %v5975 = vrot.slane %v5974, 4
        %v5976 = vadd.f32 %v5974, %v5975
        %v5977 = vrot.slane %v5976, 2
        %v5978 = vadd.f32 %v5976, %v5977
        %v5979 = vrot.slane %v5978, 1
        %v5980 = vadd.f32 %v5978, %v5979
        %v5981 = vsel %vm2245, %v5596, 0.0
        %v5982 = vrot.slane %v5981, 4
        %v5983 = vadd.f32 %v5981, %v5982
        %v5984 = vrot.slane %v5983, 2
        %v5985 = vadd.f32 %v5983, %v5984
        %v5986 = vrot.slane %v5985, 1
        %v5987 = vadd.f32 %v5985, %v5986
        %v5988 = vsel %vm2245, %v5604, 0.0
        %v5989 = vrot.slane %v5988, 4
        %v5990 = vadd.f32 %v5988, %v5989
        %v5991 = vrot.slane %v5990, 2
        %v5992 = vadd.f32 %v5990, %v5991
        %v5993 = vrot.slane %v5992, 1
        %v5994 = vadd.f32 %v5992, %v5993
        %v5995 = vsel %vm2245, %v5612, 0.0
        %v5996 = vrot.slane %v5995, 4
        %v5997 = vadd.f32 %v5995, %v5996
        %v5998 = vrot.slane %v5997, 2
        %v5999 = vadd.f32 %v5997, %v5998
        %v6000 = vrot.slane %v5999, 1
        %v6001 = vadd.f32 %v5999, %v6000
        %v6002 = vsel %vm2245, %v5611, 0.0
        %v6003 = vrot.slane %v6002, 4
        %v6004 = vadd.f32 %v6002, %v6003
        %v6005 = vrot.slane %v6004, 2
        %v6006 = vadd.f32 %v6004, %v6005
        %v6007 = vrot.slane %v6006, 1
        %v6008 = vadd.f32 %v6006, %v6007
        %v6009 = vsel %vm2245, %v5613, 0.0
        %v6010 = vrot.slane %v6009, 4
        %v6011 = vadd.f32 %v6009, %v6010
        %v6012 = vrot.slane %v6011, 2
        %v6013 = vadd.f32 %v6011, %v6012
        %v6014 = vrot.slane %v6013, 1
        %v6015 = vadd.f32 %v6013, %v6014
        %v6016 = vsel %vm2245, %v5621, 0.0
        %v6017 = vrot.slane %v6016, 4
        %v6018 = vadd.f32 %v6016, %v6017
        %v6019 = vrot.slane %v6018, 2
        %v6020 = vadd.f32 %v6018, %v6019
        %v6021 = vrot.slane %v6020, 1
        %v6022 = vadd.f32 %v6020, %v6021
        %v6023 = vsel %vm2245, %v5629, 0.0
        %v6024 = vrot.slane %v6023, 4
        %v6025 = vadd.f32 %v6023, %v6024
        %v6026 = vrot.slane %v6025, 2
        %v6027 = vadd.f32 %v6025, %v6026
        %v6028 = vrot.slane %v6027, 1
        %v6029 = vadd.f32 %v6027, %v6028
        %v6030 = vsel %vm2245, %v5628, 0.0
        %v6031 = vrot.slane %v6030, 4
        %v6032 = vadd.f32 %v6030, %v6031
        %v6033 = vrot.slane %v6032, 2
        %v6034 = vadd.f32 %v6032, %v6033
        %v6035 = vrot.slane %v6034, 1
        %v6036 = vadd.f32 %v6034, %v6035
        %v6037 = vsel %vm2245, %v5630, 0.0
        %v6038 = vrot.slane %v6037, 4
        %v6039 = vadd.f32 %v6037, %v6038
        %v6040 = vrot.slane %v6039, 2
        %v6041 = vadd.f32 %v6039, %v6040
        %v6042 = vrot.slane %v6041, 1
        %v6043 = vadd.f32 %v6041, %v6042
        %v6044 = vsel %vm2245, %v5638, 0.0
        %v6045 = vrot.slane %v6044, 4
        %v6046 = vadd.f32 %v6044, %v6045
        %v6047 = vrot.slane %v6046, 2
        %v6048 = vadd.f32 %v6046, %v6047
        %v6049 = vrot.slane %v6048, 1
        %v6050 = vadd.f32 %v6048, %v6049
        %v6051 = vsel %vm2245, %v5646, 0.0
        %v6052 = vrot.slane %v6051, 4
        %v6053 = vadd.f32 %v6051, %v6052
        %v6054 = vrot.slane %v6053, 2
        %v6055 = vadd.f32 %v6053, %v6054
        %v6056 = vrot.slane %v6055, 1
        %v6057 = vadd.f32 %v6055, %v6056
        %v6058 = vsel %vm2245, %v5645, 0.0
        %v6059 = vrot.slane %v6058, 4
        %v6060 = vadd.f32 %v6058, %v6059
        %v6061 = vrot.slane %v6060, 2
        %v6062 = vadd.f32 %v6060, %v6061
        %v6063 = vrot.slane %v6062, 1
        %v6064 = vadd.f32 %v6062, %v6063
        %v6065 = vsel %vm2245, %v5647, 0.0
        %v6066 = vrot.slane %v6065, 4
        %v6067 = vadd.f32 %v6065, %v6066
        %v6068 = vrot.slane %v6067, 2
        %v6069 = vadd.f32 %v6067, %v6068
        %v6070 = vrot.slane %v6069, 1
        %v6071 = vadd.f32 %v6069, %v6070
        %v6072 = vsel %vm2245, %v5655, 0.0
        %v6073 = vrot.slane %v6072, 4
        %v6074 = vadd.f32 %v6072, %v6073
        %v6075 = vrot.slane %v6074, 2
        %v6076 = vadd.f32 %v6074, %v6075
        %v6077 = vrot.slane %v6076, 1
        %v6078 = vadd.f32 %v6076, %v6077
        %v6079 = vsel %vm2245, %v5663, 0.0
        %v6080 = vrot.slane %v6079, 4
        %v6081 = vadd.f32 %v6079, %v6080
        %v6082 = vrot.slane %v6081, 2
        %v6083 = vadd.f32 %v6081, %v6082
        %v6084 = vrot.slane %v6083, 1
        %v6085 = vadd.f32 %v6083, %v6084
        %v6086 = vsel %vm2245, %v5662, 0.0
        %v6087 = vrot.slane %v6086, 4
        %v6088 = vadd.f32 %v6086, %v6087
        %v6089 = vrot.slane %v6088, 2
        %v6090 = vadd.f32 %v6088, %v6089
        %v6091 = vrot.slane %v6090, 1
        %v6092 = vadd.f32 %v6090, %v6091
        %v6093 = vsel %vm2245, %v5664, 0.0
        %v6094 = vrot.slane %v6093, 4
        %v6095 = vadd.f32 %v6093, %v6094
        %v6096 = vrot.slane %v6095, 2
        %v6097 = vadd.f32 %v6095, %v6096
        %v6098 = vrot.slane %v6097, 1
        %v6099 = vadd.f32 %v6097, %v6098
        %v6100 = vsel %vm2245, %v5672, 0.0
        %v6101 = vrot.slane %v6100, 4
        %v6102 = vadd.f32 %v6100, %v6101
        %v6103 = vrot.slane %v6102, 2
        %v6104 = vadd.f32 %v6102, %v6103
        %v6105 = vrot.slane %v6104, 1
        %v6106 = vadd.f32 %v6104, %v6105
        %v6107 = vsel %vm2245, %v5680, 0.0
        %v6108 = vrot.slane %v6107, 4
        %v6109 = vadd.f32 %v6107, %v6108
        %v6110 = vrot.slane %v6109, 2
        %v6111 = vadd.f32 %v6109, %v6110
        %v6112 = vrot.slane %v6111, 1
        %v6113 = vadd.f32 %v6111, %v6112
        %v6114 = vsel %vm2245, %v5679, 0.0
        %v6115 = vrot.slane %v6114, 4
        %v6116 = vadd.f32 %v6114, %v6115
        %v6117 = vrot.slane %v6116, 2
        %v6118 = vadd.f32 %v6116, %v6117
        %v6119 = vrot.slane %v6118, 1
        %v6120 = vadd.f32 %v6118, %v6119
        %v6121 = vsel %vm2245, %v5681, 0.0
        %v6122 = vrot.slane %v6121, 4
        %v6123 = vadd.f32 %v6121, %v6122
        %v6124 = vrot.slane %v6123, 2
        %v6125 = vadd.f32 %v6123, %v6124
        %v6126 = vrot.slane %v6125, 1
        %v6127 = vadd.f32 %v6125, %v6126
        %v6128 = vsel %vm2245, %v5689, 0.0
        %v6129 = vrot.slane %v6128, 4
        %v6130 = vadd.f32 %v6128, %v6129
        %v6131 = vrot.slane %v6130, 2
        %v6132 = vadd.f32 %v6130, %v6131
        %v6133 = vrot.slane %v6132, 1
        %v6134 = vadd.f32 %v6132, %v6133
        %v6135 = vsel %vm2245, %v5697, 0.0
        %v6136 = vrot.slane %v6135, 4
        %v6137 = vadd.f32 %v6135, %v6136
        %v6138 = vrot.slane %v6137, 2
        %v6139 = vadd.f32 %v6137, %v6138
        %v6140 = vrot.slane %v6139, 1
        %v6141 = vadd.f32 %v6139, %v6140
        %v6142 = vsel %vm2245, %v5696, 0.0
        %v6143 = vrot.slane %v6142, 4
        %v6144 = vadd.f32 %v6142, %v6143
        %v6145 = vrot.slane %v6144, 2
        %v6146 = vadd.f32 %v6144, %v6145
        %v6147 = vrot.slane %v6146, 1
        %v6148 = vadd.f32 %v6146, %v6147
        %v6149 = vsel %vm2245, %v5698, 0.0
        %v6150 = vrot.slane %v6149, 4
        %v6151 = vadd.f32 %v6149, %v6150
        %v6152 = vrot.slane %v6151, 2
        %v6153 = vadd.f32 %v6151, %v6152
        %v6154 = vrot.slane %v6153, 1
        %v6155 = vadd.f32 %v6153, %v6154
        %v6156 = vsel %vm2245, %v5706, 0.0
        %v6157 = vrot.slane %v6156, 4
        %v6158 = vadd.f32 %v6156, %v6157
        %v6159 = vrot.slane %v6158, 2
        %v6160 = vadd.f32 %v6158, %v6159
        %v6161 = vrot.slane %v6160, 1
        %v6162 = vadd.f32 %v6160, %v6161
        %v6163 = vsel %vm2245, %v5714, 0.0
        %v6164 = vrot.slane %v6163, 4
        %v6165 = vadd.f32 %v6163, %v6164
        %v6166 = vrot.slane %v6165, 2
        %v6167 = vadd.f32 %v6165, %v6166
        %v6168 = vrot.slane %v6167, 1
        %v6169 = vadd.f32 %v6167, %v6168
        %v6170 = vsel %vm2245, %v5713, 0.0
        %v6171 = vrot.slane %v6170, 4
        %v6172 = vadd.f32 %v6170, %v6171
        %v6173 = vrot.slane %v6172, 2
        %v6174 = vadd.f32 %v6172, %v6173
        %v6175 = vrot.slane %v6174, 1
        %v6176 = vadd.f32 %v6174, %v6175
        %v6177 = vsel %vm2245, %v5715, 0.0
        %v6178 = vrot.slane %v6177, 4
        %v6179 = vadd.f32 %v6177, %v6178
        %v6180 = vrot.slane %v6179, 2
        %v6181 = vadd.f32 %v6179, %v6180
        %v6182 = vrot.slane %v6181, 1
        %v6183 = vadd.f32 %v6181, %v6182
        %v6184 = vsel %vm2245, %v5723, 0.0
        %v6185 = vrot.slane %v6184, 4
        %v6186 = vadd.f32 %v6184, %v6185
        %v6187 = vrot.slane %v6186, 2
        %v6188 = vadd.f32 %v6186, %v6187
        %v6189 = vrot.slane %v6188, 1
        %v6190 = vadd.f32 %v6188, %v6189
        %v6191 = vsel %vm2245, %v5731, 0.0
        %v6192 = vrot.slane %v6191, 4
        %v6193 = vadd.f32 %v6191, %v6192
        %v6194 = vrot.slane %v6193, 2
        %v6195 = vadd.f32 %v6193, %v6194
        %v6196 = vrot.slane %v6195, 1
        %v6197 = vadd.f32 %v6195, %v6196
        %v6198 = vsel %vm2245, %v5730, 0.0
        %v6199 = vrot.slane %v6198, 4
        %v6200 = vadd.f32 %v6198, %v6199
        %v6201 = vrot.slane %v6200, 2
        %v6202 = vadd.f32 %v6200, %v6201
        %v6203 = vrot.slane %v6202, 1
        %v6204 = vadd.f32 %v6202, %v6203
        %v6205 = vsel %vm2245, %v5732, 0.0
        %v6206 = vrot.slane %v6205, 4
        %v6207 = vadd.f32 %v6205, %v6206
        %v6208 = vrot.slane %v6207, 2
        %v6209 = vadd.f32 %v6207, %v6208
        %v6210 = vrot.slane %v6209, 1
        %v6211 = vadd.f32 %v6209, %v6210
        %v6212 = vsel %vm2245, %v5740, 0.0
        %v6213 = vrot.slane %v6212, 4
        %v6214 = vadd.f32 %v6212, %v6213
        %v6215 = vrot.slane %v6214, 2
        %v6216 = vadd.f32 %v6214, %v6215
        %v6217 = vrot.slane %v6216, 1
        %v6218 = vadd.f32 %v6216, %v6217
        %v6219 = vsel %vm2245, %v5748, 0.0
        %v6220 = vrot.slane %v6219, 4
        %v6221 = vadd.f32 %v6219, %v6220
        %v6222 = vrot.slane %v6221, 2
        %v6223 = vadd.f32 %v6221, %v6222
        %v6224 = vrot.slane %v6223, 1
        %v6225 = vadd.f32 %v6223, %v6224
        %v6226 = vsel %vm2245, %v5747, 0.0
        %v6227 = vrot.slane %v6226, 4
        %v6228 = vadd.f32 %v6226, %v6227
        %v6229 = vrot.slane %v6228, 2
        %v6230 = vadd.f32 %v6228, %v6229
        %v6231 = vrot.slane %v6230, 1
        %v6232 = vadd.f32 %v6230, %v6231
        %v6233 = vsel %vm2245, %v5749, 0.0
        %v6234 = vrot.slane %v6233, 4
        %v6235 = vadd.f32 %v6233, %v6234
        %v6236 = vrot.slane %v6235, 2
        %v6237 = vadd.f32 %v6235, %v6236
        %v6238 = vrot.slane %v6237, 1
        %v6239 = vadd.f32 %v6237, %v6238
        %v6240 = vsel %vm2245, %v5757, 0.0
        %v6241 = vrot.slane %v6240, 4
        %v6242 = vadd.f32 %v6240, %v6241
        %v6243 = vrot.slane %v6242, 2
        %v6244 = vadd.f32 %v6242, %v6243
        %v6245 = vrot.slane %v6244, 1
        %v6246 = vadd.f32 %v6244, %v6245
        %v6247 = vsel %vm2245, %v5765, 0.0
        %v6248 = vrot.slane %v6247, 4
        %v6249 = vadd.f32 %v6247, %v6248
        %v6250 = vrot.slane %v6249, 2
        %v6251 = vadd.f32 %v6249, %v6250
        %v6252 = vrot.slane %v6251, 1
        %v6253 = vadd.f32 %v6251, %v6252
        %v6254 = vsel %vm2245, %v5764, 0.0
        %v6255 = vrot.slane %v6254, 4
        %v6256 = vadd.f32 %v6254, %v6255
        %v6257 = vrot.slane %v6256, 2
        %v6258 = vadd.f32 %v6256, %v6257
        %v6259 = vrot.slane %v6258, 1
        %v6260 = vadd.f32 %v6258, %v6259
        %v6261 = vsel %vm2245, %v5766, 0.0
        %v6262 = vrot.slane %v6261, 4
        %v6263 = vadd.f32 %v6261, %v6262
        %v6264 = vrot.slane %v6263, 2
        %v6265 = vadd.f32 %v6263, %v6264
        %v6266 = vrot.slane %v6265, 1
        %v6267 = vadd.f32 %v6265, %v6266
        %v6268 = vsel %vm2245, %v5774, 0.0
        %v6269 = vrot.slane %v6268, 4
        %v6270 = vadd.f32 %v6268, %v6269
        %v6271 = vrot.slane %v6270, 2
        %v6272 = vadd.f32 %v6270, %v6271
        %v6273 = vrot.slane %v6272, 1
        %v6274 = vadd.f32 %v6272, %v6273
        %v6275 = vsel %vm2245, %v5782, 0.0
        %v6276 = vrot.slane %v6275, 4
        %v6277 = vadd.f32 %v6275, %v6276
        %v6278 = vrot.slane %v6277, 2
        %v6279 = vadd.f32 %v6277, %v6278
        %v6280 = vrot.slane %v6279, 1
        %v6281 = vadd.f32 %v6279, %v6280
        %v6282 = vsel %vm2245, %v5781, 0.0
        %v6283 = vrot.slane %v6282, 4
        %v6284 = vadd.f32 %v6282, %v6283
        %v6285 = vrot.slane %v6284, 2
        %v6286 = vadd.f32 %v6284, %v6285
        %v6287 = vrot.slane %v6286, 1
        %v6288 = vadd.f32 %v6286, %v6287
        %v6289 = vsel %vm2245, %v5783, 0.0
        %v6290 = vrot.slane %v6289, 4
        %v6291 = vadd.f32 %v6289, %v6290
        %v6292 = vrot.slane %v6291, 2
        %v6293 = vadd.f32 %v6291, %v6292
        %v6294 = vrot.slane %v6293, 1
        %v6295 = vadd.f32 %v6293, %v6294
        %v6296 = vmul.f32 %v5854, 0.25
        %v6297 = vmul.f32 %v5861, 0.25
        %v6298 = vmul.f32 %v5868, 0.25
        %v6299 = vmul.f32 %v5875, 0.25
        %v6300 = vmul.f32 %v5882, 0.25
        %v6301 = vmul.f32 %v5889, 0.25
        %v6302 = vmul.f32 %v5896, 0.25
        %v6303 = vmul.f32 %v5903, 0.25
        %v6304 = vmul.f32 %v5910, 0.25
        %v6305 = vmul.f32 %v5917, 0.25
        %v6306 = vmul.f32 %v5924, 0.25
        %v6307 = vmul.f32 %v5931, 0.25
        %v6308 = vmul.f32 %v5938, 0.25
        %v6309 = vmul.f32 %v5945, 0.25
        %v6310 = vmul.f32 %v5952, 0.25
        %v6311 = vmul.f32 %v5959, 0.25
        %v6312 = vmul.f32 %v5966, 0.25
        %v6313 = vmul.f32 %v5973, 0.25
        %v6314 = vmul.f32 %v5980, 0.25
        %v6315 = vmul.f32 %v5987, 0.25
        %v6316 = vmul.f32 %v5994, 0.25
        %v6317 = vmul.f32 %v6001, 0.25
        %v6318 = vmul.f32 %v6008, 0.25
        %v6319 = vmul.f32 %v6015, 0.25
        %v6320 = vmul.f32 %v6022, 0.25
        %v6321 = vmul.f32 %v6029, 0.25
        %v6322 = vmul.f32 %v6036, 0.25
        %v6323 = vmul.f32 %v6043, 0.25
        %v6324 = vmul.f32 %v6050, 0.25
        %v6325 = vmul.f32 %v6057, 0.25
        %v6326 = vmul.f32 %v6064, 0.25
        %v6327 = vmul.f32 %v6071, 0.25
        %v6328 = vmul.f32 %v6078, 0.25
        %v6329 = vmul.f32 %v6085, 0.25
        %v6330 = vmul.f32 %v6092, 0.25
        %v6331 = vmul.f32 %v6099, 0.25
        %v6332 = vmul.f32 %v6106, 0.25
        %v6333 = vmul.f32 %v6113, 0.25
        %v6334 = vmul.f32 %v6120, 0.25
        %v6335 = vmul.f32 %v6127, 0.25
        %v6336 = vmul.f32 %v6134, 0.25
        %v6337 = vmul.f32 %v6141, 0.25
        %v6338 = vmul.f32 %v6148, 0.25
        %v6339 = vmul.f32 %v6155, 0.25
        %v6340 = vmul.f32 %v6162, 0.25
        %v6341 = vmul.f32 %v6169, 0.25
        %v6342 = vmul.f32 %v6176, 0.25
        %v6343 = vmul.f32 %v6183, 0.25
        %v6344 = vmul.f32 %v6190, 0.25
        %v6345 = vmul.f32 %v6197, 0.25
        %v6346 = vmul.f32 %v6204, 0.25
        %v6347 = vmul.f32 %v6211, 0.25
        %v6348 = vmul.f32 %v6218, 0.25
        %v6349 = vmul.f32 %v6225, 0.25
        %v6350 = vmul.f32 %v6232, 0.25
        %v6351 = vmul.f32 %v6239, 0.25
        %v6352 = vmul.f32 %v6246, 0.25
        %v6353 = vmul.f32 %v6253, 0.25
        %v6354 = vmul.f32 %v6260, 0.25
        %v6355 = vmul.f32 %v6267, 0.25
        %v6356 = vmul.f32 %v6274, 0.25
        %v6357 = vmul.f32 %v6281, 0.25
        %v6358 = vmul.f32 %v6288, 0.25
        %v6359 = vmul.f32 %v6295, 0.25
        %vm6424 = vcmask 1041409
        %v6425 = vsel %vm6424, %v6297, %v6296
        %vm6426 = vcmask 1042434
        %v6427 = vsel %vm6426, %v6298, %v6425
        %vm6428 = vcmask 1043459
        %v6429 = vsel %vm6428, %v6299, %v6427
        %vm6430 = vcmask 1044484
        %v6431 = vsel %vm6430, %v6300, %v6429
        %vm6432 = vcmask 1045509
        %v6433 = vsel %vm6432, %v6301, %v6431
        %vm6434 = vcmask 1046534
        %v6435 = vsel %vm6434, %v6302, %v6433
        %vm6436 = vcmask 1047559
        %v6437 = vsel %vm6436, %v6303, %v6435
        %v6438 = vsel %vm6424, %v6305, %v6304
        %v6439 = vsel %vm6426, %v6306, %v6438
        %v6440 = vsel %vm6428, %v6307, %v6439
        %v6441 = vsel %vm6430, %v6308, %v6440
        %v6442 = vsel %vm6432, %v6309, %v6441
        %v6443 = vsel %vm6434, %v6310, %v6442
        %v6444 = vsel %vm6436, %v6311, %v6443
        %v6445 = vsel %vm6424, %v6313, %v6312
        %v6446 = vsel %vm6426, %v6314, %v6445
        %v6447 = vsel %vm6428, %v6315, %v6446
        %v6448 = vsel %vm6430, %v6316, %v6447
        %v6449 = vsel %vm6432, %v6317, %v6448
        %v6450 = vsel %vm6434, %v6318, %v6449
        %v6451 = vsel %vm6436, %v6319, %v6450
        %v6452 = vsel %vm6424, %v6321, %v6320
        %v6453 = vsel %vm6426, %v6322, %v6452
        %v6454 = vsel %vm6428, %v6323, %v6453
        %v6455 = vsel %vm6430, %v6324, %v6454
        %v6456 = vsel %vm6432, %v6325, %v6455
        %v6457 = vsel %vm6434, %v6326, %v6456
        %v6458 = vsel %vm6436, %v6327, %v6457
        %v6459 = vsel %vm6424, %v6329, %v6328
        %v6460 = vsel %vm6426, %v6330, %v6459
        %v6461 = vsel %vm6428, %v6331, %v6460
        %v6462 = vsel %vm6430, %v6332, %v6461
        %v6463 = vsel %vm6432, %v6333, %v6462
        %v6464 = vsel %vm6434, %v6334, %v6463
        %v6465 = vsel %vm6436, %v6335, %v6464
        %v6466 = vsel %vm6424, %v6337, %v6336
        %v6467 = vsel %vm6426, %v6338, %v6466
        %v6468 = vsel %vm6428, %v6339, %v6467
        %v6469 = vsel %vm6430, %v6340, %v6468
        %v6470 = vsel %vm6432, %v6341, %v6469
        %v6471 = vsel %vm6434, %v6342, %v6470
        %v6472 = vsel %vm6436, %v6343, %v6471
        %v6473 = vsel %vm6424, %v6345, %v6344
        %v6474 = vsel %vm6426, %v6346, %v6473
        %v6475 = vsel %vm6428, %v6347, %v6474
        %v6476 = vsel %vm6430, %v6348, %v6475
        %v6477 = vsel %vm6432, %v6349, %v6476
        %v6478 = vsel %vm6434, %v6350, %v6477
        %v6479 = vsel %vm6436, %v6351, %v6478
        %v6480 = vsel %vm6424, %v6353, %v6352
        %v6481 = vsel %vm6426, %v6354, %v6480
        %v6482 = vsel %vm6428, %v6355, %v6481
        %v6483 = vsel %vm6430, %v6356, %v6482
        %v6484 = vsel %vm6432, %v6357, %v6483
        %v6485 = vsel %vm6434, %v6358, %v6484
        %v6486 = vsel %vm6436, %v6359, %v6485
        %6495 = vst [vmem:[%s286] sm:$0xff] %v6437
        %6496 = vst [vmem:[%s286 + $0x8] sm:$0xff] %v6444
        %6497 = vst [vmem:[%s286 + $0x10] sm:$0xff] %v6451
        %6498 = vst [vmem:[%s286 + $0x18] sm:$0xff] %v6458
        %6499 = vst [vmem:[%s286 + $0x20] sm:$0xff] %v6465
        %6500 = vst [vmem:[%s286 + $0x28] sm:$0xff] %v6472
        %6501 = vst [vmem:[%s286 + $0x30] sm:$0xff] %v6479
        %6502 = vst [vmem:[%s286 + $0x38] sm:$0xff] %v6486
        %s6503 = sand.u32 %s182, 1
        %s6504 = scalar_lea.sflag [#allocation6], %s6503
        %s6505 = sand.u32 %s182, 1
        %s6506 = smul.addr %s6505, 64
        %s6507 = scalar_lea.vmem [#allocation7], %s6506
        // Predicated region
        $region53: #{conv_block_forward.1} parent=47 // pred_check
          %p6508 = pneg %p192
        $region54: #{conv_block_forward.1} parent=47 // pred_check_branch
          %6510 = sbr.rel (%p6508) target = $region56
        $region55: #{conv_block_forward.1} parent=47 // pred_region
          %s6512 = ssub.s32 1024, 1024
          %6513 = vsyncadd %s6504, %s6512
          %s6514 = smul.addr %s22, 8
          %s6515 = smul.addr %s6514, 128
          %s6516 = scalar_lea.hbm %s7, %s6515
          %s6517 = sshll.u32 %s6507, 4
          %s6518 = int_to_ptr.vmem [resolvable:$true] %s6517
          %6523 = dma.vmem_to_hbm [thread:$0]  %s6518, 1024, %s6516, %s6504, 128, 128, 8
        $region56: #{conv_block_forward.1} parent=47 // pred_fallthru
          _
      $region48: #{conv_block_forward.1} parent=5 // pred_fallthru
        _
      %p6524 = scmp.le.s32.totalorder 2, %s17
      // Predicated region
      $region57: #{conv_block_forward.1} parent=5 // pred_check
        %p6525 = pneg %p6524
      $region58: #{conv_block_forward.1} parent=5 // pred_check_branch
        %6527 = sbr.rel (%p6525) target = $region60
      $region59: #{conv_block_forward.1} parent=5 // pred_region
        %s6528 = ssub.s32 %s17, 2
        // Predicated region
        $region61: #{conv_block_forward.1} parent=59 // pred_check
          %p6529 = pneg %p198
        $region62: #{conv_block_forward.1} parent=59 // pred_check_branch
          %6531 = sbr.rel (%p6529) target = $region64
        $region63: #{conv_block_forward.1} parent=59 // pred_region
          %s6532 = sand.u32 %s183, 1
          %s6533 = scalar_lea.sflag [#allocation6], %s6532
          %s6534 = sand.u32 %s183, 1
          %s6535 = smul.addr %s6534, 64
          %s6536 = scalar_lea.vmem [#allocation7], %s6535
          %6537 = dma.done %s6533, 1024
        $region64: #{conv_block_forward.1} parent=59 // pred_fallthru
          _
      $region60: #{conv_block_forward.1} parent=5 // pred_fallthru
        _
    $region6: #{conv_block_forward.1} parent=1 // loop_footer
      %s21 = sadd.s32 1, %s17
    $region7: #{conv_block_forward.1} parent=1 // loop_footer_branch
      %16 = sbr.rel target = $region3
    $region8: #{conv_block_forward.1} parent=1 // loop_exit
      _
    %6538 = vsyncpa [#allocation5], 1
    %s6539 = scalar_lea.sflag [#allocation5], 1
    %6540 = vsyncpa %s6539, 1
    %6541 = vsyncpa [#allocation6], 1
    %s6542 = scalar_lea.sflag [#allocation6], 1
    %6543 = vsyncpa %s6542, 1

</llo_original>
